<compile_context>
chip_gen: v7x
topology: tpu7x:2x2x1
jax: 0.10.0
libtpu: 0.0.40
codegen_flags: <defaults>
</compile_context>

<pallas_src>
import functools

import numpy as np
import jax
import jax.numpy as jnp
from jax.experimental import pallas as pl
from jax.experimental.pallas import tpu as pltpu

FEAT_LEN = 12288          # 12292 if ONLY_IMG_FEAT were False (would need K padding)
HIDDEN1 = 1024
HIDDEN2 = 16
NUM_CLASSES = 2

TK = 4096                 # fc1 reduction tile: 12288 = 3 * 4096 -> 3 pipeline steps
H1_BLOCK = 512            # fc1 output-column tile: 2 blocks on a parallel grid axis


def _leaky_relu(x, slope=0.01):   # matches F.leaky_relu default negative_slope
    return jnp.where(x > 0, x, slope * x)


def fc1_kernel(x_ref, w1_ref, b1_ref, h1_ref, acc_ref):
    """h1[:, j*512:(j+1)*512] = leaky_relu(x @ W1[:, cols_j] + b1[cols_j]).

    Grid = (column block j [parallel], reduction chunk k [arbitrary]).
    dropout1 is identity at inference, so h1 is the fc1+leaky_relu output.
    """
    k = pl.program_id(1)

    @pl.when(k == 0)
    def _():
        acc_ref[...] = jnp.zeros_like(acc_ref)

    # [B, TK] @ [TK, 512], f32 accumulation on the MXU.
    acc_ref[...] += jnp.dot(x_ref[...], w1_ref[...],
                            preferred_element_type=jnp.float32)

    @pl.when(k == pl.num_programs(1) - 1)
    def _():
        h1_ref[...] = _leaky_relu(acc_ref[...] + b1_ref[...]).astype(h1_ref.dtype)


def epilogue_kernel(h1_ref, w2_ref, b2_ref, w3_ref, b3_ref, out_ref):
    """fc2 -> leaky_relu -> fc3 -> log_softmax (dropout2 identity at eval)."""
    h2 = jnp.dot(h1_ref[...], w2_ref[...], preferred_element_type=jnp.float32)
    h2 = _leaky_relu(h2 + b2_ref[...])
    logits = jnp.dot(h2, w3_ref[...], preferred_element_type=jnp.float32)
    logits = logits + b3_ref[...]
    m = jnp.max(logits, axis=-1, keepdims=True)
    z = logits - m
    lse = jnp.log(jnp.sum(jnp.exp(z), axis=-1, keepdims=True))
    out_ref[...] = (z - lse).astype(out_ref.dtype)


def _fc1_vmem_limit_bytes(batch, stream_itemsize):
    """Right-size the VMEM limit to the actual double-buffered footprint."""
    w1_bufs = 2 * TK * H1_BLOCK * stream_itemsize          # streamed W1 chunk x2
    x_bufs = 2 * batch * TK * stream_itemsize              # streamed x chunk x2
    b1_bufs = 2 * 8 * H1_BLOCK * 4                         # (1,512) pads to (8,512)
    h1_bufs = 2 * batch * H1_BLOCK * 4                     # output block x2
    acc = batch * H1_BLOCK * 4                             # f32 accumulator
    headroom = 16 << 20                                    # compiler-internal scratch
    return int(w1_bufs + x_bufs + b1_bufs + h1_bufs + acc + headroom)


def prepare_params(params, compute_dtype=jnp.bfloat16):
    """One-time prep for serving: cast the big fc1 weight to the streamed dtype.

    Doing this once (instead of per forward call) is what makes the bf16 path a
    net HBM-traffic win; biases and the tiny fc2/fc3 weights stay f32.
    """
    w1, b1, w2, b2, w3, b3 = params
    return (w1.astype(compute_dtype), b1, w2, b2, w3, b3)


@jax.jit
def net_forward(x, w1, b1, w2, b2, w3, b3):
    """Net.forward (eval).  w1's dtype is the streamed/MXU dtype for fc1
    (use `prepare_params` to pre-cast); accumulation is always f32."""
    B = x.shape[0]
    assert x.shape[1] == FEAT_LEN and FEAT_LEN % TK == 0, (
        "feat_len must be a multiple of TK (pad the feature dim otherwise)")
    n_k = FEAT_LEN // TK

    compute_dtype = w1.dtype
    x_s = x.astype(compute_dtype)                           # tiny vs. W1 stream
    vmem_limit = _fc1_vmem_limit_bytes(B, np.dtype(compute_dtype).itemsize)

    # ---- fc1: the only HBM-heavy op (streams 48 MiB f32 / 24 MiB bf16 of W1).
    h1 = pl.pallas_call(
        fc1_kernel,
        out_shape=jax.ShapeDtypeStruct((B, HIDDEN1), jnp.float32),
        grid_spec=pltpu.PrefetchScalarGridSpec(
            num_scalar_prefetch=0,
            grid=(HIDDEN1 // H1_BLOCK, n_k),
            in_specs=[
                pl.BlockSpec((B, TK), lambda j, k: (0, k)),           # x chunk
                pl.BlockSpec((TK, H1_BLOCK), lambda j, k: (k, j)),    # W1 chunk
                pl.BlockSpec((1, H1_BLOCK), lambda j, k: (0, j)),     # b1 cols
            ],
            out_specs=pl.BlockSpec((B, H1_BLOCK), lambda j, k: (0, j)),
            scratch_shapes=[pltpu.VMEM((B, H1_BLOCK), jnp.float32)],
        ),
        compiler_params=pltpu.CompilerParams(
            dimension_semantics=("parallel", "arbitrary"),
            vmem_limit_bytes=vmem_limit,
        ),
    )(x_s, w1, b1)

    # ---- fc2 / fc3 / log_softmax: tiny, one trivial kernel invocation.
    out = pl.pallas_call(
        epilogue_kernel,
        out_shape=jax.ShapeDtypeStruct((B, NUM_CLASSES), jnp.float32),
        grid_spec=pltpu.PrefetchScalarGridSpec(
            num_scalar_prefetch=0,
            grid=(1,),
            in_specs=[
                pl.BlockSpec((B, HIDDEN1), lambda i: (0, 0)),
                pl.BlockSpec((HIDDEN1, HIDDEN2), lambda i: (0, 0)),
                pl.BlockSpec((1, HIDDEN2), lambda i: (0, 0)),
                pl.BlockSpec((HIDDEN2, NUM_CLASSES), lambda i: (0, 0)),
                pl.BlockSpec((1, NUM_CLASSES), lambda i: (0, 0)),
            ],
            out_specs=pl.BlockSpec((B, NUM_CLASSES), lambda i: (0, 0)),
        ),
        compiler_params=pltpu.CompilerParams(
            dimension_semantics=("arbitrary",),
        ),
    )(h1, w2, b2, w3, b3)
    return out


def init_params(key):
    """Deterministic parameter init (PyTorch-Linear-like uniform fan-in)."""
    ks = jax.random.split(key, 6)

    def linear(kw, kb, fan_in, fan_out):
        bound = 1.0 / jnp.sqrt(fan_in)
        w = jax.random.uniform(kw, (fan_in, fan_out), jnp.float32, -bound, bound)
        b = jax.random.uniform(kb, (1, fan_out), jnp.float32, -bound, bound)
        return w, b

    w1, b1 = linear(ks[0], ks[1], FEAT_LEN, HIDDEN1)
    w2, b2 = linear(ks[2], ks[3], HIDDEN1, HIDDEN2)
    w3, b3 = linear(ks[4], ks[5], HIDDEN2, NUM_CLASSES)
    return (w1, b1, w2, b2, w3, b3)


def reference_forward(x, w1, b1, w2, b2, w3, b3):
    h1 = _leaky_relu(x @ w1 + b1)
    h2 = _leaky_relu(h1 @ w2 + b2)
    logits = h2 @ w3 + b3
    return jax.nn.log_softmax(logits, axis=1)


if __name__ == "__main__":
    key = jax.random.PRNGKey(0)
    k_x, k_p = jax.random.split(key)

    B = 8  # small demo batch; production serving should batch >=128 to amortize W1
    x = jax.random.normal(k_x, (B, FEAT_LEN), jnp.float32)
    params = init_params(k_p)
    ref = reference_forward(x, *params)

    # Exact f32 path (matches the PyTorch module's eval-mode numerics).
    params_f32 = prepare_params(params, jnp.float32)
    out_f32 = jax.block_until_ready(net_forward(x, *params_f32))
    assert out_f32.shape == (B, NUM_CLASSES)
    assert jnp.allclose(out_f32, ref, atol=1e-4, rtol=1e-4), "f32 mismatch vs reference"

    # Default serving path: W1 pre-cast to bf16 once, streamed at half the HBM
    # traffic; f32 accumulation.  Relaxed tolerance.
    params_bf16 = prepare_params(params, jnp.bfloat16)
    out_bf16 = jax.block_until_ready(net_forward(x, *params_bf16))
    assert out_bf16.shape == (B, NUM_CLASSES)
    assert jnp.allclose(out_bf16, ref, atol=3e-2, rtol=3e-2), "bf16 mismatch vs reference"

    print("KERNEL_OK")
</pallas_src>

<mosaic_0001>
module attributes {stable_mosaic.version = 11 : i64} {
  func.func @epilogue_kernel(%arg0: i32, %arg1: memref<8x1024xf32, #tpu.memory_space<vmem>>, %arg2: memref<1024x16xf32, #tpu.memory_space<vmem>>, %arg3: memref<1x16xf32, #tpu.memory_space<vmem>>, %arg4: memref<16x2xf32, #tpu.memory_space<vmem>>, %arg5: memref<1x2xf32, #tpu.memory_space<vmem>>, %arg6: memref<8x2xf32, #tpu.memory_space<vmem>>) attributes {dimension_semantics = [#tpu.dimension_semantics<arbitrary>], iteration_bounds = array<i64: 1>, scalar_prefetch = 0 : i64, scratch_operands = 0 : i64, tpu.core_type = #tpu.core_type<tc>, window_params = [{pipeline_mode = #tpu.pipeline_mode<synchronous>, transform_indices = @transform_0, window_bounds = array<i64: 8, 1024>}, {pipeline_mode = #tpu.pipeline_mode<synchronous>, transform_indices = @transform_1, window_bounds = array<i64: 1024, 16>}, {pipeline_mode = #tpu.pipeline_mode<synchronous>, transform_indices = @transform_2, window_bounds = array<i64: 1, 16>}, {pipeline_mode = #tpu.pipeline_mode<synchronous>, transform_indices = @transform_3, window_bounds = array<i64: 16, 2>}, {pipeline_mode = #tpu.pipeline_mode<synchronous>, transform_indices = @transform_4, window_bounds = array<i64: 1, 2>}, {pipeline_mode = #tpu.pipeline_mode<synchronous>, transform_indices = @transform_5, window_bounds = array<i64: 8, 2>}]} {
    %c0 = arith.constant 0 : index
    %c0_0 = arith.constant 0 : index
    %0 = vector.load %arg1[%c0, %c0_0] : memref<8x1024xf32, #tpu.memory_space<vmem>>, vector<8x1024xf32>
    %c0_1 = arith.constant 0 : index
    %c0_2 = arith.constant 0 : index
    %1 = vector.load %arg2[%c0_1, %c0_2] : memref<1024x16xf32, #tpu.memory_space<vmem>>, vector<1024x16xf32>
    %cst = arith.constant dense<0.000000e+00> : vector<8x16xf32>
    %2 = tpu.matmul %0, %1, %cst {dimension_numbers = #tpu.dot_dimension_numbers<[1], [0], [0], [1], [0, 0, 1, 1], [], []>} : vector<8x1024xf32>, vector<1024x16xf32>, vector<8x16xf32> -> vector<8x16xf32>
    %c0_3 = arith.constant 0 : index
    %c0_4 = arith.constant 0 : index
    %3 = vector.load %arg3[%c0_3, %c0_4] : memref<1x16xf32, #tpu.memory_space<vmem>>, vector<1x16xf32>
    %4 = vector.broadcast %3 : vector<1x16xf32> to vector<8x16xf32>
    %5 = arith.addf %2, %4 : vector<8x16xf32>
    %cst_5 = arith.constant 0.000000e+00 : f32
    %6 = vector.broadcast %cst_5 : f32 to vector<8x16xf32>
    %7 = arith.cmpf ogt, %5, %6 : vector<8x16xf32>
    %cst_6 = arith.constant 0.00999999977 : f32
    %8 = vector.broadcast %cst_6 : f32 to vector<8x16xf32>
    %9 = arith.mulf %8, %5 : vector<8x16xf32>
    %10 = arith.select %7, %5, %9 : vector<8x16xi1>, vector<8x16xf32>
    %c0_7 = arith.constant 0 : index
    %c0_8 = arith.constant 0 : index
    %11 = vector.load %arg4[%c0_7, %c0_8] : memref<16x2xf32, #tpu.memory_space<vmem>>, vector<16x2xf32>
    %cst_9 = arith.constant dense<0.000000e+00> : vector<8x2xf32>
    %12 = tpu.matmul %10, %11, %cst_9 {dimension_numbers = #tpu.dot_dimension_numbers<[1], [0], [0], [1], [0, 0, 1, 1], [], []>} : vector<8x16xf32>, vector<16x2xf32>, vector<8x2xf32> -> vector<8x2xf32>
    %c0_10 = arith.constant 0 : index
    %c0_11 = arith.constant 0 : index
    %13 = vector.load %arg5[%c0_10, %c0_11] : memref<1x2xf32, #tpu.memory_space<vmem>>, vector<1x2xf32>
    %14 = vector.broadcast %13 : vector<1x2xf32> to vector<8x2xf32>
    %15 = arith.addf %12, %14 : vector<8x2xf32>
    %cst_12 = arith.constant dense<0xFF800000> : vector<8xf32>
    %16 = vector.multi_reduction <maximumf>, %15, %cst_12 [1] : vector<8x2xf32> to vector<8xf32>
    %17 = vector.shape_cast %16 : vector<8xf32> to vector<8x1xf32>
    %18 = vector.broadcast %17 : vector<8x1xf32> to vector<8x2xf32>
    %19 = arith.subf %15, %18 : vector<8x2xf32>
    %20 = math.exp %19 : vector<8x2xf32>
    %cst_13 = arith.constant dense<0.000000e+00> : vector<8xf32>
    %21 = vector.multi_reduction <add>, %20, %cst_13 [1] : vector<8x2xf32> to vector<8xf32>
    %22 = vector.shape_cast %21 : vector<8xf32> to vector<8x1xf32>
    %23 = math.log %22 : vector<8x1xf32>
    %24 = vector.broadcast %23 : vector<8x1xf32> to vector<8x2xf32>
    %25 = arith.subf %19, %24 : vector<8x2xf32>
    %c0_14 = arith.constant 0 : index
    %c0_15 = arith.constant 0 : index
    %26 = vector.load %arg6[%c0_14, %c0_15] : memref<8x2xf32, #tpu.memory_space<vmem>>, vector<8x2xf32>
    tpu.vector_store %arg6[%c0_14, %c0_15], %25 {strides = array<i32>} : memref<8x2xf32, #tpu.memory_space<vmem>>, vector<8x2xf32>,
    return
  }
  func.func @transform_0(%arg0: i32) -> (i32, i32) {
    %c0_i32 = arith.constant 0 : i32
    %c0_i32_0 = arith.constant 0 : i32
    %c0_i32_1 = arith.constant 0 : i32
    return %c0_i32, %c0_i32_0 : i32, i32
  }
  func.func @transform_1(%arg0: i32) -> (i32, i32) {
    %c0_i32 = arith.constant 0 : i32
    %c0_i32_0 = arith.constant 0 : i32
    %c0_i32_1 = arith.constant 0 : i32
    return %c0_i32, %c0_i32_0 : i32, i32
  }
  func.func @transform_2(%arg0: i32) -> (i32, i32) {
    %c0_i32 = arith.constant 0 : i32
    %c0_i32_0 = arith.constant 0 : i32
    %c0_i32_1 = arith.constant 0 : i32
    return %c0_i32, %c0_i32_0 : i32, i32
  }
  func.func @transform_3(%arg0: i32) -> (i32, i32) {
    %c0_i32 = arith.constant 0 : i32
    %c0_i32_0 = arith.constant 0 : i32
    %c0_i32_1 = arith.constant 0 : i32
    return %c0_i32, %c0_i32_0 : i32, i32
  }
  func.func @transform_4(%arg0: i32) -> (i32, i32) {
    %c0_i32 = arith.constant 0 : i32
    %c0_i32_0 = arith.constant 0 : i32
    %c0_i32_1 = arith.constant 0 : i32
    return %c0_i32, %c0_i32_0 : i32, i32
  }
  func.func @transform_5(%arg0: i32) -> (i32, i32) {
    %c0_i32 = arith.constant 0 : i32
    %c0_i32_0 = arith.constant 0 : i32
    %c0_i32_1 = arith.constant 0 : i32
    return %c0_i32, %c0_i32_0 : i32, i32
  }
}

module attributes {stable_mosaic.version = 11 : i64} {
  func.func @fc1_kernel(%arg0: i32, %arg1: i32, %arg2: memref<8x4096xf32, #tpu.memory_space<vmem>>, %arg3: memref<4096x512xf32, #tpu.memory_space<vmem>>, %arg4: memref<1x512xf32, #tpu.memory_space<vmem>>, %arg5: memref<8x512xf32, #tpu.memory_space<vmem>>, %arg6: memref<8x512xf32, #tpu.memory_space<vmem>>) attributes {dimension_semantics = [#tpu.dimension_semantics<parallel>, #tpu.dimension_semantics<arbitrary>], iteration_bounds = array<i64: 2, 3>, scalar_prefetch = 0 : i64, scratch_operands = 1 : i64, tpu.core_type = #tpu.core_type<tc>, window_params = [{transform_indices = @transform_0, window_bounds = array<i64: 8, 4096>}, {transform_indices = @transform_1, window_bounds = array<i64: 4096, 512>}, {transform_indices = @transform_2, window_bounds = array<i64: 1, 512>}, {transform_indices = @transform_3, window_bounds = array<i64: 8, 512>}]} {
    %c0_i32 = arith.constant 0 : i32
    %0 = arith.cmpi eq, %arg1, %c0_i32 : i32
    %1 = arith.extui %0 : i1 to i32
    %c0_i32_0 = arith.constant 0 : i32
    %2 = arith.cmpi ne, %1, %c0_i32_0 : i32
    scf.if %2 {
      %cst_9 = arith.constant 0.000000e+00 : f32
      %12 = vector.broadcast %cst_9 : f32 to vector<8x512xf32>
      %c0_10 = arith.constant 0 : index
      %c0_11 = arith.constant 0 : index
      %13 = vector.load %arg6[%c0_10, %c0_11] : memref<8x512xf32, #tpu.memory_space<vmem>>, vector<8x512xf32>
      tpu.vector_store %arg6[%c0_10, %c0_11], %12 {strides = array<i32>} : memref<8x512xf32, #tpu.memory_space<vmem>>, vector<8x512xf32>,
    } else {
    }
    %c0 = arith.constant 0 : index
    %c0_1 = arith.constant 0 : index
    %3 = vector.load %arg6[%c0, %c0_1] : memref<8x512xf32, #tpu.memory_space<vmem>>, vector<8x512xf32>
    %c0_2 = arith.constant 0 : index
    %c0_3 = arith.constant 0 : index
    %4 = vector.load %arg2[%c0_2, %c0_3] : memref<8x4096xf32, #tpu.memory_space<vmem>>, vector<8x4096xf32>
    %c0_4 = arith.constant 0 : index
    %c0_5 = arith.constant 0 : index
    %5 = vector.load %arg3[%c0_4, %c0_5] : memref<4096x512xf32, #tpu.memory_space<vmem>>, vector<4096x512xf32>
    %cst = arith.constant dense<0.000000e+00> : vector<8x512xf32>
    %6 = tpu.matmul %4, %5, %cst {dimension_numbers = #tpu.dot_dimension_numbers<[1], [0], [0], [1], [0, 0, 1, 1], [], []>} : vector<8x4096xf32>, vector<4096x512xf32>, vector<8x512xf32> -> vector<8x512xf32>
    %7 = arith.addf %3, %6 : vector<8x512xf32>
    %c0_6 = arith.constant 0 : index
    %c0_7 = arith.constant 0 : index
    %8 = vector.load %arg6[%c0_6, %c0_7] : memref<8x512xf32, #tpu.memory_space<vmem>>, vector<8x512xf32>
    tpu.vector_store %arg6[%c0_6, %c0_7], %7 {strides = array<i32>} : memref<8x512xf32, #tpu.memory_space<vmem>>, vector<8x512xf32>,
    %c2_i32 = arith.constant 2 : i32
    %9 = arith.cmpi eq, %arg1, %c2_i32 : i32
    %10 = arith.extui %9 : i1 to i32
    %c0_i32_8 = arith.constant 0 : i32
    %11 = arith.cmpi ne, %10, %c0_i32_8 : i32
    scf.if %11 {
      %c0_9 = arith.constant 0 : index
      %c0_10 = arith.constant 0 : index
      %12 = vector.load %arg6[%c0_9, %c0_10] : memref<8x512xf32, #tpu.memory_space<vmem>>, vector<8x512xf32>
      %c0_11 = arith.constant 0 : index
      %c0_12 = arith.constant 0 : index
      %13 = vector.load %arg4[%c0_11, %c0_12] : memref<1x512xf32, #tpu.memory_space<vmem>>, vector<1x512xf32>
      %14 = vector.broadcast %13 : vector<1x512xf32> to vector<8x512xf32>
      %15 = arith.addf %12, %14 : vector<8x512xf32>
      %cst_13 = arith.constant 0.000000e+00 : f32
      %16 = vector.broadcast %cst_13 : f32 to vector<8x512xf32>
      %17 = arith.cmpf ogt, %15, %16 : vector<8x512xf32>
      %cst_14 = arith.constant 0.00999999977 : f32
      %18 = vector.broadcast %cst_14 : f32 to vector<8x512xf32>
      %19 = arith.mulf %18, %15 : vector<8x512xf32>
      %20 = arith.select %17, %15, %19 : vector<8x512xi1>, vector<8x512xf32>
      %c0_15 = arith.constant 0 : index
      %c0_16 = arith.constant 0 : index
      %21 = vector.load %arg5[%c0_15, %c0_16] : memref<8x512xf32, #tpu.memory_space<vmem>>, vector<8x512xf32>
      tpu.vector_store %arg5[%c0_15, %c0_16], %20 {strides = array<i32>} : memref<8x512xf32, #tpu.memory_space<vmem>>, vector<8x512xf32>,
    } else {
    }
    return
  }
  func.func @transform_0(%arg0: i32, %arg1: i32) -> (i32, i32) {
    %c0_i32 = arith.constant 0 : i32
    %c0_i32_0 = arith.constant 0 : i32
    return %c0_i32, %arg1 : i32, i32
  }
  func.func @transform_1(%arg0: i32, %arg1: i32) -> (i32, i32) {
    %c0_i32 = arith.constant 0 : i32
    return %arg1, %arg0 : i32, i32
  }
  func.func @transform_2(%arg0: i32, %arg1: i32) -> (i32, i32) {
    %c0_i32 = arith.constant 0 : i32
    %c0_i32_0 = arith.constant 0 : i32
    return %c0_i32, %arg0 : i32, i32
  }
  func.func @transform_3(%arg0: i32, %arg1: i32) -> (i32, i32) {
    %c0_i32 = arith.constant 0 : i32
    %c0_i32_0 = arith.constant 0 : i32
    return %c0_i32, %arg0 : i32, i32
  }
}

</mosaic_0001>

<llo_original>
// kernel: net_forward.3
$region0: #{net_forward.3}
  #allocation0 [shape = 'u32[]', space=smem, size = 0x4, offset = 0x4, fixed_abs, tag = 'smem constant byte address 0x4 - core index']
  #allocation1 [shape = 'u32[144,128]{1,0:T(1,128)}', space=vmem, size = 0x12000, scoped, tag = 'internal scratch']
  %s0 = inlined_call_operand.vmem [shape: f32[8,1024], index: 0, kind: input, shape index: {}]
  %s1 = inlined_call_operand.vmem [shape: f32[1024,16], index: 1, kind: input, shape index: {}]
  %s2 = inlined_call_operand.vmem [shape: f32[1,16], index: 2, kind: input, shape index: {}]
  %s3 = inlined_call_operand.vmem [shape: f32[16,2], index: 3, kind: input, shape index: {}]
  %s4 = inlined_call_operand.vmem [shape: f32[1,2], index: 4, kind: input, shape index: {}]
  %s5 = inlined_call_operand.vmem [shape: f32[8,2], index: 5, kind: output, shape index: {}]
  %s6 = sld [smem:[#allocation0]]
  $region30: #{net_forward.3} parent=0
    _
  %s8 = ssub.s32 1, %s6
  %s9 = scalar_select 0, %s8, %s6
  // Predicated region
  $region2: #{net_forward.3} parent=0 // pred_check
    _
  $region3: #{net_forward.3} parent=0 // pred_check_branch
    %11 = sbr.rel (0) target = $region5
  $region4: #{net_forward.3} parent=0 // pred_region
    _
  $region5: #{net_forward.3} parent=0 // pred_fallthru
    _
  // Predicated region
  $region6: #{net_forward.3} parent=0 // pred_check
    _
  $region7: #{net_forward.3} parent=0 // pred_check_branch
    %13 = sbr.rel (0) target = $region9
  $region8: #{net_forward.3} parent=0 // pred_region
    _
  $region9: #{net_forward.3} parent=0 // pred_fallthru
    _
  // Predicated region
  $region10: #{net_forward.3} parent=0 // pred_check
    _
  $region11: #{net_forward.3} parent=0 // pred_check_branch
    %15 = sbr.rel (0) target = $region13
  $region12: #{net_forward.3} parent=0 // pred_region
    _
  $region13: #{net_forward.3} parent=0 // pred_fallthru
    _
  // Predicated region
  $region14: #{net_forward.3} parent=0 // pred_check
    _
  $region15: #{net_forward.3} parent=0 // pred_check_branch
    %17 = sbr.rel (0) target = $region17
  $region16: #{net_forward.3} parent=0 // pred_region
    _
  $region17: #{net_forward.3} parent=0 // pred_fallthru
    _
  // Predicated region
  $region18: #{net_forward.3} parent=0 // pred_check
    _
  $region19: #{net_forward.3} parent=0 // pred_check_branch
    %19 = sbr.rel (0) target = $region21
  $region20: #{net_forward.3} parent=0 // pred_region
    _
  $region21: #{net_forward.3} parent=0 // pred_fallthru
    _
  %v20 = vld [vmem:[%s0] sm:$0xff]
  %v21 = vld [vmem:[%s0 + $0x8] sm:$0xff]
  %v22 = vld [vmem:[%s0 + $0x10] sm:$0xff]
  %v23 = vld [vmem:[%s0 + $0x18] sm:$0xff]
  %v24 = vld [vmem:[%s0 + $0x20] sm:$0xff]
  %v25 = vld [vmem:[%s0 + $0x28] sm:$0xff]
  %v26 = vld [vmem:[%s0 + $0x30] sm:$0xff]
  %v27 = vld [vmem:[%s0 + $0x38] sm:$0xff]
  %v28 = vld [vmem:[%s1] sm:$0xff]
  %v29 = vld [vmem:[%s1 + $0x8] sm:$0xff]
  %v30 = vld [vmem:[%s1 + $0x10] sm:$0xff]
  %v31 = vld [vmem:[%s1 + $0x18] sm:$0xff]
  %v32 = vld [vmem:[%s1 + $0x20] sm:$0xff]
  %v33 = vld [vmem:[%s1 + $0x28] sm:$0xff]
  %v34 = vld [vmem:[%s1 + $0x30] sm:$0xff]
  %v35 = vld [vmem:[%s1 + $0x38] sm:$0xff]
  %v36 = vld [vmem:[%s1 + $0x40] sm:$0xff]
  %v37 = vld [vmem:[%s1 + $0x48] sm:$0xff]
  %v38 = vld [vmem:[%s1 + $0x50] sm:$0xff]
  %v39 = vld [vmem:[%s1 + $0x58] sm:$0xff]
  %v40 = vld [vmem:[%s1 + $0x60] sm:$0xff]
  %v41 = vld [vmem:[%s1 + $0x68] sm:$0xff]
  %v42 = vld [vmem:[%s1 + $0x70] sm:$0xff]
  %v43 = vld [vmem:[%s1 + $0x78] sm:$0xff]
  %v44 = vld [vmem:[%s1 + $0x80] sm:$0xff]
  %v45 = vld [vmem:[%s1 + $0x88] sm:$0xff]
  %v46 = vld [vmem:[%s1 + $0x90] sm:$0xff]
  %v47 = vld [vmem:[%s1 + $0x98] sm:$0xff]
  %v48 = vld [vmem:[%s1 + $0xa0] sm:$0xff]
  %v49 = vld [vmem:[%s1 + $0xa8] sm:$0xff]
  %v50 = vld [vmem:[%s1 + $0xb0] sm:$0xff]
  %v51 = vld [vmem:[%s1 + $0xb8] sm:$0xff]
  %v52 = vld [vmem:[%s1 + $0xc0] sm:$0xff]
  %v53 = vld [vmem:[%s1 + $0xc8] sm:$0xff]
  %v54 = vld [vmem:[%s1 + $0xd0] sm:$0xff]
  %v55 = vld [vmem:[%s1 + $0xd8] sm:$0xff]
  %v56 = vld [vmem:[%s1 + $0xe0] sm:$0xff]
  %v57 = vld [vmem:[%s1 + $0xe8] sm:$0xff]
  %v58 = vld [vmem:[%s1 + $0xf0] sm:$0xff]
  %v59 = vld [vmem:[%s1 + $0xf8] sm:$0xff]
  %v60 = vld [vmem:[%s1 + $0x100] sm:$0xff]
  %v61 = vld [vmem:[%s1 + $0x108] sm:$0xff]
  %v62 = vld [vmem:[%s1 + $0x110] sm:$0xff]
  %v63 = vld [vmem:[%s1 + $0x118] sm:$0xff]
  %v64 = vld [vmem:[%s1 + $0x120] sm:$0xff]
  %v65 = vld [vmem:[%s1 + $0x128] sm:$0xff]
  %v66 = vld [vmem:[%s1 + $0x130] sm:$0xff]
  %v67 = vld [vmem:[%s1 + $0x138] sm:$0xff]
  %v68 = vld [vmem:[%s1 + $0x140] sm:$0xff]
  %v69 = vld [vmem:[%s1 + $0x148] sm:$0xff]
  %v70 = vld [vmem:[%s1 + $0x150] sm:$0xff]
  %v71 = vld [vmem:[%s1 + $0x158] sm:$0xff]
  %v72 = vld [vmem:[%s1 + $0x160] sm:$0xff]
  %v73 = vld [vmem:[%s1 + $0x168] sm:$0xff]
  %v74 = vld [vmem:[%s1 + $0x170] sm:$0xff]
  %v75 = vld [vmem:[%s1 + $0x178] sm:$0xff]
  %v76 = vld [vmem:[%s1 + $0x180] sm:$0xff]
  %v77 = vld [vmem:[%s1 + $0x188] sm:$0xff]
  %v78 = vld [vmem:[%s1 + $0x190] sm:$0xff]
  %v79 = vld [vmem:[%s1 + $0x198] sm:$0xff]
  %v80 = vld [vmem:[%s1 + $0x1a0] sm:$0xff]
  %v81 = vld [vmem:[%s1 + $0x1a8] sm:$0xff]
  %v82 = vld [vmem:[%s1 + $0x1b0] sm:$0xff]
  %v83 = vld [vmem:[%s1 + $0x1b8] sm:$0xff]
  %v84 = vld [vmem:[%s1 + $0x1c0] sm:$0xff]
  %v85 = vld [vmem:[%s1 + $0x1c8] sm:$0xff]
  %v86 = vld [vmem:[%s1 + $0x1d0] sm:$0xff]
  %v87 = vld [vmem:[%s1 + $0x1d8] sm:$0xff]
  %v88 = vld [vmem:[%s1 + $0x1e0] sm:$0xff]
  %v89 = vld [vmem:[%s1 + $0x1e8] sm:$0xff]
  %v90 = vld [vmem:[%s1 + $0x1f0] sm:$0xff]
  %v91 = vld [vmem:[%s1 + $0x1f8] sm:$0xff]
  %v92 = vld [vmem:[%s1 + $0x200] sm:$0xff]
  %v93 = vld [vmem:[%s1 + $0x208] sm:$0xff]
  %v94 = vld [vmem:[%s1 + $0x210] sm:$0xff]
  %v95 = vld [vmem:[%s1 + $0x218] sm:$0xff]
  %v96 = vld [vmem:[%s1 + $0x220] sm:$0xff]
  %v97 = vld [vmem:[%s1 + $0x228] sm:$0xff]
  %v98 = vld [vmem:[%s1 + $0x230] sm:$0xff]
  %v99 = vld [vmem:[%s1 + $0x238] sm:$0xff]
  %v100 = vld [vmem:[%s1 + $0x240] sm:$0xff]
  %v101 = vld [vmem:[%s1 + $0x248] sm:$0xff]
  %v102 = vld [vmem:[%s1 + $0x250] sm:$0xff]
  %v103 = vld [vmem:[%s1 + $0x258] sm:$0xff]
  %v104 = vld [vmem:[%s1 + $0x260] sm:$0xff]
  %v105 = vld [vmem:[%s1 + $0x268] sm:$0xff]
  %v106 = vld [vmem:[%s1 + $0x270] sm:$0xff]
  %v107 = vld [vmem:[%s1 + $0x278] sm:$0xff]
  %v108 = vld [vmem:[%s1 + $0x280] sm:$0xff]
  %v109 = vld [vmem:[%s1 + $0x288] sm:$0xff]
  %v110 = vld [vmem:[%s1 + $0x290] sm:$0xff]
  %v111 = vld [vmem:[%s1 + $0x298] sm:$0xff]
  %v112 = vld [vmem:[%s1 + $0x2a0] sm:$0xff]
  %v113 = vld [vmem:[%s1 + $0x2a8] sm:$0xff]
  %v114 = vld [vmem:[%s1 + $0x2b0] sm:$0xff]
  %v115 = vld [vmem:[%s1 + $0x2b8] sm:$0xff]
  %v116 = vld [vmem:[%s1 + $0x2c0] sm:$0xff]
  %v117 = vld [vmem:[%s1 + $0x2c8] sm:$0xff]
  %v118 = vld [vmem:[%s1 + $0x2d0] sm:$0xff]
  %v119 = vld [vmem:[%s1 + $0x2d8] sm:$0xff]
  %v120 = vld [vmem:[%s1 + $0x2e0] sm:$0xff]
  %v121 = vld [vmem:[%s1 + $0x2e8] sm:$0xff]
  %v122 = vld [vmem:[%s1 + $0x2f0] sm:$0xff]
  %v123 = vld [vmem:[%s1 + $0x2f8] sm:$0xff]
  %v124 = vld [vmem:[%s1 + $0x300] sm:$0xff]
  %v125 = vld [vmem:[%s1 + $0x308] sm:$0xff]
  %v126 = vld [vmem:[%s1 + $0x310] sm:$0xff]
  %v127 = vld [vmem:[%s1 + $0x318] sm:$0xff]
  %v128 = vld [vmem:[%s1 + $0x320] sm:$0xff]
  %v129 = vld [vmem:[%s1 + $0x328] sm:$0xff]
  %v130 = vld [vmem:[%s1 + $0x330] sm:$0xff]
  %v131 = vld [vmem:[%s1 + $0x338] sm:$0xff]
  %v132 = vld [vmem:[%s1 + $0x340] sm:$0xff]
  %v133 = vld [vmem:[%s1 + $0x348] sm:$0xff]
  %v134 = vld [vmem:[%s1 + $0x350] sm:$0xff]
  %v135 = vld [vmem:[%s1 + $0x358] sm:$0xff]
  %v136 = vld [vmem:[%s1 + $0x360] sm:$0xff]
  %v137 = vld [vmem:[%s1 + $0x368] sm:$0xff]
  %v138 = vld [vmem:[%s1 + $0x370] sm:$0xff]
  %v139 = vld [vmem:[%s1 + $0x378] sm:$0xff]
  %v140 = vld [vmem:[%s1 + $0x380] sm:$0xff]
  %v141 = vld [vmem:[%s1 + $0x388] sm:$0xff]
  %v142 = vld [vmem:[%s1 + $0x390] sm:$0xff]
  %v143 = vld [vmem:[%s1 + $0x398] sm:$0xff]
  %v144 = vld [vmem:[%s1 + $0x3a0] sm:$0xff]
  %v145 = vld [vmem:[%s1 + $0x3a8] sm:$0xff]
  %v146 = vld [vmem:[%s1 + $0x3b0] sm:$0xff]
  %v147 = vld [vmem:[%s1 + $0x3b8] sm:$0xff]
  %v148 = vld [vmem:[%s1 + $0x3c0] sm:$0xff]
  %v149 = vld [vmem:[%s1 + $0x3c8] sm:$0xff]
  %v150 = vld [vmem:[%s1 + $0x3d0] sm:$0xff]
  %v151 = vld [vmem:[%s1 + $0x3d8] sm:$0xff]
  %v152 = vld [vmem:[%s1 + $0x3e0] sm:$0xff]
  %v153 = vld [vmem:[%s1 + $0x3e8] sm:$0xff]
  %v154 = vld [vmem:[%s1 + $0x3f0] sm:$0xff]
  %v155 = vld [vmem:[%s1 + $0x3f8] sm:$0xff]
  %v156 = vld [vmem:[%s2] sm:$0x1]
  %v158 = vlaneseq
  %v159 = vshrl.u32 %v158, 7
  %v160 = vsub.s32 0, %v159
  %v161 = vrot.slane %v156, %v160
  %163 = vmatprep.subr.mxu0 0.0
  %164 = vmatpush1.msra.mxu0 %v28
  %165 = vmatprep.subr.mxu0 0.0
  %166 = vmatpush1.msra.mxu0 %v29
  %167 = vmatprep.subr.mxu0 0.0
  %168 = vmatpush1.msra.mxu0 %v30
  %169 = vmatprep.subr.mxu0 0.0
  %170 = vmatpush1.msra.mxu0 %v31
  %171 = vmatprep.subr.mxu0 0.0
  %172 = vmatpush1.msra.mxu0 %v32
  %173 = vmatprep.subr.mxu0 0.0
  %174 = vmatpush1.msra.mxu0 %v33
  %175 = vmatprep.subr.mxu0 0.0
  %176 = vmatpush1.msra.mxu0 %v34
  %177 = vmatprep.subr.mxu0 0.0
  %178 = vmatpush1.msra.mxu0 %v35
  %179 = vmatprep.subr.mxu0 0.0
  %180 = vmatpush1.msra.mxu0 %v36
  %181 = vmatprep.subr.mxu0 0.0
  %182 = vmatpush1.msra.mxu0 %v37
  %183 = vmatprep.subr.mxu0 0.0
  %184 = vmatpush1.msra.mxu0 %v38
  %185 = vmatprep.subr.mxu0 0.0
  %186 = vmatpush1.msra.mxu0 %v39
  %187 = vmatprep.subr.mxu0 0.0
  %188 = vmatpush1.msra.mxu0 %v40
  %189 = vmatprep.subr.mxu0 0.0
  %190 = vmatpush1.msra.mxu0 %v41
  %191 = vmatprep.subr.mxu0 0.0
  %192 = vmatpush1.msra.mxu0 %v42
  %193 = vmatprep.subr.mxu0 0.0
  %194 = vmatpush1.msra.mxu0 %v43
  %195 = vmatprep.subr.mxu0 0.0
  %196 = vmatpush1.msra.mxu0 %v44
  %197 = vmatprep.subr.mxu0 0.0
  %198 = vmatpush1.msra.mxu0 %v45
  %199 = vmatprep.subr.mxu0 0.0
  %200 = vmatpush1.msra.mxu0 %v46
  %201 = vmatprep.subr.mxu0 0.0
  %202 = vmatpush1.msra.mxu0 %v47
  %203 = vmatprep.subr.mxu0 0.0
  %204 = vmatpush1.msra.mxu0 %v48
  %205 = vmatprep.subr.mxu0 0.0
  %206 = vmatpush1.msra.mxu0 %v49
  %207 = vmatprep.subr.mxu0 0.0
  %208 = vmatpush1.msra.mxu0 %v50
  %209 = vmatprep.subr.mxu0 0.0
  %210 = vmatpush1.msra.mxu0 %v51
  %211 = vmatprep.subr.mxu0 0.0
  %212 = vmatpush1.msra.mxu0 %v52
  %213 = vmatprep.subr.mxu0 0.0
  %214 = vmatpush1.msra.mxu0 %v53
  %215 = vmatprep.subr.mxu0 0.0
  %216 = vmatpush1.msra.mxu0 %v54
  %217 = vmatprep.subr.mxu0 0.0
  %218 = vmatpush1.msra.mxu0 %v55
  %219 = vmatprep.subr.mxu0 0.0
  %220 = vmatpush1.msra.mxu0 %v56
  %221 = vmatprep.subr.mxu0 0.0
  %222 = vmatpush1.msra.mxu0 %v57
  %223 = vmatprep.subr.mxu0 0.0
  %224 = vmatpush1.msra.mxu0 %v58
  %225 = vmatprep.subr.mxu0 0.0
  %226 = vmatpush1.msra.mxu0 %v59
  %227 = vmatprep.mubr.f32.mxu0 %v21
  %228 = vmatmul.mubr.f32.gmra.mrb[0].mxu0 %v20
  %v229 = vpop.f32.mrb[0].mxu0
  %v230 = vadd.f32 %v161, %v229
  %v231 = vpop.f32.mrb[0].mxu0
  %232 = vdwg.mxu0
  %233 = vmatprep.subr.mxu0 0.0
  %234 = vmatpush1.msra.mxu0 %v60
  %235 = vmatprep.subr.mxu0 0.0
  %236 = vmatpush1.msra.mxu0 %v61
  %237 = vmatprep.subr.mxu0 0.0
  %238 = vmatpush1.msra.mxu0 %v62
  %239 = vmatprep.subr.mxu0 0.0
  %240 = vmatpush1.msra.mxu0 %v63
  %241 = vmatprep.subr.mxu0 0.0
  %242 = vmatpush1.msra.mxu0 %v64
  %243 = vmatprep.subr.mxu0 0.0
  %244 = vmatpush1.msra.mxu0 %v65
  %245 = vmatprep.subr.mxu0 0.0
  %246 = vmatpush1.msra.mxu0 %v66
  %247 = vmatprep.subr.mxu0 0.0
  %248 = vmatpush1.msra.mxu0 %v67
  %249 = vmatprep.subr.mxu0 0.0
  %250 = vmatpush1.msra.mxu0 %v68
  %251 = vmatprep.subr.mxu0 0.0
  %252 = vmatpush1.msra.mxu0 %v69
  %253 = vmatprep.subr.mxu0 0.0
  %254 = vmatpush1.msra.mxu0 %v70
  %255 = vmatprep.subr.mxu0 0.0
  %256 = vmatpush1.msra.mxu0 %v71
  %257 = vmatprep.subr.mxu0 0.0
  %258 = vmatpush1.msra.mxu0 %v72
  %259 = vmatprep.subr.mxu0 0.0
  %260 = vmatpush1.msra.mxu0 %v73
  %261 = vmatprep.subr.mxu0 0.0
  %262 = vmatpush1.msra.mxu0 %v74
  %263 = vmatprep.subr.mxu0 0.0
  %264 = vmatpush1.msra.mxu0 %v75
  %265 = vmatprep.subr.mxu0 0.0
  %266 = vmatpush1.msra.mxu0 %v76
  %267 = vmatprep.subr.mxu0 0.0
  %268 = vmatpush1.msra.mxu0 %v77
  %269 = vmatprep.subr.mxu0 0.0
  %270 = vmatpush1.msra.mxu0 %v78
  %271 = vmatprep.subr.mxu0 0.0
  %272 = vmatpush1.msra.mxu0 %v79
  %273 = vmatprep.subr.mxu0 0.0
  %274 = vmatpush1.msra.mxu0 %v80
  %275 = vmatprep.subr.mxu0 0.0
  %276 = vmatpush1.msra.mxu0 %v81
  %277 = vmatprep.subr.mxu0 0.0
  %278 = vmatpush1.msra.mxu0 %v82
  %279 = vmatprep.subr.mxu0 0.0
  %280 = vmatpush1.msra.mxu0 %v83
  %281 = vmatprep.subr.mxu0 0.0
  %282 = vmatpush1.msra.mxu0 %v84
  %283 = vmatprep.subr.mxu0 0.0
  %284 = vmatpush1.msra.mxu0 %v85
  %285 = vmatprep.subr.mxu0 0.0
  %286 = vmatpush1.msra.mxu0 %v86
  %287 = vmatprep.subr.mxu0 0.0
  %288 = vmatpush1.msra.mxu0 %v87
  %289 = vmatprep.subr.mxu0 0.0
  %290 = vmatpush1.msra.mxu0 %v88
  %291 = vmatprep.subr.mxu0 0.0
  %292 = vmatpush1.msra.mxu0 %v89
  %293 = vmatprep.subr.mxu0 0.0
  %294 = vmatpush1.msra.mxu0 %v90
  %295 = vmatprep.subr.mxu0 0.0
  %296 = vmatpush1.msra.mxu0 %v91
  %297 = vmatprep.mubr.f32.mxu0 %v23
  %298 = vmatmul.mubr.f32.gmra.mrb[0].mxu0 %v22
  %v299 = vpop.f32.mrb[0].mxu0
  %v300 = vadd.f32 %v230, %v299
  %v301 = vpop.f32.mrb[0].mxu0
  %302 = vdwg.mxu0
  %303 = vmatprep.subr.mxu0 0.0
  %304 = vmatpush1.msra.mxu0 %v92
  %305 = vmatprep.subr.mxu0 0.0
  %306 = vmatpush1.msra.mxu0 %v93
  %307 = vmatprep.subr.mxu0 0.0
  %308 = vmatpush1.msra.mxu0 %v94
  %309 = vmatprep.subr.mxu0 0.0
  %310 = vmatpush1.msra.mxu0 %v95
  %311 = vmatprep.subr.mxu0 0.0
  %312 = vmatpush1.msra.mxu0 %v96
  %313 = vmatprep.subr.mxu0 0.0
  %314 = vmatpush1.msra.mxu0 %v97
  %315 = vmatprep.subr.mxu0 0.0
  %316 = vmatpush1.msra.mxu0 %v98
  %317 = vmatprep.subr.mxu0 0.0
  %318 = vmatpush1.msra.mxu0 %v99
  %319 = vmatprep.subr.mxu0 0.0
  %320 = vmatpush1.msra.mxu0 %v100
  %321 = vmatprep.subr.mxu0 0.0
  %322 = vmatpush1.msra.mxu0 %v101
  %323 = vmatprep.subr.mxu0 0.0
  %324 = vmatpush1.msra.mxu0 %v102
  %325 = vmatprep.subr.mxu0 0.0
  %326 = vmatpush1.msra.mxu0 %v103
  %327 = vmatprep.subr.mxu0 0.0
  %328 = vmatpush1.msra.mxu0 %v104
  %329 = vmatprep.subr.mxu0 0.0
  %330 = vmatpush1.msra.mxu0 %v105
  %331 = vmatprep.subr.mxu0 0.0
  %332 = vmatpush1.msra.mxu0 %v106
  %333 = vmatprep.subr.mxu0 0.0
  %334 = vmatpush1.msra.mxu0 %v107
  %335 = vmatprep.subr.mxu0 0.0
  %336 = vmatpush1.msra.mxu0 %v108
  %337 = vmatprep.subr.mxu0 0.0
  %338 = vmatpush1.msra.mxu0 %v109
  %339 = vmatprep.subr.mxu0 0.0
  %340 = vmatpush1.msra.mxu0 %v110
  %341 = vmatprep.subr.mxu0 0.0
  %342 = vmatpush1.msra.mxu0 %v111
  %343 = vmatprep.subr.mxu0 0.0
  %344 = vmatpush1.msra.mxu0 %v112
  %345 = vmatprep.subr.mxu0 0.0
  %346 = vmatpush1.msra.mxu0 %v113
  %347 = vmatprep.subr.mxu0 0.0
  %348 = vmatpush1.msra.mxu0 %v114
  %349 = vmatprep.subr.mxu0 0.0
  %350 = vmatpush1.msra.mxu0 %v115
  %351 = vmatprep.subr.mxu0 0.0
  %352 = vmatpush1.msra.mxu0 %v116
  %353 = vmatprep.subr.mxu0 0.0
  %354 = vmatpush1.msra.mxu0 %v117
  %355 = vmatprep.subr.mxu0 0.0
  %356 = vmatpush1.msra.mxu0 %v118
  %357 = vmatprep.subr.mxu0 0.0
  %358 = vmatpush1.msra.mxu0 %v119
  %359 = vmatprep.subr.mxu0 0.0
  %360 = vmatpush1.msra.mxu0 %v120
  %361 = vmatprep.subr.mxu0 0.0
  %362 = vmatpush1.msra.mxu0 %v121
  %363 = vmatprep.subr.mxu0 0.0
  %364 = vmatpush1.msra.mxu0 %v122
  %365 = vmatprep.subr.mxu0 0.0
  %366 = vmatpush1.msra.mxu0 %v123
  %367 = vmatprep.mubr.f32.mxu0 %v25
  %368 = vmatmul.mubr.f32.gmra.mrb[0].mxu0 %v24
  %v369 = vpop.f32.mrb[0].mxu0
  %v370 = vadd.f32 %v300, %v369
  %v371 = vpop.f32.mrb[0].mxu0
  %372 = vdwg.mxu0
  %373 = vmatprep.subr.mxu0 0.0
  %374 = vmatpush1.msra.mxu0 %v124
  %375 = vmatprep.subr.mxu0 0.0
  %376 = vmatpush1.msra.mxu0 %v125
  %377 = vmatprep.subr.mxu0 0.0
  %378 = vmatpush1.msra.mxu0 %v126
  %379 = vmatprep.subr.mxu0 0.0
  %380 = vmatpush1.msra.mxu0 %v127
  %381 = vmatprep.subr.mxu0 0.0
  %382 = vmatpush1.msra.mxu0 %v128
  %383 = vmatprep.subr.mxu0 0.0
  %384 = vmatpush1.msra.mxu0 %v129
  %385 = vmatprep.subr.mxu0 0.0
  %386 = vmatpush1.msra.mxu0 %v130
  %387 = vmatprep.subr.mxu0 0.0
  %388 = vmatpush1.msra.mxu0 %v131
  %389 = vmatprep.subr.mxu0 0.0
  %390 = vmatpush1.msra.mxu0 %v132
  %391 = vmatprep.subr.mxu0 0.0
  %392 = vmatpush1.msra.mxu0 %v133
  %393 = vmatprep.subr.mxu0 0.0
  %394 = vmatpush1.msra.mxu0 %v134
  %395 = vmatprep.subr.mxu0 0.0
  %396 = vmatpush1.msra.mxu0 %v135
  %397 = vmatprep.subr.mxu0 0.0
  %398 = vmatpush1.msra.mxu0 %v136
  %399 = vmatprep.subr.mxu0 0.0
  %400 = vmatpush1.msra.mxu0 %v137
  %401 = vmatprep.subr.mxu0 0.0
  %402 = vmatpush1.msra.mxu0 %v138
  %403 = vmatprep.subr.mxu0 0.0
  %404 = vmatpush1.msra.mxu0 %v139
  %405 = vmatprep.subr.mxu0 0.0
  %406 = vmatpush1.msra.mxu0 %v140
  %407 = vmatprep.subr.mxu0 0.0
  %408 = vmatpush1.msra.mxu0 %v141
  %409 = vmatprep.subr.mxu0 0.0
  %410 = vmatpush1.msra.mxu0 %v142
  %411 = vmatprep.subr.mxu0 0.0
  %412 = vmatpush1.msra.mxu0 %v143
  %413 = vmatprep.subr.mxu0 0.0
  %414 = vmatpush1.msra.mxu0 %v144
  %415 = vmatprep.subr.mxu0 0.0
  %416 = vmatpush1.msra.mxu0 %v145
  %417 = vmatprep.subr.mxu0 0.0
  %418 = vmatpush1.msra.mxu0 %v146
  %419 = vmatprep.subr.mxu0 0.0
  %420 = vmatpush1.msra.mxu0 %v147
  %421 = vmatprep.subr.mxu0 0.0
  %422 = vmatpush1.msra.mxu0 %v148
  %423 = vmatprep.subr.mxu0 0.0
  %424 = vmatpush1.msra.mxu0 %v149
  %425 = vmatprep.subr.mxu0 0.0
  %426 = vmatpush1.msra.mxu0 %v150
  %427 = vmatprep.subr.mxu0 0.0
  %428 = vmatpush1.msra.mxu0 %v151
  %429 = vmatprep.subr.mxu0 0.0
  %430 = vmatpush1.msra.mxu0 %v152
  %431 = vmatprep.subr.mxu0 0.0
  %432 = vmatpush1.msra.mxu0 %v153
  %433 = vmatprep.subr.mxu0 0.0
  %434 = vmatpush1.msra.mxu0 %v154
  %435 = vmatprep.subr.mxu0 0.0
  %436 = vmatpush1.msra.mxu0 %v155
  %437 = vmatprep.mubr.f32.mxu0 %v27
  %438 = vmatmul.mubr.f32.gmra.mrb[0].mxu0 %v26
  %v439 = vpop.f32.mrb[0].mxu0
  %v440 = vadd.f32 %v370, %v439
  %v441 = vpop.f32.mrb[0].mxu0
  %442 = vdwg.mxu0
  %vm443 = vcmp.gt.f32.partialorder %v440, 0.0
  %v444 = vmul.f32 %v440, 0.01
  %v445 = vsel %vm443, %v440, %v444
  %v446 = vld [vmem:[%s3] sm:$0xff]
  %v447 = vld [vmem:[%s3 + $0x8] sm:$0xff]
  %v448 = vld [vmem:[%s4] sm:$0x1]
  %v450 = vlaneseq
  %v451 = vshrl.u32 %v450, 7
  %v452 = vsub.s32 0, %v451
  %v453 = vrot.slane %v448, %v452
  %vm455 = vcmask 130048
  %v457 = vsel %vm455, %v445, 0
  %459 = vmatprep.subr.mxu0 0.0
  %460 = vmatpush1.msra.mxu0 %v446
  %461 = vmatprep.subr.mxu0 0.0
  %462 = vmatpush1.msra.mxu0 %v447
  %463 = vmatprep.subr.mxu0 0.0
  %464 = vmatpush1.msra.mxu0 0.0
  %465 = vmatprep.subr.mxu0 0.0
  %466 = vmatpush1.msra.mxu0 0.0
  %467 = vmatprep.subr.mxu0 0.0
  %468 = vmatpush1.msra.mxu0 0.0
  %469 = vmatprep.subr.mxu0 0.0
  %470 = vmatpush1.msra.mxu0 0.0
  %471 = vmatprep.subr.mxu0 0.0
  %472 = vmatpush1.msra.mxu0 0.0
  %473 = vmatprep.subr.mxu0 0.0
  %474 = vmatpush1.msra.mxu0 0.0
  %475 = vmatprep.subr.mxu0 0.0
  %476 = vmatpush1.msra.mxu0 0.0
  %477 = vmatprep.subr.mxu0 0.0
  %478 = vmatpush1.msra.mxu0 0.0
  %479 = vmatprep.subr.mxu0 0.0
  %480 = vmatpush1.msra.mxu0 0.0
  %481 = vmatprep.subr.mxu0 0.0
  %482 = vmatpush1.msra.mxu0 0.0
  %483 = vmatprep.subr.mxu0 0.0
  %484 = vmatpush1.msra.mxu0 0.0
  %485 = vmatprep.subr.mxu0 0.0
  %486 = vmatpush1.msra.mxu0 0.0
  %487 = vmatprep.subr.mxu0 0.0
  %488 = vmatpush1.msra.mxu0 0.0
  %489 = vmatprep.subr.mxu0 0.0
  %490 = vmatpush1.msra.mxu0 0.0
  %491 = vmatprep.subr.mxu0 0.0
  %492 = vmatpush1.msra.mxu0 0.0
  %493 = vmatprep.subr.mxu0 0.0
  %494 = vmatpush1.msra.mxu0 0.0
  %495 = vmatprep.subr.mxu0 0.0
  %496 = vmatpush1.msra.mxu0 0.0
  %497 = vmatprep.subr.mxu0 0.0
  %498 = vmatpush1.msra.mxu0 0.0
  %499 = vmatprep.subr.mxu0 0.0
  %500 = vmatpush1.msra.mxu0 0.0
  %501 = vmatprep.subr.mxu0 0.0
  %502 = vmatpush1.msra.mxu0 0.0
  %503 = vmatprep.subr.mxu0 0.0
  %504 = vmatpush1.msra.mxu0 0.0
  %505 = vmatprep.subr.mxu0 0.0
  %506 = vmatpush1.msra.mxu0 0.0
  %507 = vmatprep.subr.mxu0 0.0
  %508 = vmatpush1.msra.mxu0 0.0
  %509 = vmatprep.subr.mxu0 0.0
  %510 = vmatpush1.msra.mxu0 0.0
  %511 = vmatprep.subr.mxu0 0.0
  %512 = vmatpush1.msra.mxu0 0.0
  %513 = vmatprep.subr.mxu0 0.0
  %514 = vmatpush1.msra.mxu0 0.0
  %515 = vmatprep.subr.mxu0 0.0
  %516 = vmatpush1.msra.mxu0 0.0
  %517 = vmatprep.subr.mxu0 0.0
  %518 = vmatpush1.msra.mxu0 0.0
  %519 = vmatprep.subr.mxu0 0.0
  %520 = vmatpush1.msra.mxu0 0.0
  %521 = vmatprep.subr.mxu0 0.0
  %522 = vmatpush1.msra.mxu0 0.0
  %523 = vmatprep.mubr.f32.mxu0 0.0
  %524 = vmatmul.mubr.f32.gmra.mrb[0].mxu0 %v457
  %v525 = vpop.f32.mrb[0].mxu0
  %v526 = vadd.f32 %v453, %v525
  %v527 = vpop.f32.mrb[0].mxu0
  %528 = vdwg.mxu0
  %vm529 = vcmask 15360
  %v530 = vsel %vm529, %v526, -inf
  %531 = vmax.xlane.f32.xlu0 %v530
  %v532 = vpop.xlane.xlu0 %531
  %v533 = vsub.f32 %v526, %v532
  %v534 = vmul.f32 %v533, 1.442695
  %v535 = vpow.pop %v534
  %v536 = vsel %vm529, %v535, 0.0
  %537 = vadd.xlane.f32.xlu0 %v536
  %v538 = vpop.xlane.xlu0 %537
  %v539 = vlog2.pop %v538
  %v540 = vmul.f32 %v539, 0.6931472
  %v541 = vsub.f32 %v533, %v540
  %542 = vst.msk [vmem:[%s5] sm:$0xff] %vm529, %v541
  // Predicated region
  $region22: #{net_forward.3} parent=0 // pred_check
    _
  $region23: #{net_forward.3} parent=0 // pred_check_branch
    %544 = sbr.rel (0) target = $region25
  $region24: #{net_forward.3} parent=0 // pred_region
    _
  $region25: #{net_forward.3} parent=0 // pred_fallthru
    _
  // Predicated region
  $region26: #{net_forward.3} parent=0 // pred_check
    _
  $region27: #{net_forward.3} parent=0 // pred_check_branch
    %546 = sbr.rel (0) target = $region29
  $region28: #{net_forward.3} parent=0 // pred_region
    _
  $region29: #{net_forward.3} parent=0 // pred_fallthru
    _

// kernel: net_forward.2
$region0: #{net_forward.2}
  #allocation0 [shape = 'u32[]', space=smem, size = 0x4, offset = 0x4, fixed_abs, tag = 'smem constant byte address 0x4 - core index']
  #allocation1 [shape = 'u32[144,128]{1,0:T(1,128)}', space=vmem, size = 0x12000, scoped, tag = 'internal scratch']
  #allocation2 [shape = 'f32[8,512]{1,0:T(8,128)}', space=vmem, size = 0x4000, scoped, tag = 'scratch operand']
  %s0 = inlined_call_operand.hbm [shape: f32[8,12288], index: 0, kind: input, shape index: {}]
  %s1 = inlined_call_operand.hbm [shape: f32[12288,1024], index: 1, kind: input, shape index: {}]
  %s2 = inlined_call_operand.hbm [shape: f32[1,1024], index: 2, kind: input, shape index: {}]
  %s3 = inlined_call_operand.vmem [shape: f32[8,1024], index: 3, kind: output, shape index: {}]
  %s4 = sld [smem:[#allocation0]]
  $region65: #{net_forward.2} parent=0
    _
  %s6 = ssub.s32 1, %s4
  %s7 = scalar_select 0, %s6, %s4
  $region1: #{net_forward.2} parent=0
    #allocation3 [shape = 'u8[262144]{0}', space=vmem, size = 0x40000, scoped, tag = 'input window, operand 0']
    #allocation4 [shape = 's32[2]{0}', space=sflag, size = 0x8, scoped, tag = 'scoped memory for net_forward.2']
    #allocation5 [shape = 'u8[16777216]{0}', space=vmem, size = 0x1000000, scoped, tag = 'input window, operand 1']
    #allocation6 [shape = 's32[2]{0}', space=sflag, size = 0x8, scoped, tag = 'scoped memory for net_forward.2']
    #allocation7 [shape = 'u8[4096]{0}', space=vmem, size = 0x1000, scoped, tag = 'input window, operand 2']
    %8 = vsyncpa [#allocation4], 0
    %s9 = scalar_lea.sflag [#allocation4], 1
    %10 = vsyncpa %s9, 0
    %11 = vsyncpa [#allocation6], 0
    %s12 = scalar_lea.sflag [#allocation6], 1
    %13 = vsyncpa %s12, 0
    loop: start=0, step=1, limit=8
    $region2: #{net_forward.2} parent=1 // loop_pre_header
      _
    $region3: #{net_forward.2} parent=1 // loop_header
      %s15 = sphi 0, %s19
      %p16 = scmp.ge.s32.totalorder %s15, 8
      %s22 = sphi 0, %s34
      %s23 = sphi 0, %s30
      %s24 = sphi 0, %s22
      %s25 = sphi 0, %s23
      %s26 = sphi 0, %s24
      %s27 = sphi 0, %s25
      %s37 = sphi 0, %s39
      %s40 = sphi 0, %s37
      %s41 = sphi 0, %s40
      %s57 = sphi 0, %s41
      %s65 = sphi 0, %s67
      %s68 = sphi 0, %s65
      %s69 = sphi 0, %s68
      %s85 = sphi 0, %s69
      %s91 = sphi 0, %s93
      %s94 = sphi 0, %s91
      %s95 = sphi 0, %s94
      %s111 = sphi 0, %s95
      %s117 = sphi 0, %s119
      %s120 = sphi 0, %s117
      %s121 = sphi 0, %s120
      %s137 = sphi 0, %s121
    $region4: #{net_forward.2} parent=1 // loop_header_branch
      %18 = sbr.rel (%p16) target = $region8
    $region5: #{net_forward.2} parent=1 // loop_body
      %s20 = ssub.s32 %s15, 1
      %s21 = ssub.s32 %s15, 2
      %s28 = sadd.s32 1, %s23
      %p29 = scmp.ge.s32.totalorder %s28, 3
      %s30 = scalar_select %p29, 0, %s28
      %s31 = sadd.s32 1, %s22
      %s32 = scalar_select %p29, %s31, %s22
      %p33 = scmp.ge.s32.totalorder %s32, 2
      %s34 = scalar_select %p33, 0, %s32
      %s35 = ssub.s32 %s23, %s30
      %p36 = scmp.eq.s32.totalorder %s35, 0
      %s38 = sadd.s32 %s37, 1
      %s39 = scalar_select %p36, %s37, %s38
      %p42 = pneg %p36
      %p43 = scmp.eq.s32.totalorder %s15, 5
      %p44 = por %p42, %p43
      %p45 = scmp.ne.s32.totalorder %s37, %s40
      %p46 = scmp.eq.s32.totalorder %s15, 0
      %p47 = por %p45, %p46
      %p48 = scmp.ne.s32.totalorder %s37, %s40
      %p49 = scmp.eq.s32.totalorder %s20, 5
      %p50 = por %p48, %p49
      %p51 = scmp.ne.s32.totalorder %s40, %s41
      %p52 = scmp.eq.s32.totalorder %s20, 0
      %p53 = por %p51, %p52
      %p54 = scmp.ne.s32.totalorder %s40, %s41
      %p55 = scmp.eq.s32.totalorder %s21, 5
      %p56 = por %p54, %p55
      %p58 = scmp.ne.s32.totalorder %s41, %s57
      %p59 = scmp.eq.s32.totalorder %s21, 0
      %p60 = por %p58, %p59
      %s61 = ssub.s32 %s23, %s30
      %s62 = ssub.s32 %s22, %s34
      %s63 = sor.u32 %s61, %s62
      %p64 = scmp.eq.s32.totalorder %s63, 0
      %s66 = sadd.s32 %s65, 1
      %s67 = scalar_select %p64, %s65, %s66
      %p70 = pneg %p64
      %p71 = scmp.eq.s32.totalorder %s15, 5
      %p72 = por %p70, %p71
      %p73 = scmp.ne.s32.totalorder %s65, %s68
      %p74 = scmp.eq.s32.totalorder %s15, 0
      %p75 = por %p73, %p74
      %p76 = scmp.ne.s32.totalorder %s65, %s68
      %p77 = scmp.eq.s32.totalorder %s20, 5
      %p78 = por %p76, %p77
      %p79 = scmp.ne.s32.totalorder %s68, %s69
      %p80 = scmp.eq.s32.totalorder %s20, 0
      %p81 = por %p79, %p80
      %p82 = scmp.ne.s32.totalorder %s68, %s69
      %p83 = scmp.eq.s32.totalorder %s21, 5
      %p84 = por %p82, %p83
      %p86 = scmp.ne.s32.totalorder %s69, %s85
      %p87 = scmp.eq.s32.totalorder %s21, 0
      %p88 = por %p86, %p87
      %s89 = ssub.s32 %s22, %s34
      %p90 = scmp.eq.s32.totalorder %s89, 0
      %s92 = sadd.s32 %s91, 1
      %s93 = scalar_select %p90, %s91, %s92
      %p96 = pneg %p90
      %p97 = scmp.eq.s32.totalorder %s15, 5
      %p98 = por %p96, %p97
      %p99 = scmp.ne.s32.totalorder %s91, %s94
      %p100 = scmp.eq.s32.totalorder %s15, 0
      %p101 = por %p99, %p100
      %p102 = scmp.ne.s32.totalorder %s91, %s94
      %p103 = scmp.eq.s32.totalorder %s20, 5
      %p104 = por %p102, %p103
      %p105 = scmp.ne.s32.totalorder %s94, %s95
      %p106 = scmp.eq.s32.totalorder %s20, 0
      %p107 = por %p105, %p106
      %p108 = scmp.ne.s32.totalorder %s94, %s95
      %p109 = scmp.eq.s32.totalorder %s21, 5
      %p110 = por %p108, %p109
      %p112 = scmp.ne.s32.totalorder %s95, %s111
      %p113 = scmp.eq.s32.totalorder %s21, 0
      %p114 = por %p112, %p113
      %s115 = ssub.s32 %s22, %s34
      %p116 = scmp.eq.s32.totalorder %s115, 0
      %s118 = sadd.s32 %s117, 1
      %s119 = scalar_select %p116, %s117, %s118
      %p122 = pneg %p116
      %p123 = scmp.eq.s32.totalorder %s15, 5
      %p124 = por %p122, %p123
      %p125 = scmp.ne.s32.totalorder %s117, %s120
      %p126 = scmp.eq.s32.totalorder %s15, 0
      %p127 = por %p125, %p126
      %p128 = scmp.ne.s32.totalorder %s117, %s120
      %p129 = scmp.eq.s32.totalorder %s20, 5
      %p130 = por %p128, %p129
      %p131 = scmp.ne.s32.totalorder %s120, %s121
      %p132 = scmp.eq.s32.totalorder %s20, 0
      %p133 = por %p131, %p132
      %p134 = scmp.ne.s32.totalorder %s120, %s121
      %p135 = scmp.eq.s32.totalorder %s21, 5
      %p136 = por %p134, %p135
      %p138 = scmp.ne.s32.totalorder %s121, %s137
      %p139 = scmp.eq.s32.totalorder %s21, 0
      %p140 = por %p138, %p139
      %p141 = scmp.le.s32.totalorder 1, %s15
      %p142 = scmp.lt.s32.totalorder %s15, 7
      %p143 = pnand %p141, %p142
      %p144 = pneg %p143
      // Predicated region
      $region9: #{net_forward.2} parent=5 // pred_check
        _
      $region10: #{net_forward.2} parent=5 // pred_check_branch
        %146 = sbr.rel (%p143) target = $region12
      $region11: #{net_forward.2} parent=5 // pred_region
        %s147 = ssub.s32 %s15, 1
      $region12: #{net_forward.2} parent=5 // pred_fallthru
        _
      %p148 = scmp.lt.s32.totalorder %s15, 6
      // Predicated region
      $region13: #{net_forward.2} parent=5 // pred_check
        %p149 = pneg %p148
      $region14: #{net_forward.2} parent=5 // pred_check_branch
        %151 = sbr.rel (%p149) target = $region16
      $region15: #{net_forward.2} parent=5 // pred_region
        // Predicated region
        $region17: #{net_forward.2} parent=15 // pred_check
          %p152 = pneg %p47
        $region18: #{net_forward.2} parent=15 // pred_check_branch
          %154 = sbr.rel (%p152) target = $region20
        $region19: #{net_forward.2} parent=15 // pred_region
          %s155 = sand.u32 %s37, 1
          %s156 = scalar_lea.sflag [#allocation4], %s155
          %s157 = sand.u32 %s37, 1
          %s158 = smul.addr %s157, 256
          %s159 = scalar_lea.vmem [#allocation3], %s158
          %s160 = smul.u32 32, %s23
          %s162 = ssub.s32 4096, 4096
          %163 = vsyncadd %s156, %s162
          %s164 = smul.addr %s160, 128
          %s165 = scalar_lea.hbm %s0, %s164
          %s167 = sshll.u32 %s159, 4
          %s168 = int_to_ptr.vmem [resolvable:$true] %s167
          %170 = dma.hbm_to_vmem [thread:$0]  %s165, 4096, %s168, %s156
        $region20: #{net_forward.2} parent=15 // pred_fallthru
          _
        // Predicated region
        $region21: #{net_forward.2} parent=15 // pred_check
          %p171 = pneg %p75
        $region22: #{net_forward.2} parent=15 // pred_check_branch
          %173 = sbr.rel (%p171) target = $region24
        $region23: #{net_forward.2} parent=15 // pred_region
          %s174 = sand.u32 %s15, 1
          %s175 = scalar_lea.sflag [#allocation6], %s174
          %s176 = sand.u32 %s65, 1
          %s177 = smul.addr %s176, 16384
          %s178 = scalar_lea.vmem [#allocation5], %s177
          %s179 = smul.u32 512, %s23
          %s180 = smul.u32 4, %s22
          %s182 = ssub.s32 262144, 262144
          %183 = vsyncadd %s175, %s182
          %s184 = smul.addr %s179, 8
          %s185 = sadd.s32 %s180, %s184
          %s186 = smul.addr %s185, 128
          %s187 = scalar_lea.hbm %s1, %s186
          %s188 = sshll.u32 %s178, 4
          %s189 = int_to_ptr.vmem [resolvable:$true] %s188
          %194 = dma.hbm_to_vmem [thread:$0]  %s187, 262144, %s189, %s175, 1024, 512, 32
        $region24: #{net_forward.2} parent=15 // pred_fallthru
          _
        // Predicated region
        $region25: #{net_forward.2} parent=15 // pred_check
          %p195 = pneg %p101
        $region26: #{net_forward.2} parent=15 // pred_check_branch
          %197 = sbr.rel (%p195) target = $region28
        $region27: #{net_forward.2} parent=15 // pred_region
          %s198 = sand.u32 %s15, 1
          %s199 = scalar_lea.sflag [#allocation6], %s198
          %s200 = sand.u32 %s91, 1
          %s201 = smul.addr %s200, 4
          %s202 = scalar_lea.vmem [#allocation7], %s201
          %s203 = smul.u32 4, %s22
          %s205 = ssub.s32 64, 64
          %206 = vsyncadd %s199, %s205
          %s207 = smul.addr %s203, 16
          %s208 = scalar_lea.hbm %s2, %s207
          %s210 = sshll.u32 %s202, 4
          %s211 = int_to_ptr.vmem [resolvable:$true] %s210
          %213 = dma.hbm_to_vmem [thread:$0]  %s208, 64, %s211, %s199
        $region28: #{net_forward.2} parent=15 // pred_fallthru
          _
      $region16: #{net_forward.2} parent=5 // pred_fallthru
        _
      %p214 = scmp.le.s32.totalorder 1, %s15
      %p215 = scmp.lt.s32.totalorder %s15, 7
      %p216 = pnand %p214, %p215
      %p217 = pneg %p216
      // Predicated region
      $region29: #{net_forward.2} parent=5 // pred_check
        _
      $region30: #{net_forward.2} parent=5 // pred_check_branch
        %219 = sbr.rel (%p216) target = $region32
      $region31: #{net_forward.2} parent=5 // pred_region
        %s220 = ssub.s32 %s15, 1
        %s221 = sand.u32 %s40, 1
        %s222 = scalar_lea.sflag [#allocation4], %s221
        %s223 = sand.u32 %s40, 1
        %s224 = smul.addr %s223, 256
        %s225 = scalar_lea.vmem [#allocation3], %s224
        // Predicated region
        $region33: #{net_forward.2} parent=31 // pred_check
          %p226 = pneg %p53
        $region34: #{net_forward.2} parent=31 // pred_check_branch
          %228 = sbr.rel (%p226) target = $region36
        $region35: #{net_forward.2} parent=31 // pred_region
          %229 = dma.done %s222, 4096
        $region36: #{net_forward.2} parent=31 // pred_fallthru
          _
        %s230 = sand.u32 %s20, 1
        %s231 = scalar_lea.sflag [#allocation6], %s230
        %s232 = sand.u32 %s68, 1
        %s233 = smul.addr %s232, 16384
        %s234 = scalar_lea.vmem [#allocation5], %s233
        // Predicated region
        $region37: #{net_forward.2} parent=31 // pred_check
          %p235 = pneg %p81
        $region38: #{net_forward.2} parent=31 // pred_check_branch
          %237 = sbr.rel (%p235) target = $region40
        $region39: #{net_forward.2} parent=31 // pred_region
          %238 = dma.done %s231, 262144
        $region40: #{net_forward.2} parent=31 // pred_fallthru
          _
        %s239 = sand.u32 %s20, 1
        %s240 = scalar_lea.sflag [#allocation6], %s239
        %s241 = sand.u32 %s94, 1
        %s242 = smul.addr %s241, 4
        %s243 = scalar_lea.vmem [#allocation7], %s242
        // Predicated region
        $region41: #{net_forward.2} parent=31 // pred_check
          %p244 = pneg %p107
        $region42: #{net_forward.2} parent=31 // pred_check_branch
          %246 = sbr.rel (%p244) target = $region44
        $region43: #{net_forward.2} parent=31 // pred_region
          %247 = dma.done %s240, 64
        $region44: #{net_forward.2} parent=31 // pred_fallthru
          _
        %s248 = sand.u32 %s40, 1
        %s249 = scalar_lea.sflag [#allocation4], %s248
        %s250 = sand.u32 %s40, 1
        %s251 = smul.addr %s250, 256
        %s252 = scalar_lea.vmem [#allocation3], %s251
        %p253 = pneg %p53
        %p254 = pneg %p50
        %s255 = sand.u32 %s20, 1
        %s256 = scalar_lea.sflag [#allocation6], %s255
        %s257 = sand.u32 %s68, 1
        %s258 = smul.addr %s257, 16384
        %s259 = scalar_lea.vmem [#allocation5], %s258
        %p260 = pneg %p81
        %p261 = pneg %p78
        %s262 = sand.u32 %s20, 1
        %s263 = scalar_lea.sflag [#allocation6], %s262
        %s264 = sand.u32 %s94, 1
        %s265 = smul.addr %s264, 4
        %s266 = scalar_lea.vmem [#allocation7], %s265
        %p267 = pneg %p107
        %p268 = pneg %p104
        %p269 = pneg %p133
        %p270 = pneg %p130
        %s271 = smul.u32 4, %s24
        %p272 = scmp.lt.s32.totalorder %s271, 7
        %s273 = scalar_select %p272, %s271, 7
        %s274 = smul.addr %s273, 8
        %s275 = scalar_lea.vmem %s3, %s274
        %s276 = smul.u32 32, %s25
        %s277 = smul.u32 512, %s25
        %s278 = smul.u32 4, %s24
        %s279 = smul.u32 4, %s24
        %s280 = smul.u32 4, %s24
        %p281 = scmp.lt.s32.totalorder %s280, 7
        %s282 = scalar_select %p281, %s280, 7
        %s283 = smul.addr %s282, 8
        %s284 = scalar_lea.vmem %s3, %s283
        %s285 = smul.u32 4, %s24
        %p286 = scmp.eq.s32.totalorder %s25, 0
        // Predicated region
        $region45: #{net_forward.2} parent=31 // pred_check
          %p287 = pneg %p286
        $region46: #{net_forward.2} parent=31 // pred_check_branch
          %289 = sbr.rel (%p287) target = $region48
        $region47: #{net_forward.2} parent=31 // pred_region
          %290 = vst [vmem:[#allocation2] sm:$0xff] 0.0
          %291 = vst [vmem:[#allocation2 + $0x8] sm:$0xff] 0.0
          %292 = vst [vmem:[#allocation2 + $0x10] sm:$0xff] 0.0
          %293 = vst [vmem:[#allocation2 + $0x18] sm:$0xff] 0.0
        $region48: #{net_forward.2} parent=31 // pred_fallthru
          _
        %v294 = vld [vmem:[#allocation2] sm:$0xff]
        %v295 = vld [vmem:[#allocation2 + $0x8] sm:$0xff]
        %v296 = vld [vmem:[#allocation2 + $0x10] sm:$0xff]
        %v297 = vld [vmem:[#allocation2 + $0x18] sm:$0xff]
        %v298 = vld [vmem:[%s225] sm:$0xff]
        %v299 = vld [vmem:[%s225 + $0x8] sm:$0xff]
        %v300 = vld [vmem:[%s225 + $0x10] sm:$0xff]
        %v301 = vld [vmem:[%s225 + $0x18] sm:$0xff]
        %v302 = vld [vmem:[%s225 + $0x20] sm:$0xff]
        %v303 = vld [vmem:[%s225 + $0x28] sm:$0xff]
        %v304 = vld [vmem:[%s225 + $0x30] sm:$0xff]
        %v305 = vld [vmem:[%s225 + $0x38] sm:$0xff]
        %v306 = vld [vmem:[%s225 + $0x40] sm:$0xff]
        %v307 = vld [vmem:[%s225 + $0x48] sm:$0xff]
        %v308 = vld [vmem:[%s225 + $0x50] sm:$0xff]
        %v309 = vld [vmem:[%s225 + $0x58] sm:$0xff]
        %v310 = vld [vmem:[%s225 + $0x60] sm:$0xff]
        %v311 = vld [vmem:[%s225 + $0x68] sm:$0xff]
        %v312 = vld [vmem:[%s225 + $0x70] sm:$0xff]
        %v313 = vld [vmem:[%s225 + $0x78] sm:$0xff]
        %v314 = vld [vmem:[%s225 + $0x80] sm:$0xff]
        %v315 = vld [vmem:[%s225 + $0x88] sm:$0xff]
        %v316 = vld [vmem:[%s225 + $0x90] sm:$0xff]
        %v317 = vld [vmem:[%s225 + $0x98] sm:$0xff]
        %v318 = vld [vmem:[%s225 + $0xa0] sm:$0xff]
        %v319 = vld [vmem:[%s225 + $0xa8] sm:$0xff]
        %v320 = vld [vmem:[%s225 + $0xb0] sm:$0xff]
        %v321 = vld [vmem:[%s225 + $0xb8] sm:$0xff]
        %v322 = vld [vmem:[%s225 + $0xc0] sm:$0xff]
        %v323 = vld [vmem:[%s225 + $0xc8] sm:$0xff]
        %v324 = vld [vmem:[%s225 + $0xd0] sm:$0xff]
        %v325 = vld [vmem:[%s225 + $0xd8] sm:$0xff]
        %v326 = vld [vmem:[%s225 + $0xe0] sm:$0xff]
        %v327 = vld [vmem:[%s225 + $0xe8] sm:$0xff]
        %v328 = vld [vmem:[%s225 + $0xf0] sm:$0xff]
        %v329 = vld [vmem:[%s225 + $0xf8] sm:$0xff]
        %v330 = vld [vmem:[%s234] sm:$0xff]
        %v331 = vld [vmem:[%s234 + $0x8] sm:$0xff]
        %v332 = vld [vmem:[%s234 + $0x10] sm:$0xff]
        %v333 = vld [vmem:[%s234 + $0x18] sm:$0xff]
        %v334 = vld [vmem:[%s234 + $0x20] sm:$0xff]
        %v335 = vld [vmem:[%s234 + $0x28] sm:$0xff]
        %v336 = vld [vmem:[%s234 + $0x30] sm:$0xff]
        %v337 = vld [vmem:[%s234 + $0x38] sm:$0xff]
        %v338 = vld [vmem:[%s234 + $0x40] sm:$0xff]
        %v339 = vld [vmem:[%s234 + $0x48] sm:$0xff]
        %v340 = vld [vmem:[%s234 + $0x50] sm:$0xff]
        %v341 = vld [vmem:[%s234 + $0x58] sm:$0xff]
        %v342 = vld [vmem:[%s234 + $0x60] sm:$0xff]
        %v343 = vld [vmem:[%s234 + $0x68] sm:$0xff]
        %v344 = vld [vmem:[%s234 + $0x70] sm:$0xff]
        %v345 = vld [vmem:[%s234 + $0x78] sm:$0xff]
        %v346 = vld [vmem:[%s234 + $0x80] sm:$0xff]
        %v347 = vld [vmem:[%s234 + $0x88] sm:$0xff]
        %v348 = vld [vmem:[%s234 + $0x90] sm:$0xff]
        %v349 = vld [vmem:[%s234 + $0x98] sm:$0xff]
        %v350 = vld [vmem:[%s234 + $0xa0] sm:$0xff]
        %v351 = vld [vmem:[%s234 + $0xa8] sm:$0xff]
        %v352 = vld [vmem:[%s234 + $0xb0] sm:$0xff]
        %v353 = vld [vmem:[%s234 + $0xb8] sm:$0xff]
        %v354 = vld [vmem:[%s234 + $0xc0] sm:$0xff]
        %v355 = vld [vmem:[%s234 + $0xc8] sm:$0xff]
        %v356 = vld [vmem:[%s234 + $0xd0] sm:$0xff]
        %v357 = vld [vmem:[%s234 + $0xd8] sm:$0xff]
        %v358 = vld [vmem:[%s234 + $0xe0] sm:$0xff]
        %v359 = vld [vmem:[%s234 + $0xe8] sm:$0xff]
        %v360 = vld [vmem:[%s234 + $0xf0] sm:$0xff]
        %v361 = vld [vmem:[%s234 + $0xf8] sm:$0xff]
        %v362 = vld [vmem:[%s234 + $0x100] sm:$0xff]
        %v363 = vld [vmem:[%s234 + $0x108] sm:$0xff]
        %v364 = vld [vmem:[%s234 + $0x110] sm:$0xff]
        %v365 = vld [vmem:[%s234 + $0x118] sm:$0xff]
        %v366 = vld [vmem:[%s234 + $0x120] sm:$0xff]
        %v367 = vld [vmem:[%s234 + $0x128] sm:$0xff]
        %v368 = vld [vmem:[%s234 + $0x130] sm:$0xff]
        %v369 = vld [vmem:[%s234 + $0x138] sm:$0xff]
        %v370 = vld [vmem:[%s234 + $0x140] sm:$0xff]
        %v371 = vld [vmem:[%s234 + $0x148] sm:$0xff]
        %v372 = vld [vmem:[%s234 + $0x150] sm:$0xff]
        %v373 = vld [vmem:[%s234 + $0x158] sm:$0xff]
        %v374 = vld [vmem:[%s234 + $0x160] sm:$0xff]
        %v375 = vld [vmem:[%s234 + $0x168] sm:$0xff]
        %v376 = vld [vmem:[%s234 + $0x170] sm:$0xff]
        %v377 = vld [vmem:[%s234 + $0x178] sm:$0xff]
        %v378 = vld [vmem:[%s234 + $0x180] sm:$0xff]
        %v379 = vld [vmem:[%s234 + $0x188] sm:$0xff]
        %v380 = vld [vmem:[%s234 + $0x190] sm:$0xff]
        %v381 = vld [vmem:[%s234 + $0x198] sm:$0xff]
        %v382 = vld [vmem:[%s234 + $0x1a0] sm:$0xff]
        %v383 = vld [vmem:[%s234 + $0x1a8] sm:$0xff]
        %v384 = vld [vmem:[%s234 + $0x1b0] sm:$0xff]
        %v385 = vld [vmem:[%s234 + $0x1b8] sm:$0xff]
        %v386 = vld [vmem:[%s234 + $0x1c0] sm:$0xff]
        %v387 = vld [vmem:[%s234 + $0x1c8] sm:$0xff]
        %v388 = vld [vmem:[%s234 + $0x1d0] sm:$0xff]
        %v389 = vld [vmem:[%s234 + $0x1d8] sm:$0xff]
        %v390 = vld [vmem:[%s234 + $0x1e0] sm:$0xff]
        %v391 = vld [vmem:[%s234 + $0x1e8] sm:$0xff]
        %v392 = vld [vmem:[%s234 + $0x1f0] sm:$0xff]
        %v393 = vld [vmem:[%s234 + $0x1f8] sm:$0xff]
        %v394 = vld [vmem:[%s234 + $0x200] sm:$0xff]
        %v395 = vld [vmem:[%s234 + $0x208] sm:$0xff]
        %v396 = vld [vmem:[%s234 + $0x210] sm:$0xff]
        %v397 = vld [vmem:[%s234 + $0x218] sm:$0xff]
        %v398 = vld [vmem:[%s234 + $0x220] sm:$0xff]
        %v399 = vld [vmem:[%s234 + $0x228] sm:$0xff]
        %v400 = vld [vmem:[%s234 + $0x230] sm:$0xff]
        %v401 = vld [vmem:[%s234 + $0x238] sm:$0xff]
        %v402 = vld [vmem:[%s234 + $0x240] sm:$0xff]
        %v403 = vld [vmem:[%s234 + $0x248] sm:$0xff]
        %v404 = vld [vmem:[%s234 + $0x250] sm:$0xff]
        %v405 = vld [vmem:[%s234 + $0x258] sm:$0xff]
        %v406 = vld [vmem:[%s234 + $0x260] sm:$0xff]
        %v407 = vld [vmem:[%s234 + $0x268] sm:$0xff]
        %v408 = vld [vmem:[%s234 + $0x270] sm:$0xff]
        %v409 = vld [vmem:[%s234 + $0x278] sm:$0xff]
        %v410 = vld [vmem:[%s234 + $0x280] sm:$0xff]
        %v411 = vld [vmem:[%s234 + $0x288] sm:$0xff]
        %v412 = vld [vmem:[%s234 + $0x290] sm:$0xff]
        %v413 = vld [vmem:[%s234 + $0x298] sm:$0xff]
        %v414 = vld [vmem:[%s234 + $0x2a0] sm:$0xff]
        %v415 = vld [vmem:[%s234 + $0x2a8] sm:$0xff]
        %v416 = vld [vmem:[%s234 + $0x2b0] sm:$0xff]
        %v417 = vld [vmem:[%s234 + $0x2b8] sm:$0xff]
        %v418 = vld [vmem:[%s234 + $0x2c0] sm:$0xff]
        %v419 = vld [vmem:[%s234 + $0x2c8] sm:$0xff]
        %v420 = vld [vmem:[%s234 + $0x2d0] sm:$0xff]
        %v421 = vld [vmem:[%s234 + $0x2d8] sm:$0xff]
        %v422 = vld [vmem:[%s234 + $0x2e0] sm:$0xff]
        %v423 = vld [vmem:[%s234 + $0x2e8] sm:$0xff]
        %v424 = vld [vmem:[%s234 + $0x2f0] sm:$0xff]
        %v425 = vld [vmem:[%s234 + $0x2f8] sm:$0xff]
        %v426 = vld [vmem:[%s234 + $0x300] sm:$0xff]
        %v427 = vld [vmem:[%s234 + $0x308] sm:$0xff]
        %v428 = vld [vmem:[%s234 + $0x310] sm:$0xff]
        %v429 = vld [vmem:[%s234 + $0x318] sm:$0xff]
        %v430 = vld [vmem:[%s234 + $0x320] sm:$0xff]
        %v431 = vld [vmem:[%s234 + $0x328] sm:$0xff]
        %v432 = vld [vmem:[%s234 + $0x330] sm:$0xff]
        %v433 = vld [vmem:[%s234 + $0x338] sm:$0xff]
        %v434 = vld [vmem:[%s234 + $0x340] sm:$0xff]
        %v435 = vld [vmem:[%s234 + $0x348] sm:$0xff]
        %v436 = vld [vmem:[%s234 + $0x350] sm:$0xff]
        %v437 = vld [vmem:[%s234 + $0x358] sm:$0xff]
        %v438 = vld [vmem:[%s234 + $0x360] sm:$0xff]
        %v439 = vld [vmem:[%s234 + $0x368] sm:$0xff]
        %v440 = vld [vmem:[%s234 + $0x370] sm:$0xff]
        %v441 = vld [vmem:[%s234 + $0x378] sm:$0xff]
        %v442 = vld [vmem:[%s234 + $0x380] sm:$0xff]
        %v443 = vld [vmem:[%s234 + $0x388] sm:$0xff]
        %v444 = vld [vmem:[%s234 + $0x390] sm:$0xff]
        %v445 = vld [vmem:[%s234 + $0x398] sm:$0xff]
        %v446 = vld [vmem:[%s234 + $0x3a0] sm:$0xff]
        %v447 = vld [vmem:[%s234 + $0x3a8] sm:$0xff]
        %v448 = vld [vmem:[%s234 + $0x3b0] sm:$0xff]
        %v449 = vld [vmem:[%s234 + $0x3b8] sm:$0xff]
        %v450 = vld [vmem:[%s234 + $0x3c0] sm:$0xff]
        %v451 = vld [vmem:[%s234 + $0x3c8] sm:$0xff]
        %v452 = vld [vmem:[%s234 + $0x3d0] sm:$0xff]
        %v453 = vld [vmem:[%s234 + $0x3d8] sm:$0xff]
        %v454 = vld [vmem:[%s234 + $0x3e0] sm:$0xff]
        %v455 = vld [vmem:[%s234 + $0x3e8] sm:$0xff]
        %v456 = vld [vmem:[%s234 + $0x3f0] sm:$0xff]
        %v457 = vld [vmem:[%s234 + $0x3f8] sm:$0xff]
        %v458 = vld [vmem:[%s234 + $0x400] sm:$0xff]
        %v459 = vld [vmem:[%s234 + $0x408] sm:$0xff]
        %v460 = vld [vmem:[%s234 + $0x410] sm:$0xff]
        %v461 = vld [vmem:[%s234 + $0x418] sm:$0xff]
        %v462 = vld [vmem:[%s234 + $0x420] sm:$0xff]
        %v463 = vld [vmem:[%s234 + $0x428] sm:$0xff]
        %v464 = vld [vmem:[%s234 + $0x430] sm:$0xff]
        %v465 = vld [vmem:[%s234 + $0x438] sm:$0xff]
        %v466 = vld [vmem:[%s234 + $0x440] sm:$0xff]
        %v467 = vld [vmem:[%s234 + $0x448] sm:$0xff]
        %v468 = vld [vmem:[%s234 + $0x450] sm:$0xff]
        %v469 = vld [vmem:[%s234 + $0x458] sm:$0xff]
        %v470 = vld [vmem:[%s234 + $0x460] sm:$0xff]
        %v471 = vld [vmem:[%s234 + $0x468] sm:$0xff]
        %v472 = vld [vmem:[%s234 + $0x470] sm:$0xff]
        %v473 = vld [vmem:[%s234 + $0x478] sm:$0xff]
        %v474 = vld [vmem:[%s234 + $0x480] sm:$0xff]
        %v475 = vld [vmem:[%s234 + $0x488] sm:$0xff]
        %v476 = vld [vmem:[%s234 + $0x490] sm:$0xff]
        %v477 = vld [vmem:[%s234 + $0x498] sm:$0xff]
        %v478 = vld [vmem:[%s234 + $0x4a0] sm:$0xff]
        %v479 = vld [vmem:[%s234 + $0x4a8] sm:$0xff]
        %v480 = vld [vmem:[%s234 + $0x4b0] sm:$0xff]
        %v481 = vld [vmem:[%s234 + $0x4b8] sm:$0xff]
        %v482 = vld [vmem:[%s234 + $0x4c0] sm:$0xff]
        %v483 = vld [vmem:[%s234 + $0x4c8] sm:$0xff]
        %v484 = vld [vmem:[%s234 + $0x4d0] sm:$0xff]
        %v485 = vld [vmem:[%s234 + $0x4d8] sm:$0xff]
        %v486 = vld [vmem:[%s234 + $0x4e0] sm:$0xff]
        %v487 = vld [vmem:[%s234 + $0x4e8] sm:$0xff]
        %v488 = vld [vmem:[%s234 + $0x4f0] sm:$0xff]
        %v489 = vld [vmem:[%s234 + $0x4f8] sm:$0xff]
        %v490 = vld [vmem:[%s234 + $0x500] sm:$0xff]
        %v491 = vld [vmem:[%s234 + $0x508] sm:$0xff]
        %v492 = vld [vmem:[%s234 + $0x510] sm:$0xff]
        %v493 = vld [vmem:[%s234 + $0x518] sm:$0xff]
        %v494 = vld [vmem:[%s234 + $0x520] sm:$0xff]
        %v495 = vld [vmem:[%s234 + $0x528] sm:$0xff]
        %v496 = vld [vmem:[%s234 + $0x530] sm:$0xff]
        %v497 = vld [vmem:[%s234 + $0x538] sm:$0xff]
        %v498 = vld [vmem:[%s234 + $0x540] sm:$0xff]
        %v499 = vld [vmem:[%s234 + $0x548] sm:$0xff]
        %v500 = vld [vmem:[%s234 + $0x550] sm:$0xff]
        %v501 = vld [vmem:[%s234 + $0x558] sm:$0xff]
        %v502 = vld [vmem:[%s234 + $0x560] sm:$0xff]
        %v503 = vld [vmem:[%s234 + $0x568] sm:$0xff]
        %v504 = vld [vmem:[%s234 + $0x570] sm:$0xff]
        %v505 = vld [vmem:[%s234 + $0x578] sm:$0xff]
        %v506 = vld [vmem:[%s234 + $0x580] sm:$0xff]
        %v507 = vld [vmem:[%s234 + $0x588] sm:$0xff]
        %v508 = vld [vmem:[%s234 + $0x590] sm:$0xff]
        %v509 = vld [vmem:[%s234 + $0x598] sm:$0xff]
        %v510 = vld [vmem:[%s234 + $0x5a0] sm:$0xff]
        %v511 = vld [vmem:[%s234 + $0x5a8] sm:$0xff]
        %v512 = vld [vmem:[%s234 + $0x5b0] sm:$0xff]
        %v513 = vld [vmem:[%s234 + $0x5b8] sm:$0xff]
        %v514 = vld [vmem:[%s234 + $0x5c0] sm:$0xff]
        %v515 = vld [vmem:[%s234 + $0x5c8] sm:$0xff]
        %v516 = vld [vmem:[%s234 + $0x5d0] sm:$0xff]
        %v517 = vld [vmem:[%s234 + $0x5d8] sm:$0xff]
        %v518 = vld [vmem:[%s234 + $0x5e0] sm:$0xff]
        %v519 = vld [vmem:[%s234 + $0x5e8] sm:$0xff]
        %v520 = vld [vmem:[%s234 + $0x5f0] sm:$0xff]
        %v521 = vld [vmem:[%s234 + $0x5f8] sm:$0xff]
        %v522 = vld [vmem:[%s234 + $0x600] sm:$0xff]
        %v523 = vld [vmem:[%s234 + $0x608] sm:$0xff]
        %v524 = vld [vmem:[%s234 + $0x610] sm:$0xff]
        %v525 = vld [vmem:[%s234 + $0x618] sm:$0xff]
        %v526 = vld [vmem:[%s234 + $0x620] sm:$0xff]
        %v527 = vld [vmem:[%s234 + $0x628] sm:$0xff]
        %v528 = vld [vmem:[%s234 + $0x630] sm:$0xff]
        %v529 = vld [vmem:[%s234 + $0x638] sm:$0xff]
        %v530 = vld [vmem:[%s234 + $0x640] sm:$0xff]
        %v531 = vld [vmem:[%s234 + $0x648] sm:$0xff]
        %v532 = vld [vmem:[%s234 + $0x650] sm:$0xff]
        %v533 = vld [vmem:[%s234 + $0x658] sm:$0xff]
        %v534 = vld [vmem:[%s234 + $0x660] sm:$0xff]
        %v535 = vld [vmem:[%s234 + $0x668] sm:$0xff]
        %v536 = vld [vmem:[%s234 + $0x670] sm:$0xff]
        %v537 = vld [vmem:[%s234 + $0x678] sm:$0xff]
        %v538 = vld [vmem:[%s234 + $0x680] sm:$0xff]
        %v539 = vld [vmem:[%s234 + $0x688] sm:$0xff]
        %v540 = vld [vmem:[%s234 + $0x690] sm:$0xff]
        %v541 = vld [vmem:[%s234 + $0x698] sm:$0xff]
        %v542 = vld [vmem:[%s234 + $0x6a0] sm:$0xff]
        %v543 = vld [vmem:[%s234 + $0x6a8] sm:$0xff]
        %v544 = vld [vmem:[%s234 + $0x6b0] sm:$0xff]
        %v545 = vld [vmem:[%s234 + $0x6b8] sm:$0xff]
        %v546 = vld [vmem:[%s234 + $0x6c0] sm:$0xff]
        %v547 = vld [vmem:[%s234 + $0x6c8] sm:$0xff]
        %v548 = vld [vmem:[%s234 + $0x6d0] sm:$0xff]
        %v549 = vld [vmem:[%s234 + $0x6d8] sm:$0xff]
        %v550 = vld [vmem:[%s234 + $0x6e0] sm:$0xff]
        %v551 = vld [vmem:[%s234 + $0x6e8] sm:$0xff]
        %v552 = vld [vmem:[%s234 + $0x6f0] sm:$0xff]
        %v553 = vld [vmem:[%s234 + $0x6f8] sm:$0xff]
        %v554 = vld [vmem:[%s234 + $0x700] sm:$0xff]
        %v555 = vld [vmem:[%s234 + $0x708] sm:$0xff]
        %v556 = vld [vmem:[%s234 + $0x710] sm:$0xff]
        %v557 = vld [vmem:[%s234 + $0x718] sm:$0xff]
        %v558 = vld [vmem:[%s234 + $0x720] sm:$0xff]
        %v559 = vld [vmem:[%s234 + $0x728] sm:$0xff]
        %v560 = vld [vmem:[%s234 + $0x730] sm:$0xff]
        %v561 = vld [vmem:[%s234 + $0x738] sm:$0xff]
        %v562 = vld [vmem:[%s234 + $0x740] sm:$0xff]
        %v563 = vld [vmem:[%s234 + $0x748] sm:$0xff]
        %v564 = vld [vmem:[%s234 + $0x750] sm:$0xff]
        %v565 = vld [vmem:[%s234 + $0x758] sm:$0xff]
        %v566 = vld [vmem:[%s234 + $0x760] sm:$0xff]
        %v567 = vld [vmem:[%s234 + $0x768] sm:$0xff]
        %v568 = vld [vmem:[%s234 + $0x770] sm:$0xff]
        %v569 = vld [vmem:[%s234 + $0x778] sm:$0xff]
        %v570 = vld [vmem:[%s234 + $0x780] sm:$0xff]
        %v571 = vld [vmem:[%s234 + $0x788] sm:$0xff]
        %v572 = vld [vmem:[%s234 + $0x790] sm:$0xff]
        %v573 = vld [vmem:[%s234 + $0x798] sm:$0xff]
        %v574 = vld [vmem:[%s234 + $0x7a0] sm:$0xff]
        %v575 = vld [vmem:[%s234 + $0x7a8] sm:$0xff]
        %v576 = vld [vmem:[%s234 + $0x7b0] sm:$0xff]
        %v577 = vld [vmem:[%s234 + $0x7b8] sm:$0xff]
        %v578 = vld [vmem:[%s234 + $0x7c0] sm:$0xff]
        %v579 = vld [vmem:[%s234 + $0x7c8] sm:$0xff]
        %v580 = vld [vmem:[%s234 + $0x7d0] sm:$0xff]
        %v581 = vld [vmem:[%s234 + $0x7d8] sm:$0xff]
        %v582 = vld [vmem:[%s234 + $0x7e0] sm:$0xff]
        %v583 = vld [vmem:[%s234 + $0x7e8] sm:$0xff]
        %v584 = vld [vmem:[%s234 + $0x7f0] sm:$0xff]
        %v585 = vld [vmem:[%s234 + $0x7f8] sm:$0xff]
        %v586 = vld [vmem:[%s234 + $0x800] sm:$0xff]
        %v587 = vld [vmem:[%s234 + $0x808] sm:$0xff]
        %v588 = vld [vmem:[%s234 + $0x810] sm:$0xff]
        %v589 = vld [vmem:[%s234 + $0x818] sm:$0xff]
        %v590 = vld [vmem:[%s234 + $0x820] sm:$0xff]
        %v591 = vld [vmem:[%s234 + $0x828] sm:$0xff]
        %v592 = vld [vmem:[%s234 + $0x830] sm:$0xff]
        %v593 = vld [vmem:[%s234 + $0x838] sm:$0xff]
        %v594 = vld [vmem:[%s234 + $0x840] sm:$0xff]
        %v595 = vld [vmem:[%s234 + $0x848] sm:$0xff]
        %v596 = vld [vmem:[%s234 + $0x850] sm:$0xff]
        %v597 = vld [vmem:[%s234 + $0x858] sm:$0xff]
        %v598 = vld [vmem:[%s234 + $0x860] sm:$0xff]
        %v599 = vld [vmem:[%s234 + $0x868] sm:$0xff]
        %v600 = vld [vmem:[%s234 + $0x870] sm:$0xff]
        %v601 = vld [vmem:[%s234 + $0x878] sm:$0xff]
        %v602 = vld [vmem:[%s234 + $0x880] sm:$0xff]
        %v603 = vld [vmem:[%s234 + $0x888] sm:$0xff]
        %v604 = vld [vmem:[%s234 + $0x890] sm:$0xff]
        %v605 = vld [vmem:[%s234 + $0x898] sm:$0xff]
        %v606 = vld [vmem:[%s234 + $0x8a0] sm:$0xff]
        %v607 = vld [vmem:[%s234 + $0x8a8] sm:$0xff]
        %v608 = vld [vmem:[%s234 + $0x8b0] sm:$0xff]
        %v609 = vld [vmem:[%s234 + $0x8b8] sm:$0xff]
        %v610 = vld [vmem:[%s234 + $0x8c0] sm:$0xff]
        %v611 = vld [vmem:[%s234 + $0x8c8] sm:$0xff]
        %v612 = vld [vmem:[%s234 + $0x8d0] sm:$0xff]
        %v613 = vld [vmem:[%s234 + $0x8d8] sm:$0xff]
        %v614 = vld [vmem:[%s234 + $0x8e0] sm:$0xff]
        %v615 = vld [vmem:[%s234 + $0x8e8] sm:$0xff]
        %v616 = vld [vmem:[%s234 + $0x8f0] sm:$0xff]
        %v617 = vld [vmem:[%s234 + $0x8f8] sm:$0xff]
        %v618 = vld [vmem:[%s234 + $0x900] sm:$0xff]
        %v619 = vld [vmem:[%s234 + $0x908] sm:$0xff]
        %v620 = vld [vmem:[%s234 + $0x910] sm:$0xff]
        %v621 = vld [vmem:[%s234 + $0x918] sm:$0xff]
        %v622 = vld [vmem:[%s234 + $0x920] sm:$0xff]
        %v623 = vld [vmem:[%s234 + $0x928] sm:$0xff]
        %v624 = vld [vmem:[%s234 + $0x930] sm:$0xff]
        %v625 = vld [vmem:[%s234 + $0x938] sm:$0xff]
        %v626 = vld [vmem:[%s234 + $0x940] sm:$0xff]
        %v627 = vld [vmem:[%s234 + $0x948] sm:$0xff]
        %v628 = vld [vmem:[%s234 + $0x950] sm:$0xff]
        %v629 = vld [vmem:[%s234 + $0x958] sm:$0xff]
        %v630 = vld [vmem:[%s234 + $0x960] sm:$0xff]
        %v631 = vld [vmem:[%s234 + $0x968] sm:$0xff]
        %v632 = vld [vmem:[%s234 + $0x970] sm:$0xff]
        %v633 = vld [vmem:[%s234 + $0x978] sm:$0xff]
        %v634 = vld [vmem:[%s234 + $0x980] sm:$0xff]
        %v635 = vld [vmem:[%s234 + $0x988] sm:$0xff]
        %v636 = vld [vmem:[%s234 + $0x990] sm:$0xff]
        %v637 = vld [vmem:[%s234 + $0x998] sm:$0xff]
        %v638 = vld [vmem:[%s234 + $0x9a0] sm:$0xff]
        %v639 = vld [vmem:[%s234 + $0x9a8] sm:$0xff]
        %v640 = vld [vmem:[%s234 + $0x9b0] sm:$0xff]
        %v641 = vld [vmem:[%s234 + $0x9b8] sm:$0xff]
        %v642 = vld [vmem:[%s234 + $0x9c0] sm:$0xff]
        %v643 = vld [vmem:[%s234 + $0x9c8] sm:$0xff]
        %v644 = vld [vmem:[%s234 + $0x9d0] sm:$0xff]
        %v645 = vld [vmem:[%s234 + $0x9d8] sm:$0xff]
        %v646 = vld [vmem:[%s234 + $0x9e0] sm:$0xff]
        %v647 = vld [vmem:[%s234 + $0x9e8] sm:$0xff]
        %v648 = vld [vmem:[%s234 + $0x9f0] sm:$0xff]
        %v649 = vld [vmem:[%s234 + $0x9f8] sm:$0xff]
        %v650 = vld [vmem:[%s234 + $0xa00] sm:$0xff]
        %v651 = vld [vmem:[%s234 + $0xa08] sm:$0xff]
        %v652 = vld [vmem:[%s234 + $0xa10] sm:$0xff]
        %v653 = vld [vmem:[%s234 + $0xa18] sm:$0xff]
        %v654 = vld [vmem:[%s234 + $0xa20] sm:$0xff]
        %v655 = vld [vmem:[%s234 + $0xa28] sm:$0xff]
        %v656 = vld [vmem:[%s234 + $0xa30] sm:$0xff]
        %v657 = vld [vmem:[%s234 + $0xa38] sm:$0xff]
        %v658 = vld [vmem:[%s234 + $0xa40] sm:$0xff]
        %v659 = vld [vmem:[%s234 + $0xa48] sm:$0xff]
        %v660 = vld [vmem:[%s234 + $0xa50] sm:$0xff]
        %v661 = vld [vmem:[%s234 + $0xa58] sm:$0xff]
        %v662 = vld [vmem:[%s234 + $0xa60] sm:$0xff]
        %v663 = vld [vmem:[%s234 + $0xa68] sm:$0xff]
        %v664 = vld [vmem:[%s234 + $0xa70] sm:$0xff]
        %v665 = vld [vmem:[%s234 + $0xa78] sm:$0xff]
        %v666 = vld [vmem:[%s234 + $0xa80] sm:$0xff]
        %v667 = vld [vmem:[%s234 + $0xa88] sm:$0xff]
        %v668 = vld [vmem:[%s234 + $0xa90] sm:$0xff]
        %v669 = vld [vmem:[%s234 + $0xa98] sm:$0xff]
        %v670 = vld [vmem:[%s234 + $0xaa0] sm:$0xff]
        %v671 = vld [vmem:[%s234 + $0xaa8] sm:$0xff]
        %v672 = vld [vmem:[%s234 + $0xab0] sm:$0xff]
        %v673 = vld [vmem:[%s234 + $0xab8] sm:$0xff]
        %v674 = vld [vmem:[%s234 + $0xac0] sm:$0xff]
        %v675 = vld [vmem:[%s234 + $0xac8] sm:$0xff]
        %v676 = vld [vmem:[%s234 + $0xad0] sm:$0xff]
        %v677 = vld [vmem:[%s234 + $0xad8] sm:$0xff]
        %v678 = vld [vmem:[%s234 + $0xae0] sm:$0xff]
        %v679 = vld [vmem:[%s234 + $0xae8] sm:$0xff]
        %v680 = vld [vmem:[%s234 + $0xaf0] sm:$0xff]
        %v681 = vld [vmem:[%s234 + $0xaf8] sm:$0xff]
        %v682 = vld [vmem:[%s234 + $0xb00] sm:$0xff]
        %v683 = vld [vmem:[%s234 + $0xb08] sm:$0xff]
        %v684 = vld [vmem:[%s234 + $0xb10] sm:$0xff]
        %v685 = vld [vmem:[%s234 + $0xb18] sm:$0xff]
        %v686 = vld [vmem:[%s234 + $0xb20] sm:$0xff]
        %v687 = vld [vmem:[%s234 + $0xb28] sm:$0xff]
        %v688 = vld [vmem:[%s234 + $0xb30] sm:$0xff]
        %v689 = vld [vmem:[%s234 + $0xb38] sm:$0xff]
        %v690 = vld [vmem:[%s234 + $0xb40] sm:$0xff]
        %v691 = vld [vmem:[%s234 + $0xb48] sm:$0xff]
        %v692 = vld [vmem:[%s234 + $0xb50] sm:$0xff]
        %v693 = vld [vmem:[%s234 + $0xb58] sm:$0xff]
        %v694 = vld [vmem:[%s234 + $0xb60] sm:$0xff]
        %v695 = vld [vmem:[%s234 + $0xb68] sm:$0xff]
        %v696 = vld [vmem:[%s234 + $0xb70] sm:$0xff]
        %v697 = vld [vmem:[%s234 + $0xb78] sm:$0xff]
        %v698 = vld [vmem:[%s234 + $0xb80] sm:$0xff]
        %v699 = vld [vmem:[%s234 + $0xb88] sm:$0xff]
        %v700 = vld [vmem:[%s234 + $0xb90] sm:$0xff]
        %v701 = vld [vmem:[%s234 + $0xb98] sm:$0xff]
        %v702 = vld [vmem:[%s234 + $0xba0] sm:$0xff]
        %v703 = vld [vmem:[%s234 + $0xba8] sm:$0xff]
        %v704 = vld [vmem:[%s234 + $0xbb0] sm:$0xff]
        %v705 = vld [vmem:[%s234 + $0xbb8] sm:$0xff]
        %v706 = vld [vmem:[%s234 + $0xbc0] sm:$0xff]
        %v707 = vld [vmem:[%s234 + $0xbc8] sm:$0xff]
        %v708 = vld [vmem:[%s234 + $0xbd0] sm:$0xff]
        %v709 = vld [vmem:[%s234 + $0xbd8] sm:$0xff]
        %v710 = vld [vmem:[%s234 + $0xbe0] sm:$0xff]
        %v711 = vld [vmem:[%s234 + $0xbe8] sm:$0xff]
        %v712 = vld [vmem:[%s234 + $0xbf0] sm:$0xff]
        %v713 = vld [vmem:[%s234 + $0xbf8] sm:$0xff]
        %v714 = vld [vmem:[%s234 + $0xc00] sm:$0xff]
        %v715 = vld [vmem:[%s234 + $0xc08] sm:$0xff]
        %v716 = vld [vmem:[%s234 + $0xc10] sm:$0xff]
        %v717 = vld [vmem:[%s234 + $0xc18] sm:$0xff]
        %v718 = vld [vmem:[%s234 + $0xc20] sm:$0xff]
        %v719 = vld [vmem:[%s234 + $0xc28] sm:$0xff]
        %v720 = vld [vmem:[%s234 + $0xc30] sm:$0xff]
        %v721 = vld [vmem:[%s234 + $0xc38] sm:$0xff]
        %v722 = vld [vmem:[%s234 + $0xc40] sm:$0xff]
        %v723 = vld [vmem:[%s234 + $0xc48] sm:$0xff]
        %v724 = vld [vmem:[%s234 + $0xc50] sm:$0xff]
        %v725 = vld [vmem:[%s234 + $0xc58] sm:$0xff]
        %v726 = vld [vmem:[%s234 + $0xc60] sm:$0xff]
        %v727 = vld [vmem:[%s234 + $0xc68] sm:$0xff]
        %v728 = vld [vmem:[%s234 + $0xc70] sm:$0xff]
        %v729 = vld [vmem:[%s234 + $0xc78] sm:$0xff]
        %v730 = vld [vmem:[%s234 + $0xc80] sm:$0xff]
        %v731 = vld [vmem:[%s234 + $0xc88] sm:$0xff]
        %v732 = vld [vmem:[%s234 + $0xc90] sm:$0xff]
        %v733 = vld [vmem:[%s234 + $0xc98] sm:$0xff]
        %v734 = vld [vmem:[%s234 + $0xca0] sm:$0xff]
        %v735 = vld [vmem:[%s234 + $0xca8] sm:$0xff]
        %v736 = vld [vmem:[%s234 + $0xcb0] sm:$0xff]
        %v737 = vld [vmem:[%s234 + $0xcb8] sm:$0xff]
        %v738 = vld [vmem:[%s234 + $0xcc0] sm:$0xff]
        %v739 = vld [vmem:[%s234 + $0xcc8] sm:$0xff]
        %v740 = vld [vmem:[%s234 + $0xcd0] sm:$0xff]
        %v741 = vld [vmem:[%s234 + $0xcd8] sm:$0xff]
        %v742 = vld [vmem:[%s234 + $0xce0] sm:$0xff]
        %v743 = vld [vmem:[%s234 + $0xce8] sm:$0xff]
        %v744 = vld [vmem:[%s234 + $0xcf0] sm:$0xff]
        %v745 = vld [vmem:[%s234 + $0xcf8] sm:$0xff]
        %v746 = vld [vmem:[%s234 + $0xd00] sm:$0xff]
        %v747 = vld [vmem:[%s234 + $0xd08] sm:$0xff]
        %v748 = vld [vmem:[%s234 + $0xd10] sm:$0xff]
        %v749 = vld [vmem:[%s234 + $0xd18] sm:$0xff]
        %v750 = vld [vmem:[%s234 + $0xd20] sm:$0xff]
        %v751 = vld [vmem:[%s234 + $0xd28] sm:$0xff]
        %v752 = vld [vmem:[%s234 + $0xd30] sm:$0xff]
        %v753 = vld [vmem:[%s234 + $0xd38] sm:$0xff]
        %v754 = vld [vmem:[%s234 + $0xd40] sm:$0xff]
        %v755 = vld [vmem:[%s234 + $0xd48] sm:$0xff]
        %v756 = vld [vmem:[%s234 + $0xd50] sm:$0xff]
        %v757 = vld [vmem:[%s234 + $0xd58] sm:$0xff]
        %v758 = vld [vmem:[%s234 + $0xd60] sm:$0xff]
        %v759 = vld [vmem:[%s234 + $0xd68] sm:$0xff]
        %v760 = vld [vmem:[%s234 + $0xd70] sm:$0xff]
        %v761 = vld [vmem:[%s234 + $0xd78] sm:$0xff]
        %v762 = vld [vmem:[%s234 + $0xd80] sm:$0xff]
        %v763 = vld [vmem:[%s234 + $0xd88] sm:$0xff]
        %v764 = vld [vmem:[%s234 + $0xd90] sm:$0xff]
        %v765 = vld [vmem:[%s234 + $0xd98] sm:$0xff]
        %v766 = vld [vmem:[%s234 + $0xda0] sm:$0xff]
        %v767 = vld [vmem:[%s234 + $0xda8] sm:$0xff]
        %v768 = vld [vmem:[%s234 + $0xdb0] sm:$0xff]
        %v769 = vld [vmem:[%s234 + $0xdb8] sm:$0xff]
        %v770 = vld [vmem:[%s234 + $0xdc0] sm:$0xff]
        %v771 = vld [vmem:[%s234 + $0xdc8] sm:$0xff]
        %v772 = vld [vmem:[%s234 + $0xdd0] sm:$0xff]
        %v773 = vld [vmem:[%s234 + $0xdd8] sm:$0xff]
        %v774 = vld [vmem:[%s234 + $0xde0] sm:$0xff]
        %v775 = vld [vmem:[%s234 + $0xde8] sm:$0xff]
        %v776 = vld [vmem:[%s234 + $0xdf0] sm:$0xff]
        %v777 = vld [vmem:[%s234 + $0xdf8] sm:$0xff]
        %v778 = vld [vmem:[%s234 + $0xe00] sm:$0xff]
        %v779 = vld [vmem:[%s234 + $0xe08] sm:$0xff]
        %v780 = vld [vmem:[%s234 + $0xe10] sm:$0xff]
        %v781 = vld [vmem:[%s234 + $0xe18] sm:$0xff]
        %v782 = vld [vmem:[%s234 + $0xe20] sm:$0xff]
        %v783 = vld [vmem:[%s234 + $0xe28] sm:$0xff]
        %v784 = vld [vmem:[%s234 + $0xe30] sm:$0xff]
        %v785 = vld [vmem:[%s234 + $0xe38] sm:$0xff]
        %v786 = vld [vmem:[%s234 + $0xe40] sm:$0xff]
        %v787 = vld [vmem:[%s234 + $0xe48] sm:$0xff]
        %v788 = vld [vmem:[%s234 + $0xe50] sm:$0xff]
        %v789 = vld [vmem:[%s234 + $0xe58] sm:$0xff]
        %v790 = vld [vmem:[%s234 + $0xe60] sm:$0xff]
        %v791 = vld [vmem:[%s234 + $0xe68] sm:$0xff]
        %v792 = vld [vmem:[%s234 + $0xe70] sm:$0xff]
        %v793 = vld [vmem:[%s234 + $0xe78] sm:$0xff]
        %v794 = vld [vmem:[%s234 + $0xe80] sm:$0xff]
        %v795 = vld [vmem:[%s234 + $0xe88] sm:$0xff]
        %v796 = vld [vmem:[%s234 + $0xe90] sm:$0xff]
        %v797 = vld [vmem:[%s234 + $0xe98] sm:$0xff]
        %v798 = vld [vmem:[%s234 + $0xea0] sm:$0xff]
        %v799 = vld [vmem:[%s234 + $0xea8] sm:$0xff]
        %v800 = vld [vmem:[%s234 + $0xeb0] sm:$0xff]
        %v801 = vld [vmem:[%s234 + $0xeb8] sm:$0xff]
        %v802 = vld [vmem:[%s234 + $0xec0] sm:$0xff]
        %v803 = vld [vmem:[%s234 + $0xec8] sm:$0xff]
        %v804 = vld [vmem:[%s234 + $0xed0] sm:$0xff]
        %v805 = vld [vmem:[%s234 + $0xed8] sm:$0xff]
        %v806 = vld [vmem:[%s234 + $0xee0] sm:$0xff]
        %v807 = vld [vmem:[%s234 + $0xee8] sm:$0xff]
        %v808 = vld [vmem:[%s234 + $0xef0] sm:$0xff]
        %v809 = vld [vmem:[%s234 + $0xef8] sm:$0xff]
        %v810 = vld [vmem:[%s234 + $0xf00] sm:$0xff]
        %v811 = vld [vmem:[%s234 + $0xf08] sm:$0xff]
        %v812 = vld [vmem:[%s234 + $0xf10] sm:$0xff]
        %v813 = vld [vmem:[%s234 + $0xf18] sm:$0xff]
        %v814 = vld [vmem:[%s234 + $0xf20] sm:$0xff]
        %v815 = vld [vmem:[%s234 + $0xf28] sm:$0xff]
        %v816 = vld [vmem:[%s234 + $0xf30] sm:$0xff]
        %v817 = vld [vmem:[%s234 + $0xf38] sm:$0xff]
        %v818 = vld [vmem:[%s234 + $0xf40] sm:$0xff]
        %v819 = vld [vmem:[%s234 + $0xf48] sm:$0xff]
        %v820 = vld [vmem:[%s234 + $0xf50] sm:$0xff]
        %v821 = vld [vmem:[%s234 + $0xf58] sm:$0xff]
        %v822 = vld [vmem:[%s234 + $0xf60] sm:$0xff]
        %v823 = vld [vmem:[%s234 + $0xf68] sm:$0xff]
        %v824 = vld [vmem:[%s234 + $0xf70] sm:$0xff]
        %v825 = vld [vmem:[%s234 + $0xf78] sm:$0xff]
        %v826 = vld [vmem:[%s234 + $0xf80] sm:$0xff]
        %v827 = vld [vmem:[%s234 + $0xf88] sm:$0xff]
        %v828 = vld [vmem:[%s234 + $0xf90] sm:$0xff]
        %v829 = vld [vmem:[%s234 + $0xf98] sm:$0xff]
        %v830 = vld [vmem:[%s234 + $0xfa0] sm:$0xff]
        %v831 = vld [vmem:[%s234 + $0xfa8] sm:$0xff]
        %v832 = vld [vmem:[%s234 + $0xfb0] sm:$0xff]
        %v833 = vld [vmem:[%s234 + $0xfb8] sm:$0xff]
        %v834 = vld [vmem:[%s234 + $0xfc0] sm:$0xff]
        %v835 = vld [vmem:[%s234 + $0xfc8] sm:$0xff]
        %v836 = vld [vmem:[%s234 + $0xfd0] sm:$0xff]
        %v837 = vld [vmem:[%s234 + $0xfd8] sm:$0xff]
        %v838 = vld [vmem:[%s234 + $0xfe0] sm:$0xff]
        %v839 = vld [vmem:[%s234 + $0xfe8] sm:$0xff]
        %v840 = vld [vmem:[%s234 + $0xff0] sm:$0xff]
        %v841 = vld [vmem:[%s234 + $0xff8] sm:$0xff]
        %v842 = vld [vmem:[%s234 + $0x1000] sm:$0xff]
        %v843 = vld [vmem:[%s234 + $0x1008] sm:$0xff]
        %v844 = vld [vmem:[%s234 + $0x1010] sm:$0xff]
        %v845 = vld [vmem:[%s234 + $0x1018] sm:$0xff]
        %v846 = vld [vmem:[%s234 + $0x1020] sm:$0xff]
        %v847 = vld [vmem:[%s234 + $0x1028] sm:$0xff]
        %v848 = vld [vmem:[%s234 + $0x1030] sm:$0xff]
        %v849 = vld [vmem:[%s234 + $0x1038] sm:$0xff]
        %v850 = vld [vmem:[%s234 + $0x1040] sm:$0xff]
        %v851 = vld [vmem:[%s234 + $0x1048] sm:$0xff]
        %v852 = vld [vmem:[%s234 + $0x1050] sm:$0xff]
        %v853 = vld [vmem:[%s234 + $0x1058] sm:$0xff]
        %v854 = vld [vmem:[%s234 + $0x1060] sm:$0xff]
        %v855 = vld [vmem:[%s234 + $0x1068] sm:$0xff]
        %v856 = vld [vmem:[%s234 + $0x1070] sm:$0xff]
        %v857 = vld [vmem:[%s234 + $0x1078] sm:$0xff]
        %v858 = vld [vmem:[%s234 + $0x1080] sm:$0xff]
        %v859 = vld [vmem:[%s234 + $0x1088] sm:$0xff]
        %v860 = vld [vmem:[%s234 + $0x1090] sm:$0xff]
        %v861 = vld [vmem:[%s234 + $0x1098] sm:$0xff]
        %v862 = vld [vmem:[%s234 + $0x10a0] sm:$0xff]
        %v863 = vld [vmem:[%s234 + $0x10a8] sm:$0xff]
        %v864 = vld [vmem:[%s234 + $0x10b0] sm:$0xff]
        %v865 = vld [vmem:[%s234 + $0x10b8] sm:$0xff]
        %v866 = vld [vmem:[%s234 + $0x10c0] sm:$0xff]
        %v867 = vld [vmem:[%s234 + $0x10c8] sm:$0xff]
        %v868 = vld [vmem:[%s234 + $0x10d0] sm:$0xff]
        %v869 = vld [vmem:[%s234 + $0x10d8] sm:$0xff]
        %v870 = vld [vmem:[%s234 + $0x10e0] sm:$0xff]
        %v871 = vld [vmem:[%s234 + $0x10e8] sm:$0xff]
        %v872 = vld [vmem:[%s234 + $0x10f0] sm:$0xff]
        %v873 = vld [vmem:[%s234 + $0x10f8] sm:$0xff]
        %v874 = vld [vmem:[%s234 + $0x1100] sm:$0xff]
        %v875 = vld [vmem:[%s234 + $0x1108] sm:$0xff]
        %v876 = vld [vmem:[%s234 + $0x1110] sm:$0xff]
        %v877 = vld [vmem:[%s234 + $0x1118] sm:$0xff]
        %v878 = vld [vmem:[%s234 + $0x1120] sm:$0xff]
        %v879 = vld [vmem:[%s234 + $0x1128] sm:$0xff]
        %v880 = vld [vmem:[%s234 + $0x1130] sm:$0xff]
        %v881 = vld [vmem:[%s234 + $0x1138] sm:$0xff]
        %v882 = vld [vmem:[%s234 + $0x1140] sm:$0xff]
        %v883 = vld [vmem:[%s234 + $0x1148] sm:$0xff]
        %v884 = vld [vmem:[%s234 + $0x1150] sm:$0xff]
        %v885 = vld [vmem:[%s234 + $0x1158] sm:$0xff]
        %v886 = vld [vmem:[%s234 + $0x1160] sm:$0xff]
        %v887 = vld [vmem:[%s234 + $0x1168] sm:$0xff]
        %v888 = vld [vmem:[%s234 + $0x1170] sm:$0xff]
        %v889 = vld [vmem:[%s234 + $0x1178] sm:$0xff]
        %v890 = vld [vmem:[%s234 + $0x1180] sm:$0xff]
        %v891 = vld [vmem:[%s234 + $0x1188] sm:$0xff]
        %v892 = vld [vmem:[%s234 + $0x1190] sm:$0xff]
        %v893 = vld [vmem:[%s234 + $0x1198] sm:$0xff]
        %v894 = vld [vmem:[%s234 + $0x11a0] sm:$0xff]
        %v895 = vld [vmem:[%s234 + $0x11a8] sm:$0xff]
        %v896 = vld [vmem:[%s234 + $0x11b0] sm:$0xff]
        %v897 = vld [vmem:[%s234 + $0x11b8] sm:$0xff]
        %v898 = vld [vmem:[%s234 + $0x11c0] sm:$0xff]
        %v899 = vld [vmem:[%s234 + $0x11c8] sm:$0xff]
        %v900 = vld [vmem:[%s234 + $0x11d0] sm:$0xff]
        %v901 = vld [vmem:[%s234 + $0x11d8] sm:$0xff]
        %v902 = vld [vmem:[%s234 + $0x11e0] sm:$0xff]
        %v903 = vld [vmem:[%s234 + $0x11e8] sm:$0xff]
        %v904 = vld [vmem:[%s234 + $0x11f0] sm:$0xff]
        %v905 = vld [vmem:[%s234 + $0x11f8] sm:$0xff]
        %v906 = vld [vmem:[%s234 + $0x1200] sm:$0xff]
        %v907 = vld [vmem:[%s234 + $0x1208] sm:$0xff]
        %v908 = vld [vmem:[%s234 + $0x1210] sm:$0xff]
        %v909 = vld [vmem:[%s234 + $0x1218] sm:$0xff]
        %v910 = vld [vmem:[%s234 + $0x1220] sm:$0xff]
        %v911 = vld [vmem:[%s234 + $0x1228] sm:$0xff]
        %v912 = vld [vmem:[%s234 + $0x1230] sm:$0xff]
        %v913 = vld [vmem:[%s234 + $0x1238] sm:$0xff]
        %v914 = vld [vmem:[%s234 + $0x1240] sm:$0xff]
        %v915 = vld [vmem:[%s234 + $0x1248] sm:$0xff]
        %v916 = vld [vmem:[%s234 + $0x1250] sm:$0xff]
        %v917 = vld [vmem:[%s234 + $0x1258] sm:$0xff]
        %v918 = vld [vmem:[%s234 + $0x1260] sm:$0xff]
        %v919 = vld [vmem:[%s234 + $0x1268] sm:$0xff]
        %v920 = vld [vmem:[%s234 + $0x1270] sm:$0xff]
        %v921 = vld [vmem:[%s234 + $0x1278] sm:$0xff]
        %v922 = vld [vmem:[%s234 + $0x1280] sm:$0xff]
        %v923 = vld [vmem:[%s234 + $0x1288] sm:$0xff]
        %v924 = vld [vmem:[%s234 + $0x1290] sm:$0xff]
        %v925 = vld [vmem:[%s234 + $0x1298] sm:$0xff]
        %v926 = vld [vmem:[%s234 + $0x12a0] sm:$0xff]
        %v927 = vld [vmem:[%s234 + $0x12a8] sm:$0xff]
        %v928 = vld [vmem:[%s234 + $0x12b0] sm:$0xff]
        %v929 = vld [vmem:[%s234 + $0x12b8] sm:$0xff]
        %v930 = vld [vmem:[%s234 + $0x12c0] sm:$0xff]
        %v931 = vld [vmem:[%s234 + $0x12c8] sm:$0xff]
        %v932 = vld [vmem:[%s234 + $0x12d0] sm:$0xff]
        %v933 = vld [vmem:[%s234 + $0x12d8] sm:$0xff]
        %v934 = vld [vmem:[%s234 + $0x12e0] sm:$0xff]
        %v935 = vld [vmem:[%s234 + $0x12e8] sm:$0xff]
        %v936 = vld [vmem:[%s234 + $0x12f0] sm:$0xff]
        %v937 = vld [vmem:[%s234 + $0x12f8] sm:$0xff]
        %v938 = vld [vmem:[%s234 + $0x1300] sm:$0xff]
        %v939 = vld [vmem:[%s234 + $0x1308] sm:$0xff]
        %v940 = vld [vmem:[%s234 + $0x1310] sm:$0xff]
        %v941 = vld [vmem:[%s234 + $0x1318] sm:$0xff]
        %v942 = vld [vmem:[%s234 + $0x1320] sm:$0xff]
        %v943 = vld [vmem:[%s234 + $0x1328] sm:$0xff]
        %v944 = vld [vmem:[%s234 + $0x1330] sm:$0xff]
        %v945 = vld [vmem:[%s234 + $0x1338] sm:$0xff]
        %v946 = vld [vmem:[%s234 + $0x1340] sm:$0xff]
        %v947 = vld [vmem:[%s234 + $0x1348] sm:$0xff]
        %v948 = vld [vmem:[%s234 + $0x1350] sm:$0xff]
        %v949 = vld [vmem:[%s234 + $0x1358] sm:$0xff]
        %v950 = vld [vmem:[%s234 + $0x1360] sm:$0xff]
        %v951 = vld [vmem:[%s234 + $0x1368] sm:$0xff]
        %v952 = vld [vmem:[%s234 + $0x1370] sm:$0xff]
        %v953 = vld [vmem:[%s234 + $0x1378] sm:$0xff]
        %v954 = vld [vmem:[%s234 + $0x1380] sm:$0xff]
        %v955 = vld [vmem:[%s234 + $0x1388] sm:$0xff]
        %v956 = vld [vmem:[%s234 + $0x1390] sm:$0xff]
        %v957 = vld [vmem:[%s234 + $0x1398] sm:$0xff]
        %v958 = vld [vmem:[%s234 + $0x13a0] sm:$0xff]
        %v959 = vld [vmem:[%s234 + $0x13a8] sm:$0xff]
        %v960 = vld [vmem:[%s234 + $0x13b0] sm:$0xff]
        %v961 = vld [vmem:[%s234 + $0x13b8] sm:$0xff]
        %v962 = vld [vmem:[%s234 + $0x13c0] sm:$0xff]
        %v963 = vld [vmem:[%s234 + $0x13c8] sm:$0xff]
        %v964 = vld [vmem:[%s234 + $0x13d0] sm:$0xff]
        %v965 = vld [vmem:[%s234 + $0x13d8] sm:$0xff]
        %v966 = vld [vmem:[%s234 + $0x13e0] sm:$0xff]
        %v967 = vld [vmem:[%s234 + $0x13e8] sm:$0xff]
        %v968 = vld [vmem:[%s234 + $0x13f0] sm:$0xff]
        %v969 = vld [vmem:[%s234 + $0x13f8] sm:$0xff]
        %v970 = vld [vmem:[%s234 + $0x1400] sm:$0xff]
        %v971 = vld [vmem:[%s234 + $0x1408] sm:$0xff]
        %v972 = vld [vmem:[%s234 + $0x1410] sm:$0xff]
        %v973 = vld [vmem:[%s234 + $0x1418] sm:$0xff]
        %v974 = vld [vmem:[%s234 + $0x1420] sm:$0xff]
        %v975 = vld [vmem:[%s234 + $0x1428] sm:$0xff]
        %v976 = vld [vmem:[%s234 + $0x1430] sm:$0xff]
        %v977 = vld [vmem:[%s234 + $0x1438] sm:$0xff]
        %v978 = vld [vmem:[%s234 + $0x1440] sm:$0xff]
        %v979 = vld [vmem:[%s234 + $0x1448] sm:$0xff]
        %v980 = vld [vmem:[%s234 + $0x1450] sm:$0xff]
        %v981 = vld [vmem:[%s234 + $0x1458] sm:$0xff]
        %v982 = vld [vmem:[%s234 + $0x1460] sm:$0xff]
        %v983 = vld [vmem:[%s234 + $0x1468] sm:$0xff]
        %v984 = vld [vmem:[%s234 + $0x1470] sm:$0xff]
        %v985 = vld [vmem:[%s234 + $0x1478] sm:$0xff]
        %v986 = vld [vmem:[%s234 + $0x1480] sm:$0xff]
        %v987 = vld [vmem:[%s234 + $0x1488] sm:$0xff]
        %v988 = vld [vmem:[%s234 + $0x1490] sm:$0xff]
        %v989 = vld [vmem:[%s234 + $0x1498] sm:$0xff]
        %v990 = vld [vmem:[%s234 + $0x14a0] sm:$0xff]
        %v991 = vld [vmem:[%s234 + $0x14a8] sm:$0xff]
        %v992 = vld [vmem:[%s234 + $0x14b0] sm:$0xff]
        %v993 = vld [vmem:[%s234 + $0x14b8] sm:$0xff]
        %v994 = vld [vmem:[%s234 + $0x14c0] sm:$0xff]
        %v995 = vld [vmem:[%s234 + $0x14c8] sm:$0xff]
        %v996 = vld [vmem:[%s234 + $0x14d0] sm:$0xff]
        %v997 = vld [vmem:[%s234 + $0x14d8] sm:$0xff]
        %v998 = vld [vmem:[%s234 + $0x14e0] sm:$0xff]
        %v999 = vld [vmem:[%s234 + $0x14e8] sm:$0xff]
        %v1000 = vld [vmem:[%s234 + $0x14f0] sm:$0xff]
        %v1001 = vld [vmem:[%s234 + $0x14f8] sm:$0xff]
        %v1002 = vld [vmem:[%s234 + $0x1500] sm:$0xff]
        %v1003 = vld [vmem:[%s234 + $0x1508] sm:$0xff]
        %v1004 = vld [vmem:[%s234 + $0x1510] sm:$0xff]
        %v1005 = vld [vmem:[%s234 + $0x1518] sm:$0xff]
        %v1006 = vld [vmem:[%s234 + $0x1520] sm:$0xff]
        %v1007 = vld [vmem:[%s234 + $0x1528] sm:$0xff]
        %v1008 = vld [vmem:[%s234 + $0x1530] sm:$0xff]
        %v1009 = vld [vmem:[%s234 + $0x1538] sm:$0xff]
        %v1010 = vld [vmem:[%s234 + $0x1540] sm:$0xff]
        %v1011 = vld [vmem:[%s234 + $0x1548] sm:$0xff]
        %v1012 = vld [vmem:[%s234 + $0x1550] sm:$0xff]
        %v1013 = vld [vmem:[%s234 + $0x1558] sm:$0xff]
        %v1014 = vld [vmem:[%s234 + $0x1560] sm:$0xff]
        %v1015 = vld [vmem:[%s234 + $0x1568] sm:$0xff]
        %v1016 = vld [vmem:[%s234 + $0x1570] sm:$0xff]
        %v1017 = vld [vmem:[%s234 + $0x1578] sm:$0xff]
        %v1018 = vld [vmem:[%s234 + $0x1580] sm:$0xff]
        %v1019 = vld [vmem:[%s234 + $0x1588] sm:$0xff]
        %v1020 = vld [vmem:[%s234 + $0x1590] sm:$0xff]
        %v1021 = vld [vmem:[%s234 + $0x1598] sm:$0xff]
        %v1022 = vld [vmem:[%s234 + $0x15a0] sm:$0xff]
        %v1023 = vld [vmem:[%s234 + $0x15a8] sm:$0xff]
        %v1024 = vld [vmem:[%s234 + $0x15b0] sm:$0xff]
        %v1025 = vld [vmem:[%s234 + $0x15b8] sm:$0xff]
        %v1026 = vld [vmem:[%s234 + $0x15c0] sm:$0xff]
        %v1027 = vld [vmem:[%s234 + $0x15c8] sm:$0xff]
        %v1028 = vld [vmem:[%s234 + $0x15d0] sm:$0xff]
        %v1029 = vld [vmem:[%s234 + $0x15d8] sm:$0xff]
        %v1030 = vld [vmem:[%s234 + $0x15e0] sm:$0xff]
        %v1031 = vld [vmem:[%s234 + $0x15e8] sm:$0xff]
        %v1032 = vld [vmem:[%s234 + $0x15f0] sm:$0xff]
        %v1033 = vld [vmem:[%s234 + $0x15f8] sm:$0xff]
        %v1034 = vld [vmem:[%s234 + $0x1600] sm:$0xff]
        %v1035 = vld [vmem:[%s234 + $0x1608] sm:$0xff]
        %v1036 = vld [vmem:[%s234 + $0x1610] sm:$0xff]
        %v1037 = vld [vmem:[%s234 + $0x1618] sm:$0xff]
        %v1038 = vld [vmem:[%s234 + $0x1620] sm:$0xff]
        %v1039 = vld [vmem:[%s234 + $0x1628] sm:$0xff]
        %v1040 = vld [vmem:[%s234 + $0x1630] sm:$0xff]
        %v1041 = vld [vmem:[%s234 + $0x1638] sm:$0xff]
        %v1042 = vld [vmem:[%s234 + $0x1640] sm:$0xff]
        %v1043 = vld [vmem:[%s234 + $0x1648] sm:$0xff]
        %v1044 = vld [vmem:[%s234 + $0x1650] sm:$0xff]
        %v1045 = vld [vmem:[%s234 + $0x1658] sm:$0xff]
        %v1046 = vld [vmem:[%s234 + $0x1660] sm:$0xff]
        %v1047 = vld [vmem:[%s234 + $0x1668] sm:$0xff]
        %v1048 = vld [vmem:[%s234 + $0x1670] sm:$0xff]
        %v1049 = vld [vmem:[%s234 + $0x1678] sm:$0xff]
        %v1050 = vld [vmem:[%s234 + $0x1680] sm:$0xff]
        %v1051 = vld [vmem:[%s234 + $0x1688] sm:$0xff]
        %v1052 = vld [vmem:[%s234 + $0x1690] sm:$0xff]
        %v1053 = vld [vmem:[%s234 + $0x1698] sm:$0xff]
        %v1054 = vld [vmem:[%s234 + $0x16a0] sm:$0xff]
        %v1055 = vld [vmem:[%s234 + $0x16a8] sm:$0xff]
        %v1056 = vld [vmem:[%s234 + $0x16b0] sm:$0xff]
        %v1057 = vld [vmem:[%s234 + $0x16b8] sm:$0xff]
        %v1058 = vld [vmem:[%s234 + $0x16c0] sm:$0xff]
        %v1059 = vld [vmem:[%s234 + $0x16c8] sm:$0xff]
        %v1060 = vld [vmem:[%s234 + $0x16d0] sm:$0xff]
        %v1061 = vld [vmem:[%s234 + $0x16d8] sm:$0xff]
        %v1062 = vld [vmem:[%s234 + $0x16e0] sm:$0xff]
        %v1063 = vld [vmem:[%s234 + $0x16e8] sm:$0xff]
        %v1064 = vld [vmem:[%s234 + $0x16f0] sm:$0xff]
        %v1065 = vld [vmem:[%s234 + $0x16f8] sm:$0xff]
        %v1066 = vld [vmem:[%s234 + $0x1700] sm:$0xff]
        %v1067 = vld [vmem:[%s234 + $0x1708] sm:$0xff]
        %v1068 = vld [vmem:[%s234 + $0x1710] sm:$0xff]
        %v1069 = vld [vmem:[%s234 + $0x1718] sm:$0xff]
        %v1070 = vld [vmem:[%s234 + $0x1720] sm:$0xff]
        %v1071 = vld [vmem:[%s234 + $0x1728] sm:$0xff]
        %v1072 = vld [vmem:[%s234 + $0x1730] sm:$0xff]
        %v1073 = vld [vmem:[%s234 + $0x1738] sm:$0xff]
        %v1074 = vld [vmem:[%s234 + $0x1740] sm:$0xff]
        %v1075 = vld [vmem:[%s234 + $0x1748] sm:$0xff]
        %v1076 = vld [vmem:[%s234 + $0x1750] sm:$0xff]
        %v1077 = vld [vmem:[%s234 + $0x1758] sm:$0xff]
        %v1078 = vld [vmem:[%s234 + $0x1760] sm:$0xff]
        %v1079 = vld [vmem:[%s234 + $0x1768] sm:$0xff]
        %v1080 = vld [vmem:[%s234 + $0x1770] sm:$0xff]
        %v1081 = vld [vmem:[%s234 + $0x1778] sm:$0xff]
        %v1082 = vld [vmem:[%s234 + $0x1780] sm:$0xff]
        %v1083 = vld [vmem:[%s234 + $0x1788] sm:$0xff]
        %v1084 = vld [vmem:[%s234 + $0x1790] sm:$0xff]
        %v1085 = vld [vmem:[%s234 + $0x1798] sm:$0xff]
        %v1086 = vld [vmem:[%s234 + $0x17a0] sm:$0xff]
        %v1087 = vld [vmem:[%s234 + $0x17a8] sm:$0xff]
        %v1088 = vld [vmem:[%s234 + $0x17b0] sm:$0xff]
        %v1089 = vld [vmem:[%s234 + $0x17b8] sm:$0xff]
        %v1090 = vld [vmem:[%s234 + $0x17c0] sm:$0xff]
        %v1091 = vld [vmem:[%s234 + $0x17c8] sm:$0xff]
        %v1092 = vld [vmem:[%s234 + $0x17d0] sm:$0xff]
        %v1093 = vld [vmem:[%s234 + $0x17d8] sm:$0xff]
        %v1094 = vld [vmem:[%s234 + $0x17e0] sm:$0xff]
        %v1095 = vld [vmem:[%s234 + $0x17e8] sm:$0xff]
        %v1096 = vld [vmem:[%s234 + $0x17f0] sm:$0xff]
        %v1097 = vld [vmem:[%s234 + $0x17f8] sm:$0xff]
        %v1098 = vld [vmem:[%s234 + $0x1800] sm:$0xff]
        %v1099 = vld [vmem:[%s234 + $0x1808] sm:$0xff]
        %v1100 = vld [vmem:[%s234 + $0x1810] sm:$0xff]
        %v1101 = vld [vmem:[%s234 + $0x1818] sm:$0xff]
        %v1102 = vld [vmem:[%s234 + $0x1820] sm:$0xff]
        %v1103 = vld [vmem:[%s234 + $0x1828] sm:$0xff]
        %v1104 = vld [vmem:[%s234 + $0x1830] sm:$0xff]
        %v1105 = vld [vmem:[%s234 + $0x1838] sm:$0xff]
        %v1106 = vld [vmem:[%s234 + $0x1840] sm:$0xff]
        %v1107 = vld [vmem:[%s234 + $0x1848] sm:$0xff]
        %v1108 = vld [vmem:[%s234 + $0x1850] sm:$0xff]
        %v1109 = vld [vmem:[%s234 + $0x1858] sm:$0xff]
        %v1110 = vld [vmem:[%s234 + $0x1860] sm:$0xff]
        %v1111 = vld [vmem:[%s234 + $0x1868] sm:$0xff]
        %v1112 = vld [vmem:[%s234 + $0x1870] sm:$0xff]
        %v1113 = vld [vmem:[%s234 + $0x1878] sm:$0xff]
        %v1114 = vld [vmem:[%s234 + $0x1880] sm:$0xff]
        %v1115 = vld [vmem:[%s234 + $0x1888] sm:$0xff]
        %v1116 = vld [vmem:[%s234 + $0x1890] sm:$0xff]
        %v1117 = vld [vmem:[%s234 + $0x1898] sm:$0xff]
        %v1118 = vld [vmem:[%s234 + $0x18a0] sm:$0xff]
        %v1119 = vld [vmem:[%s234 + $0x18a8] sm:$0xff]
        %v1120 = vld [vmem:[%s234 + $0x18b0] sm:$0xff]
        %v1121 = vld [vmem:[%s234 + $0x18b8] sm:$0xff]
        %v1122 = vld [vmem:[%s234 + $0x18c0] sm:$0xff]
        %v1123 = vld [vmem:[%s234 + $0x18c8] sm:$0xff]
        %v1124 = vld [vmem:[%s234 + $0x18d0] sm:$0xff]
        %v1125 = vld [vmem:[%s234 + $0x18d8] sm:$0xff]
        %v1126 = vld [vmem:[%s234 + $0x18e0] sm:$0xff]
        %v1127 = vld [vmem:[%s234 + $0x18e8] sm:$0xff]
        %v1128 = vld [vmem:[%s234 + $0x18f0] sm:$0xff]
        %v1129 = vld [vmem:[%s234 + $0x18f8] sm:$0xff]
        %v1130 = vld [vmem:[%s234 + $0x1900] sm:$0xff]
        %v1131 = vld [vmem:[%s234 + $0x1908] sm:$0xff]
        %v1132 = vld [vmem:[%s234 + $0x1910] sm:$0xff]
        %v1133 = vld [vmem:[%s234 + $0x1918] sm:$0xff]
        %v1134 = vld [vmem:[%s234 + $0x1920] sm:$0xff]
        %v1135 = vld [vmem:[%s234 + $0x1928] sm:$0xff]
        %v1136 = vld [vmem:[%s234 + $0x1930] sm:$0xff]
        %v1137 = vld [vmem:[%s234 + $0x1938] sm:$0xff]
        %v1138 = vld [vmem:[%s234 + $0x1940] sm:$0xff]
        %v1139 = vld [vmem:[%s234 + $0x1948] sm:$0xff]
        %v1140 = vld [vmem:[%s234 + $0x1950] sm:$0xff]
        %v1141 = vld [vmem:[%s234 + $0x1958] sm:$0xff]
        %v1142 = vld [vmem:[%s234 + $0x1960] sm:$0xff]
        %v1143 = vld [vmem:[%s234 + $0x1968] sm:$0xff]
        %v1144 = vld [vmem:[%s234 + $0x1970] sm:$0xff]
        %v1145 = vld [vmem:[%s234 + $0x1978] sm:$0xff]
        %v1146 = vld [vmem:[%s234 + $0x1980] sm:$0xff]
        %v1147 = vld [vmem:[%s234 + $0x1988] sm:$0xff]
        %v1148 = vld [vmem:[%s234 + $0x1990] sm:$0xff]
        %v1149 = vld [vmem:[%s234 + $0x1998] sm:$0xff]
        %v1150 = vld [vmem:[%s234 + $0x19a0] sm:$0xff]
        %v1151 = vld [vmem:[%s234 + $0x19a8] sm:$0xff]
        %v1152 = vld [vmem:[%s234 + $0x19b0] sm:$0xff]
        %v1153 = vld [vmem:[%s234 + $0x19b8] sm:$0xff]
        %v1154 = vld [vmem:[%s234 + $0x19c0] sm:$0xff]
        %v1155 = vld [vmem:[%s234 + $0x19c8] sm:$0xff]
        %v1156 = vld [vmem:[%s234 + $0x19d0] sm:$0xff]
        %v1157 = vld [vmem:[%s234 + $0x19d8] sm:$0xff]
        %v1158 = vld [vmem:[%s234 + $0x19e0] sm:$0xff]
        %v1159 = vld [vmem:[%s234 + $0x19e8] sm:$0xff]
        %v1160 = vld [vmem:[%s234 + $0x19f0] sm:$0xff]
        %v1161 = vld [vmem:[%s234 + $0x19f8] sm:$0xff]
        %v1162 = vld [vmem:[%s234 + $0x1a00] sm:$0xff]
        %v1163 = vld [vmem:[%s234 + $0x1a08] sm:$0xff]
        %v1164 = vld [vmem:[%s234 + $0x1a10] sm:$0xff]
        %v1165 = vld [vmem:[%s234 + $0x1a18] sm:$0xff]
        %v1166 = vld [vmem:[%s234 + $0x1a20] sm:$0xff]
        %v1167 = vld [vmem:[%s234 + $0x1a28] sm:$0xff]
        %v1168 = vld [vmem:[%s234 + $0x1a30] sm:$0xff]
        %v1169 = vld [vmem:[%s234 + $0x1a38] sm:$0xff]
        %v1170 = vld [vmem:[%s234 + $0x1a40] sm:$0xff]
        %v1171 = vld [vmem:[%s234 + $0x1a48] sm:$0xff]
        %v1172 = vld [vmem:[%s234 + $0x1a50] sm:$0xff]
        %v1173 = vld [vmem:[%s234 + $0x1a58] sm:$0xff]
        %v1174 = vld [vmem:[%s234 + $0x1a60] sm:$0xff]
        %v1175 = vld [vmem:[%s234 + $0x1a68] sm:$0xff]
        %v1176 = vld [vmem:[%s234 + $0x1a70] sm:$0xff]
        %v1177 = vld [vmem:[%s234 + $0x1a78] sm:$0xff]
        %v1178 = vld [vmem:[%s234 + $0x1a80] sm:$0xff]
        %v1179 = vld [vmem:[%s234 + $0x1a88] sm:$0xff]
        %v1180 = vld [vmem:[%s234 + $0x1a90] sm:$0xff]
        %v1181 = vld [vmem:[%s234 + $0x1a98] sm:$0xff]
        %v1182 = vld [vmem:[%s234 + $0x1aa0] sm:$0xff]
        %v1183 = vld [vmem:[%s234 + $0x1aa8] sm:$0xff]
        %v1184 = vld [vmem:[%s234 + $0x1ab0] sm:$0xff]
        %v1185 = vld [vmem:[%s234 + $0x1ab8] sm:$0xff]
        %v1186 = vld [vmem:[%s234 + $0x1ac0] sm:$0xff]
        %v1187 = vld [vmem:[%s234 + $0x1ac8] sm:$0xff]
        %v1188 = vld [vmem:[%s234 + $0x1ad0] sm:$0xff]
        %v1189 = vld [vmem:[%s234 + $0x1ad8] sm:$0xff]
        %v1190 = vld [vmem:[%s234 + $0x1ae0] sm:$0xff]
        %v1191 = vld [vmem:[%s234 + $0x1ae8] sm:$0xff]
        %v1192 = vld [vmem:[%s234 + $0x1af0] sm:$0xff]
        %v1193 = vld [vmem:[%s234 + $0x1af8] sm:$0xff]
        %v1194 = vld [vmem:[%s234 + $0x1b00] sm:$0xff]
        %v1195 = vld [vmem:[%s234 + $0x1b08] sm:$0xff]
        %v1196 = vld [vmem:[%s234 + $0x1b10] sm:$0xff]
        %v1197 = vld [vmem:[%s234 + $0x1b18] sm:$0xff]
        %v1198 = vld [vmem:[%s234 + $0x1b20] sm:$0xff]
        %v1199 = vld [vmem:[%s234 + $0x1b28] sm:$0xff]
        %v1200 = vld [vmem:[%s234 + $0x1b30] sm:$0xff]
        %v1201 = vld [vmem:[%s234 + $0x1b38] sm:$0xff]
        %v1202 = vld [vmem:[%s234 + $0x1b40] sm:$0xff]
        %v1203 = vld [vmem:[%s234 + $0x1b48] sm:$0xff]
        %v1204 = vld [vmem:[%s234 + $0x1b50] sm:$0xff]
        %v1205 = vld [vmem:[%s234 + $0x1b58] sm:$0xff]
        %v1206 = vld [vmem:[%s234 + $0x1b60] sm:$0xff]
        %v1207 = vld [vmem:[%s234 + $0x1b68] sm:$0xff]
        %v1208 = vld [vmem:[%s234 + $0x1b70] sm:$0xff]
        %v1209 = vld [vmem:[%s234 + $0x1b78] sm:$0xff]
        %v1210 = vld [vmem:[%s234 + $0x1b80] sm:$0xff]
        %v1211 = vld [vmem:[%s234 + $0x1b88] sm:$0xff]
        %v1212 = vld [vmem:[%s234 + $0x1b90] sm:$0xff]
        %v1213 = vld [vmem:[%s234 + $0x1b98] sm:$0xff]
        %v1214 = vld [vmem:[%s234 + $0x1ba0] sm:$0xff]
        %v1215 = vld [vmem:[%s234 + $0x1ba8] sm:$0xff]
        %v1216 = vld [vmem:[%s234 + $0x1bb0] sm:$0xff]
        %v1217 = vld [vmem:[%s234 + $0x1bb8] sm:$0xff]
        %v1218 = vld [vmem:[%s234 + $0x1bc0] sm:$0xff]
        %v1219 = vld [vmem:[%s234 + $0x1bc8] sm:$0xff]
        %v1220 = vld [vmem:[%s234 + $0x1bd0] sm:$0xff]
        %v1221 = vld [vmem:[%s234 + $0x1bd8] sm:$0xff]
        %v1222 = vld [vmem:[%s234 + $0x1be0] sm:$0xff]
        %v1223 = vld [vmem:[%s234 + $0x1be8] sm:$0xff]
        %v1224 = vld [vmem:[%s234 + $0x1bf0] sm:$0xff]
        %v1225 = vld [vmem:[%s234 + $0x1bf8] sm:$0xff]
        %v1226 = vld [vmem:[%s234 + $0x1c00] sm:$0xff]
        %v1227 = vld [vmem:[%s234 + $0x1c08] sm:$0xff]
        %v1228 = vld [vmem:[%s234 + $0x1c10] sm:$0xff]
        %v1229 = vld [vmem:[%s234 + $0x1c18] sm:$0xff]
        %v1230 = vld [vmem:[%s234 + $0x1c20] sm:$0xff]
        %v1231 = vld [vmem:[%s234 + $0x1c28] sm:$0xff]
        %v1232 = vld [vmem:[%s234 + $0x1c30] sm:$0xff]
        %v1233 = vld [vmem:[%s234 + $0x1c38] sm:$0xff]
        %v1234 = vld [vmem:[%s234 + $0x1c40] sm:$0xff]
        %v1235 = vld [vmem:[%s234 + $0x1c48] sm:$0xff]
        %v1236 = vld [vmem:[%s234 + $0x1c50] sm:$0xff]
        %v1237 = vld [vmem:[%s234 + $0x1c58] sm:$0xff]
        %v1238 = vld [vmem:[%s234 + $0x1c60] sm:$0xff]
        %v1239 = vld [vmem:[%s234 + $0x1c68] sm:$0xff]
        %v1240 = vld [vmem:[%s234 + $0x1c70] sm:$0xff]
        %v1241 = vld [vmem:[%s234 + $0x1c78] sm:$0xff]
        %v1242 = vld [vmem:[%s234 + $0x1c80] sm:$0xff]
        %v1243 = vld [vmem:[%s234 + $0x1c88] sm:$0xff]
        %v1244 = vld [vmem:[%s234 + $0x1c90] sm:$0xff]
        %v1245 = vld [vmem:[%s234 + $0x1c98] sm:$0xff]
        %v1246 = vld [vmem:[%s234 + $0x1ca0] sm:$0xff]
        %v1247 = vld [vmem:[%s234 + $0x1ca8] sm:$0xff]
        %v1248 = vld [vmem:[%s234 + $0x1cb0] sm:$0xff]
        %v1249 = vld [vmem:[%s234 + $0x1cb8] sm:$0xff]
        %v1250 = vld [vmem:[%s234 + $0x1cc0] sm:$0xff]
        %v1251 = vld [vmem:[%s234 + $0x1cc8] sm:$0xff]
        %v1252 = vld [vmem:[%s234 + $0x1cd0] sm:$0xff]
        %v1253 = vld [vmem:[%s234 + $0x1cd8] sm:$0xff]
        %v1254 = vld [vmem:[%s234 + $0x1ce0] sm:$0xff]
        %v1255 = vld [vmem:[%s234 + $0x1ce8] sm:$0xff]
        %v1256 = vld [vmem:[%s234 + $0x1cf0] sm:$0xff]
        %v1257 = vld [vmem:[%s234 + $0x1cf8] sm:$0xff]
        %v1258 = vld [vmem:[%s234 + $0x1d00] sm:$0xff]
        %v1259 = vld [vmem:[%s234 + $0x1d08] sm:$0xff]
        %v1260 = vld [vmem:[%s234 + $0x1d10] sm:$0xff]
        %v1261 = vld [vmem:[%s234 + $0x1d18] sm:$0xff]
        %v1262 = vld [vmem:[%s234 + $0x1d20] sm:$0xff]
        %v1263 = vld [vmem:[%s234 + $0x1d28] sm:$0xff]
        %v1264 = vld [vmem:[%s234 + $0x1d30] sm:$0xff]
        %v1265 = vld [vmem:[%s234 + $0x1d38] sm:$0xff]
        %v1266 = vld [vmem:[%s234 + $0x1d40] sm:$0xff]
        %v1267 = vld [vmem:[%s234 + $0x1d48] sm:$0xff]
        %v1268 = vld [vmem:[%s234 + $0x1d50] sm:$0xff]
        %v1269 = vld [vmem:[%s234 + $0x1d58] sm:$0xff]
        %v1270 = vld [vmem:[%s234 + $0x1d60] sm:$0xff]
        %v1271 = vld [vmem:[%s234 + $0x1d68] sm:$0xff]
        %v1272 = vld [vmem:[%s234 + $0x1d70] sm:$0xff]
        %v1273 = vld [vmem:[%s234 + $0x1d78] sm:$0xff]
        %v1274 = vld [vmem:[%s234 + $0x1d80] sm:$0xff]
        %v1275 = vld [vmem:[%s234 + $0x1d88] sm:$0xff]
        %v1276 = vld [vmem:[%s234 + $0x1d90] sm:$0xff]
        %v1277 = vld [vmem:[%s234 + $0x1d98] sm:$0xff]
        %v1278 = vld [vmem:[%s234 + $0x1da0] sm:$0xff]
        %v1279 = vld [vmem:[%s234 + $0x1da8] sm:$0xff]
        %v1280 = vld [vmem:[%s234 + $0x1db0] sm:$0xff]
        %v1281 = vld [vmem:[%s234 + $0x1db8] sm:$0xff]
        %v1282 = vld [vmem:[%s234 + $0x1dc0] sm:$0xff]
        %v1283 = vld [vmem:[%s234 + $0x1dc8] sm:$0xff]
        %v1284 = vld [vmem:[%s234 + $0x1dd0] sm:$0xff]
        %v1285 = vld [vmem:[%s234 + $0x1dd8] sm:$0xff]
        %v1286 = vld [vmem:[%s234 + $0x1de0] sm:$0xff]
        %v1287 = vld [vmem:[%s234 + $0x1de8] sm:$0xff]
        %v1288 = vld [vmem:[%s234 + $0x1df0] sm:$0xff]
        %v1289 = vld [vmem:[%s234 + $0x1df8] sm:$0xff]
        %v1290 = vld [vmem:[%s234 + $0x1e00] sm:$0xff]
        %v1291 = vld [vmem:[%s234 + $0x1e08] sm:$0xff]
        %v1292 = vld [vmem:[%s234 + $0x1e10] sm:$0xff]
        %v1293 = vld [vmem:[%s234 + $0x1e18] sm:$0xff]
        %v1294 = vld [vmem:[%s234 + $0x1e20] sm:$0xff]
        %v1295 = vld [vmem:[%s234 + $0x1e28] sm:$0xff]
        %v1296 = vld [vmem:[%s234 + $0x1e30] sm:$0xff]
        %v1297 = vld [vmem:[%s234 + $0x1e38] sm:$0xff]
        %v1298 = vld [vmem:[%s234 + $0x1e40] sm:$0xff]
        %v1299 = vld [vmem:[%s234 + $0x1e48] sm:$0xff]
        %v1300 = vld [vmem:[%s234 + $0x1e50] sm:$0xff]
        %v1301 = vld [vmem:[%s234 + $0x1e58] sm:$0xff]
        %v1302 = vld [vmem:[%s234 + $0x1e60] sm:$0xff]
        %v1303 = vld [vmem:[%s234 + $0x1e68] sm:$0xff]
        %v1304 = vld [vmem:[%s234 + $0x1e70] sm:$0xff]
        %v1305 = vld [vmem:[%s234 + $0x1e78] sm:$0xff]
        %v1306 = vld [vmem:[%s234 + $0x1e80] sm:$0xff]
        %v1307 = vld [vmem:[%s234 + $0x1e88] sm:$0xff]
        %v1308 = vld [vmem:[%s234 + $0x1e90] sm:$0xff]
        %v1309 = vld [vmem:[%s234 + $0x1e98] sm:$0xff]
        %v1310 = vld [vmem:[%s234 + $0x1ea0] sm:$0xff]
        %v1311 = vld [vmem:[%s234 + $0x1ea8] sm:$0xff]
        %v1312 = vld [vmem:[%s234 + $0x1eb0] sm:$0xff]
        %v1313 = vld [vmem:[%s234 + $0x1eb8] sm:$0xff]
        %v1314 = vld [vmem:[%s234 + $0x1ec0] sm:$0xff]
        %v1315 = vld [vmem:[%s234 + $0x1ec8] sm:$0xff]
        %v1316 = vld [vmem:[%s234 + $0x1ed0] sm:$0xff]
        %v1317 = vld [vmem:[%s234 + $0x1ed8] sm:$0xff]
        %v1318 = vld [vmem:[%s234 + $0x1ee0] sm:$0xff]
        %v1319 = vld [vmem:[%s234 + $0x1ee8] sm:$0xff]
        %v1320 = vld [vmem:[%s234 + $0x1ef0] sm:$0xff]
        %v1321 = vld [vmem:[%s234 + $0x1ef8] sm:$0xff]
        %v1322 = vld [vmem:[%s234 + $0x1f00] sm:$0xff]
        %v1323 = vld [vmem:[%s234 + $0x1f08] sm:$0xff]
        %v1324 = vld [vmem:[%s234 + $0x1f10] sm:$0xff]
        %v1325 = vld [vmem:[%s234 + $0x1f18] sm:$0xff]
        %v1326 = vld [vmem:[%s234 + $0x1f20] sm:$0xff]
        %v1327 = vld [vmem:[%s234 + $0x1f28] sm:$0xff]
        %v1328 = vld [vmem:[%s234 + $0x1f30] sm:$0xff]
        %v1329 = vld [vmem:[%s234 + $0x1f38] sm:$0xff]
        %v1330 = vld [vmem:[%s234 + $0x1f40] sm:$0xff]
        %v1331 = vld [vmem:[%s234 + $0x1f48] sm:$0xff]
        %v1332 = vld [vmem:[%s234 + $0x1f50] sm:$0xff]
        %v1333 = vld [vmem:[%s234 + $0x1f58] sm:$0xff]
        %v1334 = vld [vmem:[%s234 + $0x1f60] sm:$0xff]
        %v1335 = vld [vmem:[%s234 + $0x1f68] sm:$0xff]
        %v1336 = vld [vmem:[%s234 + $0x1f70] sm:$0xff]
        %v1337 = vld [vmem:[%s234 + $0x1f78] sm:$0xff]
        %v1338 = vld [vmem:[%s234 + $0x1f80] sm:$0xff]
        %v1339 = vld [vmem:[%s234 + $0x1f88] sm:$0xff]
        %v1340 = vld [vmem:[%s234 + $0x1f90] sm:$0xff]
        %v1341 = vld [vmem:[%s234 + $0x1f98] sm:$0xff]
        %v1342 = vld [vmem:[%s234 + $0x1fa0] sm:$0xff]
        %v1343 = vld [vmem:[%s234 + $0x1fa8] sm:$0xff]
        %v1344 = vld [vmem:[%s234 + $0x1fb0] sm:$0xff]
        %v1345 = vld [vmem:[%s234 + $0x1fb8] sm:$0xff]
        %v1346 = vld [vmem:[%s234 + $0x1fc0] sm:$0xff]
        %v1347 = vld [vmem:[%s234 + $0x1fc8] sm:$0xff]
        %v1348 = vld [vmem:[%s234 + $0x1fd0] sm:$0xff]
        %v1349 = vld [vmem:[%s234 + $0x1fd8] sm:$0xff]
        %v1350 = vld [vmem:[%s234 + $0x1fe0] sm:$0xff]
        %v1351 = vld [vmem:[%s234 + $0x1fe8] sm:$0xff]
        %v1352 = vld [vmem:[%s234 + $0x1ff0] sm:$0xff]
        %v1353 = vld [vmem:[%s234 + $0x1ff8] sm:$0xff]
        %v1354 = vld [vmem:[%s234 + $0x2000] sm:$0xff]
        %v1355 = vld [vmem:[%s234 + $0x2008] sm:$0xff]
        %v1356 = vld [vmem:[%s234 + $0x2010] sm:$0xff]
        %v1357 = vld [vmem:[%s234 + $0x2018] sm:$0xff]
        %v1358 = vld [vmem:[%s234 + $0x2020] sm:$0xff]
        %v1359 = vld [vmem:[%s234 + $0x2028] sm:$0xff]
        %v1360 = vld [vmem:[%s234 + $0x2030] sm:$0xff]
        %v1361 = vld [vmem:[%s234 + $0x2038] sm:$0xff]
        %v1362 = vld [vmem:[%s234 + $0x2040] sm:$0xff]
        %v1363 = vld [vmem:[%s234 + $0x2048] sm:$0xff]
        %v1364 = vld [vmem:[%s234 + $0x2050] sm:$0xff]
        %v1365 = vld [vmem:[%s234 + $0x2058] sm:$0xff]
        %v1366 = vld [vmem:[%s234 + $0x2060] sm:$0xff]
        %v1367 = vld [vmem:[%s234 + $0x2068] sm:$0xff]
        %v1368 = vld [vmem:[%s234 + $0x2070] sm:$0xff]
        %v1369 = vld [vmem:[%s234 + $0x2078] sm:$0xff]
        %v1370 = vld [vmem:[%s234 + $0x2080] sm:$0xff]
        %v1371 = vld [vmem:[%s234 + $0x2088] sm:$0xff]
        %v1372 = vld [vmem:[%s234 + $0x2090] sm:$0xff]
        %v1373 = vld [vmem:[%s234 + $0x2098] sm:$0xff]
        %v1374 = vld [vmem:[%s234 + $0x20a0] sm:$0xff]
        %v1375 = vld [vmem:[%s234 + $0x20a8] sm:$0xff]
        %v1376 = vld [vmem:[%s234 + $0x20b0] sm:$0xff]
        %v1377 = vld [vmem:[%s234 + $0x20b8] sm:$0xff]
        %v1378 = vld [vmem:[%s234 + $0x20c0] sm:$0xff]
        %v1379 = vld [vmem:[%s234 + $0x20c8] sm:$0xff]
        %v1380 = vld [vmem:[%s234 + $0x20d0] sm:$0xff]
        %v1381 = vld [vmem:[%s234 + $0x20d8] sm:$0xff]
        %v1382 = vld [vmem:[%s234 + $0x20e0] sm:$0xff]
        %v1383 = vld [vmem:[%s234 + $0x20e8] sm:$0xff]
        %v1384 = vld [vmem:[%s234 + $0x20f0] sm:$0xff]
        %v1385 = vld [vmem:[%s234 + $0x20f8] sm:$0xff]
        %v1386 = vld [vmem:[%s234 + $0x2100] sm:$0xff]
        %v1387 = vld [vmem:[%s234 + $0x2108] sm:$0xff]
        %v1388 = vld [vmem:[%s234 + $0x2110] sm:$0xff]
        %v1389 = vld [vmem:[%s234 + $0x2118] sm:$0xff]
        %v1390 = vld [vmem:[%s234 + $0x2120] sm:$0xff]
        %v1391 = vld [vmem:[%s234 + $0x2128] sm:$0xff]
        %v1392 = vld [vmem:[%s234 + $0x2130] sm:$0xff]
        %v1393 = vld [vmem:[%s234 + $0x2138] sm:$0xff]
        %v1394 = vld [vmem:[%s234 + $0x2140] sm:$0xff]
        %v1395 = vld [vmem:[%s234 + $0x2148] sm:$0xff]
        %v1396 = vld [vmem:[%s234 + $0x2150] sm:$0xff]
        %v1397 = vld [vmem:[%s234 + $0x2158] sm:$0xff]
        %v1398 = vld [vmem:[%s234 + $0x2160] sm:$0xff]
        %v1399 = vld [vmem:[%s234 + $0x2168] sm:$0xff]
        %v1400 = vld [vmem:[%s234 + $0x2170] sm:$0xff]
        %v1401 = vld [vmem:[%s234 + $0x2178] sm:$0xff]
        %v1402 = vld [vmem:[%s234 + $0x2180] sm:$0xff]
        %v1403 = vld [vmem:[%s234 + $0x2188] sm:$0xff]
        %v1404 = vld [vmem:[%s234 + $0x2190] sm:$0xff]
        %v1405 = vld [vmem:[%s234 + $0x2198] sm:$0xff]
        %v1406 = vld [vmem:[%s234 + $0x21a0] sm:$0xff]
        %v1407 = vld [vmem:[%s234 + $0x21a8] sm:$0xff]
        %v1408 = vld [vmem:[%s234 + $0x21b0] sm:$0xff]
        %v1409 = vld [vmem:[%s234 + $0x21b8] sm:$0xff]
        %v1410 = vld [vmem:[%s234 + $0x21c0] sm:$0xff]
        %v1411 = vld [vmem:[%s234 + $0x21c8] sm:$0xff]
        %v1412 = vld [vmem:[%s234 + $0x21d0] sm:$0xff]
        %v1413 = vld [vmem:[%s234 + $0x21d8] sm:$0xff]
        %v1414 = vld [vmem:[%s234 + $0x21e0] sm:$0xff]
        %v1415 = vld [vmem:[%s234 + $0x21e8] sm:$0xff]
        %v1416 = vld [vmem:[%s234 + $0x21f0] sm:$0xff]
        %v1417 = vld [vmem:[%s234 + $0x21f8] sm:$0xff]
        %v1418 = vld [vmem:[%s234 + $0x2200] sm:$0xff]
        %v1419 = vld [vmem:[%s234 + $0x2208] sm:$0xff]
        %v1420 = vld [vmem:[%s234 + $0x2210] sm:$0xff]
        %v1421 = vld [vmem:[%s234 + $0x2218] sm:$0xff]
        %v1422 = vld [vmem:[%s234 + $0x2220] sm:$0xff]
        %v1423 = vld [vmem:[%s234 + $0x2228] sm:$0xff]
        %v1424 = vld [vmem:[%s234 + $0x2230] sm:$0xff]
        %v1425 = vld [vmem:[%s234 + $0x2238] sm:$0xff]
        %v1426 = vld [vmem:[%s234 + $0x2240] sm:$0xff]
        %v1427 = vld [vmem:[%s234 + $0x2248] sm:$0xff]
        %v1428 = vld [vmem:[%s234 + $0x2250] sm:$0xff]
        %v1429 = vld [vmem:[%s234 + $0x2258] sm:$0xff]
        %v1430 = vld [vmem:[%s234 + $0x2260] sm:$0xff]
        %v1431 = vld [vmem:[%s234 + $0x2268] sm:$0xff]
        %v1432 = vld [vmem:[%s234 + $0x2270] sm:$0xff]
        %v1433 = vld [vmem:[%s234 + $0x2278] sm:$0xff]
        %v1434 = vld [vmem:[%s234 + $0x2280] sm:$0xff]
        %v1435 = vld [vmem:[%s234 + $0x2288] sm:$0xff]
        %v1436 = vld [vmem:[%s234 + $0x2290] sm:$0xff]
        %v1437 = vld [vmem:[%s234 + $0x2298] sm:$0xff]
        %v1438 = vld [vmem:[%s234 + $0x22a0] sm:$0xff]
        %v1439 = vld [vmem:[%s234 + $0x22a8] sm:$0xff]
        %v1440 = vld [vmem:[%s234 + $0x22b0] sm:$0xff]
        %v1441 = vld [vmem:[%s234 + $0x22b8] sm:$0xff]
        %v1442 = vld [vmem:[%s234 + $0x22c0] sm:$0xff]
        %v1443 = vld [vmem:[%s234 + $0x22c8] sm:$0xff]
        %v1444 = vld [vmem:[%s234 + $0x22d0] sm:$0xff]
        %v1445 = vld [vmem:[%s234 + $0x22d8] sm:$0xff]
        %v1446 = vld [vmem:[%s234 + $0x22e0] sm:$0xff]
        %v1447 = vld [vmem:[%s234 + $0x22e8] sm:$0xff]
        %v1448 = vld [vmem:[%s234 + $0x22f0] sm:$0xff]
        %v1449 = vld [vmem:[%s234 + $0x22f8] sm:$0xff]
        %v1450 = vld [vmem:[%s234 + $0x2300] sm:$0xff]
        %v1451 = vld [vmem:[%s234 + $0x2308] sm:$0xff]
        %v1452 = vld [vmem:[%s234 + $0x2310] sm:$0xff]
        %v1453 = vld [vmem:[%s234 + $0x2318] sm:$0xff]
        %v1454 = vld [vmem:[%s234 + $0x2320] sm:$0xff]
        %v1455 = vld [vmem:[%s234 + $0x2328] sm:$0xff]
        %v1456 = vld [vmem:[%s234 + $0x2330] sm:$0xff]
        %v1457 = vld [vmem:[%s234 + $0x2338] sm:$0xff]
        %v1458 = vld [vmem:[%s234 + $0x2340] sm:$0xff]
        %v1459 = vld [vmem:[%s234 + $0x2348] sm:$0xff]
        %v1460 = vld [vmem:[%s234 + $0x2350] sm:$0xff]
        %v1461 = vld [vmem:[%s234 + $0x2358] sm:$0xff]
        %v1462 = vld [vmem:[%s234 + $0x2360] sm:$0xff]
        %v1463 = vld [vmem:[%s234 + $0x2368] sm:$0xff]
        %v1464 = vld [vmem:[%s234 + $0x2370] sm:$0xff]
        %v1465 = vld [vmem:[%s234 + $0x2378] sm:$0xff]
        %v1466 = vld [vmem:[%s234 + $0x2380] sm:$0xff]
        %v1467 = vld [vmem:[%s234 + $0x2388] sm:$0xff]
        %v1468 = vld [vmem:[%s234 + $0x2390] sm:$0xff]
        %v1469 = vld [vmem:[%s234 + $0x2398] sm:$0xff]
        %v1470 = vld [vmem:[%s234 + $0x23a0] sm:$0xff]
        %v1471 = vld [vmem:[%s234 + $0x23a8] sm:$0xff]
        %v1472 = vld [vmem:[%s234 + $0x23b0] sm:$0xff]
        %v1473 = vld [vmem:[%s234 + $0x23b8] sm:$0xff]
        %v1474 = vld [vmem:[%s234 + $0x23c0] sm:$0xff]
        %v1475 = vld [vmem:[%s234 + $0x23c8] sm:$0xff]
        %v1476 = vld [vmem:[%s234 + $0x23d0] sm:$0xff]
        %v1477 = vld [vmem:[%s234 + $0x23d8] sm:$0xff]
        %v1478 = vld [vmem:[%s234 + $0x23e0] sm:$0xff]
        %v1479 = vld [vmem:[%s234 + $0x23e8] sm:$0xff]
        %v1480 = vld [vmem:[%s234 + $0x23f0] sm:$0xff]
        %v1481 = vld [vmem:[%s234 + $0x23f8] sm:$0xff]
        %v1482 = vld [vmem:[%s234 + $0x2400] sm:$0xff]
        %v1483 = vld [vmem:[%s234 + $0x2408] sm:$0xff]
        %v1484 = vld [vmem:[%s234 + $0x2410] sm:$0xff]
        %v1485 = vld [vmem:[%s234 + $0x2418] sm:$0xff]
        %v1486 = vld [vmem:[%s234 + $0x2420] sm:$0xff]
        %v1487 = vld [vmem:[%s234 + $0x2428] sm:$0xff]
        %v1488 = vld [vmem:[%s234 + $0x2430] sm:$0xff]
        %v1489 = vld [vmem:[%s234 + $0x2438] sm:$0xff]
        %v1490 = vld [vmem:[%s234 + $0x2440] sm:$0xff]
        %v1491 = vld [vmem:[%s234 + $0x2448] sm:$0xff]
        %v1492 = vld [vmem:[%s234 + $0x2450] sm:$0xff]
        %v1493 = vld [vmem:[%s234 + $0x2458] sm:$0xff]
        %v1494 = vld [vmem:[%s234 + $0x2460] sm:$0xff]
        %v1495 = vld [vmem:[%s234 + $0x2468] sm:$0xff]
        %v1496 = vld [vmem:[%s234 + $0x2470] sm:$0xff]
        %v1497 = vld [vmem:[%s234 + $0x2478] sm:$0xff]
        %v1498 = vld [vmem:[%s234 + $0x2480] sm:$0xff]
        %v1499 = vld [vmem:[%s234 + $0x2488] sm:$0xff]
        %v1500 = vld [vmem:[%s234 + $0x2490] sm:$0xff]
        %v1501 = vld [vmem:[%s234 + $0x2498] sm:$0xff]
        %v1502 = vld [vmem:[%s234 + $0x24a0] sm:$0xff]
        %v1503 = vld [vmem:[%s234 + $0x24a8] sm:$0xff]
        %v1504 = vld [vmem:[%s234 + $0x24b0] sm:$0xff]
        %v1505 = vld [vmem:[%s234 + $0x24b8] sm:$0xff]
        %v1506 = vld [vmem:[%s234 + $0x24c0] sm:$0xff]
        %v1507 = vld [vmem:[%s234 + $0x24c8] sm:$0xff]
        %v1508 = vld [vmem:[%s234 + $0x24d0] sm:$0xff]
        %v1509 = vld [vmem:[%s234 + $0x24d8] sm:$0xff]
        %v1510 = vld [vmem:[%s234 + $0x24e0] sm:$0xff]
        %v1511 = vld [vmem:[%s234 + $0x24e8] sm:$0xff]
        %v1512 = vld [vmem:[%s234 + $0x24f0] sm:$0xff]
        %v1513 = vld [vmem:[%s234 + $0x24f8] sm:$0xff]
        %v1514 = vld [vmem:[%s234 + $0x2500] sm:$0xff]
        %v1515 = vld [vmem:[%s234 + $0x2508] sm:$0xff]
        %v1516 = vld [vmem:[%s234 + $0x2510] sm:$0xff]
        %v1517 = vld [vmem:[%s234 + $0x2518] sm:$0xff]
        %v1518 = vld [vmem:[%s234 + $0x2520] sm:$0xff]
        %v1519 = vld [vmem:[%s234 + $0x2528] sm:$0xff]
        %v1520 = vld [vmem:[%s234 + $0x2530] sm:$0xff]
        %v1521 = vld [vmem:[%s234 + $0x2538] sm:$0xff]
        %v1522 = vld [vmem:[%s234 + $0x2540] sm:$0xff]
        %v1523 = vld [vmem:[%s234 + $0x2548] sm:$0xff]
        %v1524 = vld [vmem:[%s234 + $0x2550] sm:$0xff]
        %v1525 = vld [vmem:[%s234 + $0x2558] sm:$0xff]
        %v1526 = vld [vmem:[%s234 + $0x2560] sm:$0xff]
        %v1527 = vld [vmem:[%s234 + $0x2568] sm:$0xff]
        %v1528 = vld [vmem:[%s234 + $0x2570] sm:$0xff]
        %v1529 = vld [vmem:[%s234 + $0x2578] sm:$0xff]
        %v1530 = vld [vmem:[%s234 + $0x2580] sm:$0xff]
        %v1531 = vld [vmem:[%s234 + $0x2588] sm:$0xff]
        %v1532 = vld [vmem:[%s234 + $0x2590] sm:$0xff]
        %v1533 = vld [vmem:[%s234 + $0x2598] sm:$0xff]
        %v1534 = vld [vmem:[%s234 + $0x25a0] sm:$0xff]
        %v1535 = vld [vmem:[%s234 + $0x25a8] sm:$0xff]
        %v1536 = vld [vmem:[%s234 + $0x25b0] sm:$0xff]
        %v1537 = vld [vmem:[%s234 + $0x25b8] sm:$0xff]
        %v1538 = vld [vmem:[%s234 + $0x25c0] sm:$0xff]
        %v1539 = vld [vmem:[%s234 + $0x25c8] sm:$0xff]
        %v1540 = vld [vmem:[%s234 + $0x25d0] sm:$0xff]
        %v1541 = vld [vmem:[%s234 + $0x25d8] sm:$0xff]
        %v1542 = vld [vmem:[%s234 + $0x25e0] sm:$0xff]
        %v1543 = vld [vmem:[%s234 + $0x25e8] sm:$0xff]
        %v1544 = vld [vmem:[%s234 + $0x25f0] sm:$0xff]
        %v1545 = vld [vmem:[%s234 + $0x25f8] sm:$0xff]
        %v1546 = vld [vmem:[%s234 + $0x2600] sm:$0xff]
        %v1547 = vld [vmem:[%s234 + $0x2608] sm:$0xff]
        %v1548 = vld [vmem:[%s234 + $0x2610] sm:$0xff]
        %v1549 = vld [vmem:[%s234 + $0x2618] sm:$0xff]
        %v1550 = vld [vmem:[%s234 + $0x2620] sm:$0xff]
        %v1551 = vld [vmem:[%s234 + $0x2628] sm:$0xff]
        %v1552 = vld [vmem:[%s234 + $0x2630] sm:$0xff]
        %v1553 = vld [vmem:[%s234 + $0x2638] sm:$0xff]
        %v1554 = vld [vmem:[%s234 + $0x2640] sm:$0xff]
        %v1555 = vld [vmem:[%s234 + $0x2648] sm:$0xff]
        %v1556 = vld [vmem:[%s234 + $0x2650] sm:$0xff]
        %v1557 = vld [vmem:[%s234 + $0x2658] sm:$0xff]
        %v1558 = vld [vmem:[%s234 + $0x2660] sm:$0xff]
        %v1559 = vld [vmem:[%s234 + $0x2668] sm:$0xff]
        %v1560 = vld [vmem:[%s234 + $0x2670] sm:$0xff]
        %v1561 = vld [vmem:[%s234 + $0x2678] sm:$0xff]
        %v1562 = vld [vmem:[%s234 + $0x2680] sm:$0xff]
        %v1563 = vld [vmem:[%s234 + $0x2688] sm:$0xff]
        %v1564 = vld [vmem:[%s234 + $0x2690] sm:$0xff]
        %v1565 = vld [vmem:[%s234 + $0x2698] sm:$0xff]
        %v1566 = vld [vmem:[%s234 + $0x26a0] sm:$0xff]
        %v1567 = vld [vmem:[%s234 + $0x26a8] sm:$0xff]
        %v1568 = vld [vmem:[%s234 + $0x26b0] sm:$0xff]
        %v1569 = vld [vmem:[%s234 + $0x26b8] sm:$0xff]
        %v1570 = vld [vmem:[%s234 + $0x26c0] sm:$0xff]
        %v1571 = vld [vmem:[%s234 + $0x26c8] sm:$0xff]
        %v1572 = vld [vmem:[%s234 + $0x26d0] sm:$0xff]
        %v1573 = vld [vmem:[%s234 + $0x26d8] sm:$0xff]
        %v1574 = vld [vmem:[%s234 + $0x26e0] sm:$0xff]
        %v1575 = vld [vmem:[%s234 + $0x26e8] sm:$0xff]
        %v1576 = vld [vmem:[%s234 + $0x26f0] sm:$0xff]
        %v1577 = vld [vmem:[%s234 + $0x26f8] sm:$0xff]
        %v1578 = vld [vmem:[%s234 + $0x2700] sm:$0xff]
        %v1579 = vld [vmem:[%s234 + $0x2708] sm:$0xff]
        %v1580 = vld [vmem:[%s234 + $0x2710] sm:$0xff]
        %v1581 = vld [vmem:[%s234 + $0x2718] sm:$0xff]
        %v1582 = vld [vmem:[%s234 + $0x2720] sm:$0xff]
        %v1583 = vld [vmem:[%s234 + $0x2728] sm:$0xff]
        %v1584 = vld [vmem:[%s234 + $0x2730] sm:$0xff]
        %v1585 = vld [vmem:[%s234 + $0x2738] sm:$0xff]
        %v1586 = vld [vmem:[%s234 + $0x2740] sm:$0xff]
        %v1587 = vld [vmem:[%s234 + $0x2748] sm:$0xff]
        %v1588 = vld [vmem:[%s234 + $0x2750] sm:$0xff]
        %v1589 = vld [vmem:[%s234 + $0x2758] sm:$0xff]
        %v1590 = vld [vmem:[%s234 + $0x2760] sm:$0xff]
        %v1591 = vld [vmem:[%s234 + $0x2768] sm:$0xff]
        %v1592 = vld [vmem:[%s234 + $0x2770] sm:$0xff]
        %v1593 = vld [vmem:[%s234 + $0x2778] sm:$0xff]
        %v1594 = vld [vmem:[%s234 + $0x2780] sm:$0xff]
        %v1595 = vld [vmem:[%s234 + $0x2788] sm:$0xff]
        %v1596 = vld [vmem:[%s234 + $0x2790] sm:$0xff]
        %v1597 = vld [vmem:[%s234 + $0x2798] sm:$0xff]
        %v1598 = vld [vmem:[%s234 + $0x27a0] sm:$0xff]
        %v1599 = vld [vmem:[%s234 + $0x27a8] sm:$0xff]
        %v1600 = vld [vmem:[%s234 + $0x27b0] sm:$0xff]
        %v1601 = vld [vmem:[%s234 + $0x27b8] sm:$0xff]
        %v1602 = vld [vmem:[%s234 + $0x27c0] sm:$0xff]
        %v1603 = vld [vmem:[%s234 + $0x27c8] sm:$0xff]
        %v1604 = vld [vmem:[%s234 + $0x27d0] sm:$0xff]
        %v1605 = vld [vmem:[%s234 + $0x27d8] sm:$0xff]
        %v1606 = vld [vmem:[%s234 + $0x27e0] sm:$0xff]
        %v1607 = vld [vmem:[%s234 + $0x27e8] sm:$0xff]
        %v1608 = vld [vmem:[%s234 + $0x27f0] sm:$0xff]
        %v1609 = vld [vmem:[%s234 + $0x27f8] sm:$0xff]
        %v1610 = vld [vmem:[%s234 + $0x2800] sm:$0xff]
        %v1611 = vld [vmem:[%s234 + $0x2808] sm:$0xff]
        %v1612 = vld [vmem:[%s234 + $0x2810] sm:$0xff]
        %v1613 = vld [vmem:[%s234 + $0x2818] sm:$0xff]
        %v1614 = vld [vmem:[%s234 + $0x2820] sm:$0xff]
        %v1615 = vld [vmem:[%s234 + $0x2828] sm:$0xff]
        %v1616 = vld [vmem:[%s234 + $0x2830] sm:$0xff]
        %v1617 = vld [vmem:[%s234 + $0x2838] sm:$0xff]
        %v1618 = vld [vmem:[%s234 + $0x2840] sm:$0xff]
        %v1619 = vld [vmem:[%s234 + $0x2848] sm:$0xff]
        %v1620 = vld [vmem:[%s234 + $0x2850] sm:$0xff]
        %v1621 = vld [vmem:[%s234 + $0x2858] sm:$0xff]
        %v1622 = vld [vmem:[%s234 + $0x2860] sm:$0xff]
        %v1623 = vld [vmem:[%s234 + $0x2868] sm:$0xff]
        %v1624 = vld [vmem:[%s234 + $0x2870] sm:$0xff]
        %v1625 = vld [vmem:[%s234 + $0x2878] sm:$0xff]
        %v1626 = vld [vmem:[%s234 + $0x2880] sm:$0xff]
        %v1627 = vld [vmem:[%s234 + $0x2888] sm:$0xff]
        %v1628 = vld [vmem:[%s234 + $0x2890] sm:$0xff]
        %v1629 = vld [vmem:[%s234 + $0x2898] sm:$0xff]
        %v1630 = vld [vmem:[%s234 + $0x28a0] sm:$0xff]
        %v1631 = vld [vmem:[%s234 + $0x28a8] sm:$0xff]
        %v1632 = vld [vmem:[%s234 + $0x28b0] sm:$0xff]
        %v1633 = vld [vmem:[%s234 + $0x28b8] sm:$0xff]
        %v1634 = vld [vmem:[%s234 + $0x28c0] sm:$0xff]
        %v1635 = vld [vmem:[%s234 + $0x28c8] sm:$0xff]
        %v1636 = vld [vmem:[%s234 + $0x28d0] sm:$0xff]
        %v1637 = vld [vmem:[%s234 + $0x28d8] sm:$0xff]
        %v1638 = vld [vmem:[%s234 + $0x28e0] sm:$0xff]
        %v1639 = vld [vmem:[%s234 + $0x28e8] sm:$0xff]
        %v1640 = vld [vmem:[%s234 + $0x28f0] sm:$0xff]
        %v1641 = vld [vmem:[%s234 + $0x28f8] sm:$0xff]
        %v1642 = vld [vmem:[%s234 + $0x2900] sm:$0xff]
        %v1643 = vld [vmem:[%s234 + $0x2908] sm:$0xff]
        %v1644 = vld [vmem:[%s234 + $0x2910] sm:$0xff]
        %v1645 = vld [vmem:[%s234 + $0x2918] sm:$0xff]
        %v1646 = vld [vmem:[%s234 + $0x2920] sm:$0xff]
        %v1647 = vld [vmem:[%s234 + $0x2928] sm:$0xff]
        %v1648 = vld [vmem:[%s234 + $0x2930] sm:$0xff]
        %v1649 = vld [vmem:[%s234 + $0x2938] sm:$0xff]
        %v1650 = vld [vmem:[%s234 + $0x2940] sm:$0xff]
        %v1651 = vld [vmem:[%s234 + $0x2948] sm:$0xff]
        %v1652 = vld [vmem:[%s234 + $0x2950] sm:$0xff]
        %v1653 = vld [vmem:[%s234 + $0x2958] sm:$0xff]
        %v1654 = vld [vmem:[%s234 + $0x2960] sm:$0xff]
        %v1655 = vld [vmem:[%s234 + $0x2968] sm:$0xff]
        %v1656 = vld [vmem:[%s234 + $0x2970] sm:$0xff]
        %v1657 = vld [vmem:[%s234 + $0x2978] sm:$0xff]
        %v1658 = vld [vmem:[%s234 + $0x2980] sm:$0xff]
        %v1659 = vld [vmem:[%s234 + $0x2988] sm:$0xff]
        %v1660 = vld [vmem:[%s234 + $0x2990] sm:$0xff]
        %v1661 = vld [vmem:[%s234 + $0x2998] sm:$0xff]
        %v1662 = vld [vmem:[%s234 + $0x29a0] sm:$0xff]
        %v1663 = vld [vmem:[%s234 + $0x29a8] sm:$0xff]
        %v1664 = vld [vmem:[%s234 + $0x29b0] sm:$0xff]
        %v1665 = vld [vmem:[%s234 + $0x29b8] sm:$0xff]
        %v1666 = vld [vmem:[%s234 + $0x29c0] sm:$0xff]
        %v1667 = vld [vmem:[%s234 + $0x29c8] sm:$0xff]
        %v1668 = vld [vmem:[%s234 + $0x29d0] sm:$0xff]
        %v1669 = vld [vmem:[%s234 + $0x29d8] sm:$0xff]
        %v1670 = vld [vmem:[%s234 + $0x29e0] sm:$0xff]
        %v1671 = vld [vmem:[%s234 + $0x29e8] sm:$0xff]
        %v1672 = vld [vmem:[%s234 + $0x29f0] sm:$0xff]
        %v1673 = vld [vmem:[%s234 + $0x29f8] sm:$0xff]
        %v1674 = vld [vmem:[%s234 + $0x2a00] sm:$0xff]
        %v1675 = vld [vmem:[%s234 + $0x2a08] sm:$0xff]
        %v1676 = vld [vmem:[%s234 + $0x2a10] sm:$0xff]
        %v1677 = vld [vmem:[%s234 + $0x2a18] sm:$0xff]
        %v1678 = vld [vmem:[%s234 + $0x2a20] sm:$0xff]
        %v1679 = vld [vmem:[%s234 + $0x2a28] sm:$0xff]
        %v1680 = vld [vmem:[%s234 + $0x2a30] sm:$0xff]
        %v1681 = vld [vmem:[%s234 + $0x2a38] sm:$0xff]
        %v1682 = vld [vmem:[%s234 + $0x2a40] sm:$0xff]
        %v1683 = vld [vmem:[%s234 + $0x2a48] sm:$0xff]
        %v1684 = vld [vmem:[%s234 + $0x2a50] sm:$0xff]
        %v1685 = vld [vmem:[%s234 + $0x2a58] sm:$0xff]
        %v1686 = vld [vmem:[%s234 + $0x2a60] sm:$0xff]
        %v1687 = vld [vmem:[%s234 + $0x2a68] sm:$0xff]
        %v1688 = vld [vmem:[%s234 + $0x2a70] sm:$0xff]
        %v1689 = vld [vmem:[%s234 + $0x2a78] sm:$0xff]
        %v1690 = vld [vmem:[%s234 + $0x2a80] sm:$0xff]
        %v1691 = vld [vmem:[%s234 + $0x2a88] sm:$0xff]
        %v1692 = vld [vmem:[%s234 + $0x2a90] sm:$0xff]
        %v1693 = vld [vmem:[%s234 + $0x2a98] sm:$0xff]
        %v1694 = vld [vmem:[%s234 + $0x2aa0] sm:$0xff]
        %v1695 = vld [vmem:[%s234 + $0x2aa8] sm:$0xff]
        %v1696 = vld [vmem:[%s234 + $0x2ab0] sm:$0xff]
        %v1697 = vld [vmem:[%s234 + $0x2ab8] sm:$0xff]
        %v1698 = vld [vmem:[%s234 + $0x2ac0] sm:$0xff]
        %v1699 = vld [vmem:[%s234 + $0x2ac8] sm:$0xff]
        %v1700 = vld [vmem:[%s234 + $0x2ad0] sm:$0xff]
        %v1701 = vld [vmem:[%s234 + $0x2ad8] sm:$0xff]
        %v1702 = vld [vmem:[%s234 + $0x2ae0] sm:$0xff]
        %v1703 = vld [vmem:[%s234 + $0x2ae8] sm:$0xff]
        %v1704 = vld [vmem:[%s234 + $0x2af0] sm:$0xff]
        %v1705 = vld [vmem:[%s234 + $0x2af8] sm:$0xff]
        %v1706 = vld [vmem:[%s234 + $0x2b00] sm:$0xff]
        %v1707 = vld [vmem:[%s234 + $0x2b08] sm:$0xff]
        %v1708 = vld [vmem:[%s234 + $0x2b10] sm:$0xff]
        %v1709 = vld [vmem:[%s234 + $0x2b18] sm:$0xff]
        %v1710 = vld [vmem:[%s234 + $0x2b20] sm:$0xff]
        %v1711 = vld [vmem:[%s234 + $0x2b28] sm:$0xff]
        %v1712 = vld [vmem:[%s234 + $0x2b30] sm:$0xff]
        %v1713 = vld [vmem:[%s234 + $0x2b38] sm:$0xff]
        %v1714 = vld [vmem:[%s234 + $0x2b40] sm:$0xff]
        %v1715 = vld [vmem:[%s234 + $0x2b48] sm:$0xff]
        %v1716 = vld [vmem:[%s234 + $0x2b50] sm:$0xff]
        %v1717 = vld [vmem:[%s234 + $0x2b58] sm:$0xff]
        %v1718 = vld [vmem:[%s234 + $0x2b60] sm:$0xff]
        %v1719 = vld [vmem:[%s234 + $0x2b68] sm:$0xff]
        %v1720 = vld [vmem:[%s234 + $0x2b70] sm:$0xff]
        %v1721 = vld [vmem:[%s234 + $0x2b78] sm:$0xff]
        %v1722 = vld [vmem:[%s234 + $0x2b80] sm:$0xff]
        %v1723 = vld [vmem:[%s234 + $0x2b88] sm:$0xff]
        %v1724 = vld [vmem:[%s234 + $0x2b90] sm:$0xff]
        %v1725 = vld [vmem:[%s234 + $0x2b98] sm:$0xff]
        %v1726 = vld [vmem:[%s234 + $0x2ba0] sm:$0xff]
        %v1727 = vld [vmem:[%s234 + $0x2ba8] sm:$0xff]
        %v1728 = vld [vmem:[%s234 + $0x2bb0] sm:$0xff]
        %v1729 = vld [vmem:[%s234 + $0x2bb8] sm:$0xff]
        %v1730 = vld [vmem:[%s234 + $0x2bc0] sm:$0xff]
        %v1731 = vld [vmem:[%s234 + $0x2bc8] sm:$0xff]
        %v1732 = vld [vmem:[%s234 + $0x2bd0] sm:$0xff]
        %v1733 = vld [vmem:[%s234 + $0x2bd8] sm:$0xff]
        %v1734 = vld [vmem:[%s234 + $0x2be0] sm:$0xff]
        %v1735 = vld [vmem:[%s234 + $0x2be8] sm:$0xff]
        %v1736 = vld [vmem:[%s234 + $0x2bf0] sm:$0xff]
        %v1737 = vld [vmem:[%s234 + $0x2bf8] sm:$0xff]
        %v1738 = vld [vmem:[%s234 + $0x2c00] sm:$0xff]
        %v1739 = vld [vmem:[%s234 + $0x2c08] sm:$0xff]
        %v1740 = vld [vmem:[%s234 + $0x2c10] sm:$0xff]
        %v1741 = vld [vmem:[%s234 + $0x2c18] sm:$0xff]
        %v1742 = vld [vmem:[%s234 + $0x2c20] sm:$0xff]
        %v1743 = vld [vmem:[%s234 + $0x2c28] sm:$0xff]
        %v1744 = vld [vmem:[%s234 + $0x2c30] sm:$0xff]
        %v1745 = vld [vmem:[%s234 + $0x2c38] sm:$0xff]
        %v1746 = vld [vmem:[%s234 + $0x2c40] sm:$0xff]
        %v1747 = vld [vmem:[%s234 + $0x2c48] sm:$0xff]
        %v1748 = vld [vmem:[%s234 + $0x2c50] sm:$0xff]
        %v1749 = vld [vmem:[%s234 + $0x2c58] sm:$0xff]
        %v1750 = vld [vmem:[%s234 + $0x2c60] sm:$0xff]
        %v1751 = vld [vmem:[%s234 + $0x2c68] sm:$0xff]
        %v1752 = vld [vmem:[%s234 + $0x2c70] sm:$0xff]
        %v1753 = vld [vmem:[%s234 + $0x2c78] sm:$0xff]
        %v1754 = vld [vmem:[%s234 + $0x2c80] sm:$0xff]
        %v1755 = vld [vmem:[%s234 + $0x2c88] sm:$0xff]
        %v1756 = vld [vmem:[%s234 + $0x2c90] sm:$0xff]
        %v1757 = vld [vmem:[%s234 + $0x2c98] sm:$0xff]
        %v1758 = vld [vmem:[%s234 + $0x2ca0] sm:$0xff]
        %v1759 = vld [vmem:[%s234 + $0x2ca8] sm:$0xff]
        %v1760 = vld [vmem:[%s234 + $0x2cb0] sm:$0xff]
        %v1761 = vld [vmem:[%s234 + $0x2cb8] sm:$0xff]
        %v1762 = vld [vmem:[%s234 + $0x2cc0] sm:$0xff]
        %v1763 = vld [vmem:[%s234 + $0x2cc8] sm:$0xff]
        %v1764 = vld [vmem:[%s234 + $0x2cd0] sm:$0xff]
        %v1765 = vld [vmem:[%s234 + $0x2cd8] sm:$0xff]
        %v1766 = vld [vmem:[%s234 + $0x2ce0] sm:$0xff]
        %v1767 = vld [vmem:[%s234 + $0x2ce8] sm:$0xff]
        %v1768 = vld [vmem:[%s234 + $0x2cf0] sm:$0xff]
        %v1769 = vld [vmem:[%s234 + $0x2cf8] sm:$0xff]
        %v1770 = vld [vmem:[%s234 + $0x2d00] sm:$0xff]
        %v1771 = vld [vmem:[%s234 + $0x2d08] sm:$0xff]
        %v1772 = vld [vmem:[%s234 + $0x2d10] sm:$0xff]
        %v1773 = vld [vmem:[%s234 + $0x2d18] sm:$0xff]
        %v1774 = vld [vmem:[%s234 + $0x2d20] sm:$0xff]
        %v1775 = vld [vmem:[%s234 + $0x2d28] sm:$0xff]
        %v1776 = vld [vmem:[%s234 + $0x2d30] sm:$0xff]
        %v1777 = vld [vmem:[%s234 + $0x2d38] sm:$0xff]
        %v1778 = vld [vmem:[%s234 + $0x2d40] sm:$0xff]
        %v1779 = vld [vmem:[%s234 + $0x2d48] sm:$0xff]
        %v1780 = vld [vmem:[%s234 + $0x2d50] sm:$0xff]
        %v1781 = vld [vmem:[%s234 + $0x2d58] sm:$0xff]
        %v1782 = vld [vmem:[%s234 + $0x2d60] sm:$0xff]
        %v1783 = vld [vmem:[%s234 + $0x2d68] sm:$0xff]
        %v1784 = vld [vmem:[%s234 + $0x2d70] sm:$0xff]
        %v1785 = vld [vmem:[%s234 + $0x2d78] sm:$0xff]
        %v1786 = vld [vmem:[%s234 + $0x2d80] sm:$0xff]
        %v1787 = vld [vmem:[%s234 + $0x2d88] sm:$0xff]
        %v1788 = vld [vmem:[%s234 + $0x2d90] sm:$0xff]
        %v1789 = vld [vmem:[%s234 + $0x2d98] sm:$0xff]
        %v1790 = vld [vmem:[%s234 + $0x2da0] sm:$0xff]
        %v1791 = vld [vmem:[%s234 + $0x2da8] sm:$0xff]
        %v1792 = vld [vmem:[%s234 + $0x2db0] sm:$0xff]
        %v1793 = vld [vmem:[%s234 + $0x2db8] sm:$0xff]
        %v1794 = vld [vmem:[%s234 + $0x2dc0] sm:$0xff]
        %v1795 = vld [vmem:[%s234 + $0x2dc8] sm:$0xff]
        %v1796 = vld [vmem:[%s234 + $0x2dd0] sm:$0xff]
        %v1797 = vld [vmem:[%s234 + $0x2dd8] sm:$0xff]
        %v1798 = vld [vmem:[%s234 + $0x2de0] sm:$0xff]
        %v1799 = vld [vmem:[%s234 + $0x2de8] sm:$0xff]
        %v1800 = vld [vmem:[%s234 + $0x2df0] sm:$0xff]
        %v1801 = vld [vmem:[%s234 + $0x2df8] sm:$0xff]
        %v1802 = vld [vmem:[%s234 + $0x2e00] sm:$0xff]
        %v1803 = vld [vmem:[%s234 + $0x2e08] sm:$0xff]
        %v1804 = vld [vmem:[%s234 + $0x2e10] sm:$0xff]
        %v1805 = vld [vmem:[%s234 + $0x2e18] sm:$0xff]
        %v1806 = vld [vmem:[%s234 + $0x2e20] sm:$0xff]
        %v1807 = vld [vmem:[%s234 + $0x2e28] sm:$0xff]
        %v1808 = vld [vmem:[%s234 + $0x2e30] sm:$0xff]
        %v1809 = vld [vmem:[%s234 + $0x2e38] sm:$0xff]
        %v1810 = vld [vmem:[%s234 + $0x2e40] sm:$0xff]
        %v1811 = vld [vmem:[%s234 + $0x2e48] sm:$0xff]
        %v1812 = vld [vmem:[%s234 + $0x2e50] sm:$0xff]
        %v1813 = vld [vmem:[%s234 + $0x2e58] sm:$0xff]
        %v1814 = vld [vmem:[%s234 + $0x2e60] sm:$0xff]
        %v1815 = vld [vmem:[%s234 + $0x2e68] sm:$0xff]
        %v1816 = vld [vmem:[%s234 + $0x2e70] sm:$0xff]
        %v1817 = vld [vmem:[%s234 + $0x2e78] sm:$0xff]
        %v1818 = vld [vmem:[%s234 + $0x2e80] sm:$0xff]
        %v1819 = vld [vmem:[%s234 + $0x2e88] sm:$0xff]
        %v1820 = vld [vmem:[%s234 + $0x2e90] sm:$0xff]
        %v1821 = vld [vmem:[%s234 + $0x2e98] sm:$0xff]
        %v1822 = vld [vmem:[%s234 + $0x2ea0] sm:$0xff]
        %v1823 = vld [vmem:[%s234 + $0x2ea8] sm:$0xff]
        %v1824 = vld [vmem:[%s234 + $0x2eb0] sm:$0xff]
        %v1825 = vld [vmem:[%s234 + $0x2eb8] sm:$0xff]
        %v1826 = vld [vmem:[%s234 + $0x2ec0] sm:$0xff]
        %v1827 = vld [vmem:[%s234 + $0x2ec8] sm:$0xff]
        %v1828 = vld [vmem:[%s234 + $0x2ed0] sm:$0xff]
        %v1829 = vld [vmem:[%s234 + $0x2ed8] sm:$0xff]
        %v1830 = vld [vmem:[%s234 + $0x2ee0] sm:$0xff]
        %v1831 = vld [vmem:[%s234 + $0x2ee8] sm:$0xff]
        %v1832 = vld [vmem:[%s234 + $0x2ef0] sm:$0xff]
        %v1833 = vld [vmem:[%s234 + $0x2ef8] sm:$0xff]
        %v1834 = vld [vmem:[%s234 + $0x2f00] sm:$0xff]
        %v1835 = vld [vmem:[%s234 + $0x2f08] sm:$0xff]
        %v1836 = vld [vmem:[%s234 + $0x2f10] sm:$0xff]
        %v1837 = vld [vmem:[%s234 + $0x2f18] sm:$0xff]
        %v1838 = vld [vmem:[%s234 + $0x2f20] sm:$0xff]
        %v1839 = vld [vmem:[%s234 + $0x2f28] sm:$0xff]
        %v1840 = vld [vmem:[%s234 + $0x2f30] sm:$0xff]
        %v1841 = vld [vmem:[%s234 + $0x2f38] sm:$0xff]
        %v1842 = vld [vmem:[%s234 + $0x2f40] sm:$0xff]
        %v1843 = vld [vmem:[%s234 + $0x2f48] sm:$0xff]
        %v1844 = vld [vmem:[%s234 + $0x2f50] sm:$0xff]
        %v1845 = vld [vmem:[%s234 + $0x2f58] sm:$0xff]
        %v1846 = vld [vmem:[%s234 + $0x2f60] sm:$0xff]
        %v1847 = vld [vmem:[%s234 + $0x2f68] sm:$0xff]
        %v1848 = vld [vmem:[%s234 + $0x2f70] sm:$0xff]
        %v1849 = vld [vmem:[%s234 + $0x2f78] sm:$0xff]
        %v1850 = vld [vmem:[%s234 + $0x2f80] sm:$0xff]
        %v1851 = vld [vmem:[%s234 + $0x2f88] sm:$0xff]
        %v1852 = vld [vmem:[%s234 + $0x2f90] sm:$0xff]
        %v1853 = vld [vmem:[%s234 + $0x2f98] sm:$0xff]
        %v1854 = vld [vmem:[%s234 + $0x2fa0] sm:$0xff]
        %v1855 = vld [vmem:[%s234 + $0x2fa8] sm:$0xff]
        %v1856 = vld [vmem:[%s234 + $0x2fb0] sm:$0xff]
        %v1857 = vld [vmem:[%s234 + $0x2fb8] sm:$0xff]
        %v1858 = vld [vmem:[%s234 + $0x2fc0] sm:$0xff]
        %v1859 = vld [vmem:[%s234 + $0x2fc8] sm:$0xff]
        %v1860 = vld [vmem:[%s234 + $0x2fd0] sm:$0xff]
        %v1861 = vld [vmem:[%s234 + $0x2fd8] sm:$0xff]
        %v1862 = vld [vmem:[%s234 + $0x2fe0] sm:$0xff]
        %v1863 = vld [vmem:[%s234 + $0x2fe8] sm:$0xff]
        %v1864 = vld [vmem:[%s234 + $0x2ff0] sm:$0xff]
        %v1865 = vld [vmem:[%s234 + $0x2ff8] sm:$0xff]
        %v1866 = vld [vmem:[%s234 + $0x3000] sm:$0xff]
        %v1867 = vld [vmem:[%s234 + $0x3008] sm:$0xff]
        %v1868 = vld [vmem:[%s234 + $0x3010] sm:$0xff]
        %v1869 = vld [vmem:[%s234 + $0x3018] sm:$0xff]
        %v1870 = vld [vmem:[%s234 + $0x3020] sm:$0xff]
        %v1871 = vld [vmem:[%s234 + $0x3028] sm:$0xff]
        %v1872 = vld [vmem:[%s234 + $0x3030] sm:$0xff]
        %v1873 = vld [vmem:[%s234 + $0x3038] sm:$0xff]
        %v1874 = vld [vmem:[%s234 + $0x3040] sm:$0xff]
        %v1875 = vld [vmem:[%s234 + $0x3048] sm:$0xff]
        %v1876 = vld [vmem:[%s234 + $0x3050] sm:$0xff]
        %v1877 = vld [vmem:[%s234 + $0x3058] sm:$0xff]
        %v1878 = vld [vmem:[%s234 + $0x3060] sm:$0xff]
        %v1879 = vld [vmem:[%s234 + $0x3068] sm:$0xff]
        %v1880 = vld [vmem:[%s234 + $0x3070] sm:$0xff]
        %v1881 = vld [vmem:[%s234 + $0x3078] sm:$0xff]
        %v1882 = vld [vmem:[%s234 + $0x3080] sm:$0xff]
        %v1883 = vld [vmem:[%s234 + $0x3088] sm:$0xff]
        %v1884 = vld [vmem:[%s234 + $0x3090] sm:$0xff]
        %v1885 = vld [vmem:[%s234 + $0x3098] sm:$0xff]
        %v1886 = vld [vmem:[%s234 + $0x30a0] sm:$0xff]
        %v1887 = vld [vmem:[%s234 + $0x30a8] sm:$0xff]
        %v1888 = vld [vmem:[%s234 + $0x30b0] sm:$0xff]
        %v1889 = vld [vmem:[%s234 + $0x30b8] sm:$0xff]
        %v1890 = vld [vmem:[%s234 + $0x30c0] sm:$0xff]
        %v1891 = vld [vmem:[%s234 + $0x30c8] sm:$0xff]
        %v1892 = vld [vmem:[%s234 + $0x30d0] sm:$0xff]
        %v1893 = vld [vmem:[%s234 + $0x30d8] sm:$0xff]
        %v1894 = vld [vmem:[%s234 + $0x30e0] sm:$0xff]
        %v1895 = vld [vmem:[%s234 + $0x30e8] sm:$0xff]
        %v1896 = vld [vmem:[%s234 + $0x30f0] sm:$0xff]
        %v1897 = vld [vmem:[%s234 + $0x30f8] sm:$0xff]
        %v1898 = vld [vmem:[%s234 + $0x3100] sm:$0xff]
        %v1899 = vld [vmem:[%s234 + $0x3108] sm:$0xff]
        %v1900 = vld [vmem:[%s234 + $0x3110] sm:$0xff]
        %v1901 = vld [vmem:[%s234 + $0x3118] sm:$0xff]
        %v1902 = vld [vmem:[%s234 + $0x3120] sm:$0xff]
        %v1903 = vld [vmem:[%s234 + $0x3128] sm:$0xff]
        %v1904 = vld [vmem:[%s234 + $0x3130] sm:$0xff]
        %v1905 = vld [vmem:[%s234 + $0x3138] sm:$0xff]
        %v1906 = vld [vmem:[%s234 + $0x3140] sm:$0xff]
        %v1907 = vld [vmem:[%s234 + $0x3148] sm:$0xff]
        %v1908 = vld [vmem:[%s234 + $0x3150] sm:$0xff]
        %v1909 = vld [vmem:[%s234 + $0x3158] sm:$0xff]
        %v1910 = vld [vmem:[%s234 + $0x3160] sm:$0xff]
        %v1911 = vld [vmem:[%s234 + $0x3168] sm:$0xff]
        %v1912 = vld [vmem:[%s234 + $0x3170] sm:$0xff]
        %v1913 = vld [vmem:[%s234 + $0x3178] sm:$0xff]
        %v1914 = vld [vmem:[%s234 + $0x3180] sm:$0xff]
        %v1915 = vld [vmem:[%s234 + $0x3188] sm:$0xff]
        %v1916 = vld [vmem:[%s234 + $0x3190] sm:$0xff]
        %v1917 = vld [vmem:[%s234 + $0x3198] sm:$0xff]
        %v1918 = vld [vmem:[%s234 + $0x31a0] sm:$0xff]
        %v1919 = vld [vmem:[%s234 + $0x31a8] sm:$0xff]
        %v1920 = vld [vmem:[%s234 + $0x31b0] sm:$0xff]
        %v1921 = vld [vmem:[%s234 + $0x31b8] sm:$0xff]
        %v1922 = vld [vmem:[%s234 + $0x31c0] sm:$0xff]
        %v1923 = vld [vmem:[%s234 + $0x31c8] sm:$0xff]
        %v1924 = vld [vmem:[%s234 + $0x31d0] sm:$0xff]
        %v1925 = vld [vmem:[%s234 + $0x31d8] sm:$0xff]
        %v1926 = vld [vmem:[%s234 + $0x31e0] sm:$0xff]
        %v1927 = vld [vmem:[%s234 + $0x31e8] sm:$0xff]
        %v1928 = vld [vmem:[%s234 + $0x31f0] sm:$0xff]
        %v1929 = vld [vmem:[%s234 + $0x31f8] sm:$0xff]
        %v1930 = vld [vmem:[%s234 + $0x3200] sm:$0xff]
        %v1931 = vld [vmem:[%s234 + $0x3208] sm:$0xff]
        %v1932 = vld [vmem:[%s234 + $0x3210] sm:$0xff]
        %v1933 = vld [vmem:[%s234 + $0x3218] sm:$0xff]
        %v1934 = vld [vmem:[%s234 + $0x3220] sm:$0xff]
        %v1935 = vld [vmem:[%s234 + $0x3228] sm:$0xff]
        %v1936 = vld [vmem:[%s234 + $0x3230] sm:$0xff]
        %v1937 = vld [vmem:[%s234 + $0x3238] sm:$0xff]
        %v1938 = vld [vmem:[%s234 + $0x3240] sm:$0xff]
        %v1939 = vld [vmem:[%s234 + $0x3248] sm:$0xff]
        %v1940 = vld [vmem:[%s234 + $0x3250] sm:$0xff]
        %v1941 = vld [vmem:[%s234 + $0x3258] sm:$0xff]
        %v1942 = vld [vmem:[%s234 + $0x3260] sm:$0xff]
        %v1943 = vld [vmem:[%s234 + $0x3268] sm:$0xff]
        %v1944 = vld [vmem:[%s234 + $0x3270] sm:$0xff]
        %v1945 = vld [vmem:[%s234 + $0x3278] sm:$0xff]
        %v1946 = vld [vmem:[%s234 + $0x3280] sm:$0xff]
        %v1947 = vld [vmem:[%s234 + $0x3288] sm:$0xff]
        %v1948 = vld [vmem:[%s234 + $0x3290] sm:$0xff]
        %v1949 = vld [vmem:[%s234 + $0x3298] sm:$0xff]
        %v1950 = vld [vmem:[%s234 + $0x32a0] sm:$0xff]
        %v1951 = vld [vmem:[%s234 + $0x32a8] sm:$0xff]
        %v1952 = vld [vmem:[%s234 + $0x32b0] sm:$0xff]
        %v1953 = vld [vmem:[%s234 + $0x32b8] sm:$0xff]
        %v1954 = vld [vmem:[%s234 + $0x32c0] sm:$0xff]
        %v1955 = vld [vmem:[%s234 + $0x32c8] sm:$0xff]
        %v1956 = vld [vmem:[%s234 + $0x32d0] sm:$0xff]
        %v1957 = vld [vmem:[%s234 + $0x32d8] sm:$0xff]
        %v1958 = vld [vmem:[%s234 + $0x32e0] sm:$0xff]
        %v1959 = vld [vmem:[%s234 + $0x32e8] sm:$0xff]
        %v1960 = vld [vmem:[%s234 + $0x32f0] sm:$0xff]
        %v1961 = vld [vmem:[%s234 + $0x32f8] sm:$0xff]
        %v1962 = vld [vmem:[%s234 + $0x3300] sm:$0xff]
        %v1963 = vld [vmem:[%s234 + $0x3308] sm:$0xff]
        %v1964 = vld [vmem:[%s234 + $0x3310] sm:$0xff]
        %v1965 = vld [vmem:[%s234 + $0x3318] sm:$0xff]
        %v1966 = vld [vmem:[%s234 + $0x3320] sm:$0xff]
        %v1967 = vld [vmem:[%s234 + $0x3328] sm:$0xff]
        %v1968 = vld [vmem:[%s234 + $0x3330] sm:$0xff]
        %v1969 = vld [vmem:[%s234 + $0x3338] sm:$0xff]
        %v1970 = vld [vmem:[%s234 + $0x3340] sm:$0xff]
        %v1971 = vld [vmem:[%s234 + $0x3348] sm:$0xff]
        %v1972 = vld [vmem:[%s234 + $0x3350] sm:$0xff]
        %v1973 = vld [vmem:[%s234 + $0x3358] sm:$0xff]
        %v1974 = vld [vmem:[%s234 + $0x3360] sm:$0xff]
        %v1975 = vld [vmem:[%s234 + $0x3368] sm:$0xff]
        %v1976 = vld [vmem:[%s234 + $0x3370] sm:$0xff]
        %v1977 = vld [vmem:[%s234 + $0x3378] sm:$0xff]
        %v1978 = vld [vmem:[%s234 + $0x3380] sm:$0xff]
        %v1979 = vld [vmem:[%s234 + $0x3388] sm:$0xff]
        %v1980 = vld [vmem:[%s234 + $0x3390] sm:$0xff]
        %v1981 = vld [vmem:[%s234 + $0x3398] sm:$0xff]
        %v1982 = vld [vmem:[%s234 + $0x33a0] sm:$0xff]
        %v1983 = vld [vmem:[%s234 + $0x33a8] sm:$0xff]
        %v1984 = vld [vmem:[%s234 + $0x33b0] sm:$0xff]
        %v1985 = vld [vmem:[%s234 + $0x33b8] sm:$0xff]
        %v1986 = vld [vmem:[%s234 + $0x33c0] sm:$0xff]
        %v1987 = vld [vmem:[%s234 + $0x33c8] sm:$0xff]
        %v1988 = vld [vmem:[%s234 + $0x33d0] sm:$0xff]
        %v1989 = vld [vmem:[%s234 + $0x33d8] sm:$0xff]
        %v1990 = vld [vmem:[%s234 + $0x33e0] sm:$0xff]
        %v1991 = vld [vmem:[%s234 + $0x33e8] sm:$0xff]
        %v1992 = vld [vmem:[%s234 + $0x33f0] sm:$0xff]
        %v1993 = vld [vmem:[%s234 + $0x33f8] sm:$0xff]
        %v1994 = vld [vmem:[%s234 + $0x3400] sm:$0xff]
        %v1995 = vld [vmem:[%s234 + $0x3408] sm:$0xff]
        %v1996 = vld [vmem:[%s234 + $0x3410] sm:$0xff]
        %v1997 = vld [vmem:[%s234 + $0x3418] sm:$0xff]
        %v1998 = vld [vmem:[%s234 + $0x3420] sm:$0xff]
        %v1999 = vld [vmem:[%s234 + $0x3428] sm:$0xff]
        %v2000 = vld [vmem:[%s234 + $0x3430] sm:$0xff]
        %v2001 = vld [vmem:[%s234 + $0x3438] sm:$0xff]
        %v2002 = vld [vmem:[%s234 + $0x3440] sm:$0xff]
        %v2003 = vld [vmem:[%s234 + $0x3448] sm:$0xff]
        %v2004 = vld [vmem:[%s234 + $0x3450] sm:$0xff]
        %v2005 = vld [vmem:[%s234 + $0x3458] sm:$0xff]
        %v2006 = vld [vmem:[%s234 + $0x3460] sm:$0xff]
        %v2007 = vld [vmem:[%s234 + $0x3468] sm:$0xff]
        %v2008 = vld [vmem:[%s234 + $0x3470] sm:$0xff]
        %v2009 = vld [vmem:[%s234 + $0x3478] sm:$0xff]
        %v2010 = vld [vmem:[%s234 + $0x3480] sm:$0xff]
        %v2011 = vld [vmem:[%s234 + $0x3488] sm:$0xff]
        %v2012 = vld [vmem:[%s234 + $0x3490] sm:$0xff]
        %v2013 = vld [vmem:[%s234 + $0x3498] sm:$0xff]
        %v2014 = vld [vmem:[%s234 + $0x34a0] sm:$0xff]
        %v2015 = vld [vmem:[%s234 + $0x34a8] sm:$0xff]
        %v2016 = vld [vmem:[%s234 + $0x34b0] sm:$0xff]
        %v2017 = vld [vmem:[%s234 + $0x34b8] sm:$0xff]
        %v2018 = vld [vmem:[%s234 + $0x34c0] sm:$0xff]
        %v2019 = vld [vmem:[%s234 + $0x34c8] sm:$0xff]
        %v2020 = vld [vmem:[%s234 + $0x34d0] sm:$0xff]
        %v2021 = vld [vmem:[%s234 + $0x34d8] sm:$0xff]
        %v2022 = vld [vmem:[%s234 + $0x34e0] sm:$0xff]
        %v2023 = vld [vmem:[%s234 + $0x34e8] sm:$0xff]
        %v2024 = vld [vmem:[%s234 + $0x34f0] sm:$0xff]
        %v2025 = vld [vmem:[%s234 + $0x34f8] sm:$0xff]
        %v2026 = vld [vmem:[%s234 + $0x3500] sm:$0xff]
        %v2027 = vld [vmem:[%s234 + $0x3508] sm:$0xff]
        %v2028 = vld [vmem:[%s234 + $0x3510] sm:$0xff]
        %v2029 = vld [vmem:[%s234 + $0x3518] sm:$0xff]
        %v2030 = vld [vmem:[%s234 + $0x3520] sm:$0xff]
        %v2031 = vld [vmem:[%s234 + $0x3528] sm:$0xff]
        %v2032 = vld [vmem:[%s234 + $0x3530] sm:$0xff]
        %v2033 = vld [vmem:[%s234 + $0x3538] sm:$0xff]
        %v2034 = vld [vmem:[%s234 + $0x3540] sm:$0xff]
        %v2035 = vld [vmem:[%s234 + $0x3548] sm:$0xff]
        %v2036 = vld [vmem:[%s234 + $0x3550] sm:$0xff]
        %v2037 = vld [vmem:[%s234 + $0x3558] sm:$0xff]
        %v2038 = vld [vmem:[%s234 + $0x3560] sm:$0xff]
        %v2039 = vld [vmem:[%s234 + $0x3568] sm:$0xff]
        %v2040 = vld [vmem:[%s234 + $0x3570] sm:$0xff]
        %v2041 = vld [vmem:[%s234 + $0x3578] sm:$0xff]
        %v2042 = vld [vmem:[%s234 + $0x3580] sm:$0xff]
        %v2043 = vld [vmem:[%s234 + $0x3588] sm:$0xff]
        %v2044 = vld [vmem:[%s234 + $0x3590] sm:$0xff]
        %v2045 = vld [vmem:[%s234 + $0x3598] sm:$0xff]
        %v2046 = vld [vmem:[%s234 + $0x35a0] sm:$0xff]
        %v2047 = vld [vmem:[%s234 + $0x35a8] sm:$0xff]
        %v2048 = vld [vmem:[%s234 + $0x35b0] sm:$0xff]
        %v2049 = vld [vmem:[%s234 + $0x35b8] sm:$0xff]
        %v2050 = vld [vmem:[%s234 + $0x35c0] sm:$0xff]
        %v2051 = vld [vmem:[%s234 + $0x35c8] sm:$0xff]
        %v2052 = vld [vmem:[%s234 + $0x35d0] sm:$0xff]
        %v2053 = vld [vmem:[%s234 + $0x35d8] sm:$0xff]
        %v2054 = vld [vmem:[%s234 + $0x35e0] sm:$0xff]
        %v2055 = vld [vmem:[%s234 + $0x35e8] sm:$0xff]
        %v2056 = vld [vmem:[%s234 + $0x35f0] sm:$0xff]
        %v2057 = vld [vmem:[%s234 + $0x35f8] sm:$0xff]
        %v2058 = vld [vmem:[%s234 + $0x3600] sm:$0xff]
        %v2059 = vld [vmem:[%s234 + $0x3608] sm:$0xff]
        %v2060 = vld [vmem:[%s234 + $0x3610] sm:$0xff]
        %v2061 = vld [vmem:[%s234 + $0x3618] sm:$0xff]
        %v2062 = vld [vmem:[%s234 + $0x3620] sm:$0xff]
        %v2063 = vld [vmem:[%s234 + $0x3628] sm:$0xff]
        %v2064 = vld [vmem:[%s234 + $0x3630] sm:$0xff]
        %v2065 = vld [vmem:[%s234 + $0x3638] sm:$0xff]
        %v2066 = vld [vmem:[%s234 + $0x3640] sm:$0xff]
        %v2067 = vld [vmem:[%s234 + $0x3648] sm:$0xff]
        %v2068 = vld [vmem:[%s234 + $0x3650] sm:$0xff]
        %v2069 = vld [vmem:[%s234 + $0x3658] sm:$0xff]
        %v2070 = vld [vmem:[%s234 + $0x3660] sm:$0xff]
        %v2071 = vld [vmem:[%s234 + $0x3668] sm:$0xff]
        %v2072 = vld [vmem:[%s234 + $0x3670] sm:$0xff]
        %v2073 = vld [vmem:[%s234 + $0x3678] sm:$0xff]
        %v2074 = vld [vmem:[%s234 + $0x3680] sm:$0xff]
        %v2075 = vld [vmem:[%s234 + $0x3688] sm:$0xff]
        %v2076 = vld [vmem:[%s234 + $0x3690] sm:$0xff]
        %v2077 = vld [vmem:[%s234 + $0x3698] sm:$0xff]
        %v2078 = vld [vmem:[%s234 + $0x36a0] sm:$0xff]
        %v2079 = vld [vmem:[%s234 + $0x36a8] sm:$0xff]
        %v2080 = vld [vmem:[%s234 + $0x36b0] sm:$0xff]
        %v2081 = vld [vmem:[%s234 + $0x36b8] sm:$0xff]
        %v2082 = vld [vmem:[%s234 + $0x36c0] sm:$0xff]
        %v2083 = vld [vmem:[%s234 + $0x36c8] sm:$0xff]
        %v2084 = vld [vmem:[%s234 + $0x36d0] sm:$0xff]
        %v2085 = vld [vmem:[%s234 + $0x36d8] sm:$0xff]
        %v2086 = vld [vmem:[%s234 + $0x36e0] sm:$0xff]
        %v2087 = vld [vmem:[%s234 + $0x36e8] sm:$0xff]
        %v2088 = vld [vmem:[%s234 + $0x36f0] sm:$0xff]
        %v2089 = vld [vmem:[%s234 + $0x36f8] sm:$0xff]
        %v2090 = vld [vmem:[%s234 + $0x3700] sm:$0xff]
        %v2091 = vld [vmem:[%s234 + $0x3708] sm:$0xff]
        %v2092 = vld [vmem:[%s234 + $0x3710] sm:$0xff]
        %v2093 = vld [vmem:[%s234 + $0x3718] sm:$0xff]
        %v2094 = vld [vmem:[%s234 + $0x3720] sm:$0xff]
        %v2095 = vld [vmem:[%s234 + $0x3728] sm:$0xff]
        %v2096 = vld [vmem:[%s234 + $0x3730] sm:$0xff]
        %v2097 = vld [vmem:[%s234 + $0x3738] sm:$0xff]
        %v2098 = vld [vmem:[%s234 + $0x3740] sm:$0xff]
        %v2099 = vld [vmem:[%s234 + $0x3748] sm:$0xff]
        %v2100 = vld [vmem:[%s234 + $0x3750] sm:$0xff]
        %v2101 = vld [vmem:[%s234 + $0x3758] sm:$0xff]
        %v2102 = vld [vmem:[%s234 + $0x3760] sm:$0xff]
        %v2103 = vld [vmem:[%s234 + $0x3768] sm:$0xff]
        %v2104 = vld [vmem:[%s234 + $0x3770] sm:$0xff]
        %v2105 = vld [vmem:[%s234 + $0x3778] sm:$0xff]
        %v2106 = vld [vmem:[%s234 + $0x3780] sm:$0xff]
        %v2107 = vld [vmem:[%s234 + $0x3788] sm:$0xff]
        %v2108 = vld [vmem:[%s234 + $0x3790] sm:$0xff]
        %v2109 = vld [vmem:[%s234 + $0x3798] sm:$0xff]
        %v2110 = vld [vmem:[%s234 + $0x37a0] sm:$0xff]
        %v2111 = vld [vmem:[%s234 + $0x37a8] sm:$0xff]
        %v2112 = vld [vmem:[%s234 + $0x37b0] sm:$0xff]
        %v2113 = vld [vmem:[%s234 + $0x37b8] sm:$0xff]
        %v2114 = vld [vmem:[%s234 + $0x37c0] sm:$0xff]
        %v2115 = vld [vmem:[%s234 + $0x37c8] sm:$0xff]
        %v2116 = vld [vmem:[%s234 + $0x37d0] sm:$0xff]
        %v2117 = vld [vmem:[%s234 + $0x37d8] sm:$0xff]
        %v2118 = vld [vmem:[%s234 + $0x37e0] sm:$0xff]
        %v2119 = vld [vmem:[%s234 + $0x37e8] sm:$0xff]
        %v2120 = vld [vmem:[%s234 + $0x37f0] sm:$0xff]
        %v2121 = vld [vmem:[%s234 + $0x37f8] sm:$0xff]
        %v2122 = vld [vmem:[%s234 + $0x3800] sm:$0xff]
        %v2123 = vld [vmem:[%s234 + $0x3808] sm:$0xff]
        %v2124 = vld [vmem:[%s234 + $0x3810] sm:$0xff]
        %v2125 = vld [vmem:[%s234 + $0x3818] sm:$0xff]
        %v2126 = vld [vmem:[%s234 + $0x3820] sm:$0xff]
        %v2127 = vld [vmem:[%s234 + $0x3828] sm:$0xff]
        %v2128 = vld [vmem:[%s234 + $0x3830] sm:$0xff]
        %v2129 = vld [vmem:[%s234 + $0x3838] sm:$0xff]
        %v2130 = vld [vmem:[%s234 + $0x3840] sm:$0xff]
        %v2131 = vld [vmem:[%s234 + $0x3848] sm:$0xff]
        %v2132 = vld [vmem:[%s234 + $0x3850] sm:$0xff]
        %v2133 = vld [vmem:[%s234 + $0x3858] sm:$0xff]
        %v2134 = vld [vmem:[%s234 + $0x3860] sm:$0xff]
        %v2135 = vld [vmem:[%s234 + $0x3868] sm:$0xff]
        %v2136 = vld [vmem:[%s234 + $0x3870] sm:$0xff]
        %v2137 = vld [vmem:[%s234 + $0x3878] sm:$0xff]
        %v2138 = vld [vmem:[%s234 + $0x3880] sm:$0xff]
        %v2139 = vld [vmem:[%s234 + $0x3888] sm:$0xff]
        %v2140 = vld [vmem:[%s234 + $0x3890] sm:$0xff]
        %v2141 = vld [vmem:[%s234 + $0x3898] sm:$0xff]
        %v2142 = vld [vmem:[%s234 + $0x38a0] sm:$0xff]
        %v2143 = vld [vmem:[%s234 + $0x38a8] sm:$0xff]
        %v2144 = vld [vmem:[%s234 + $0x38b0] sm:$0xff]
        %v2145 = vld [vmem:[%s234 + $0x38b8] sm:$0xff]
        %v2146 = vld [vmem:[%s234 + $0x38c0] sm:$0xff]
        %v2147 = vld [vmem:[%s234 + $0x38c8] sm:$0xff]
        %v2148 = vld [vmem:[%s234 + $0x38d0] sm:$0xff]
        %v2149 = vld [vmem:[%s234 + $0x38d8] sm:$0xff]
        %v2150 = vld [vmem:[%s234 + $0x38e0] sm:$0xff]
        %v2151 = vld [vmem:[%s234 + $0x38e8] sm:$0xff]
        %v2152 = vld [vmem:[%s234 + $0x38f0] sm:$0xff]
        %v2153 = vld [vmem:[%s234 + $0x38f8] sm:$0xff]
        %v2154 = vld [vmem:[%s234 + $0x3900] sm:$0xff]
        %v2155 = vld [vmem:[%s234 + $0x3908] sm:$0xff]
        %v2156 = vld [vmem:[%s234 + $0x3910] sm:$0xff]
        %v2157 = vld [vmem:[%s234 + $0x3918] sm:$0xff]
        %v2158 = vld [vmem:[%s234 + $0x3920] sm:$0xff]
        %v2159 = vld [vmem:[%s234 + $0x3928] sm:$0xff]
        %v2160 = vld [vmem:[%s234 + $0x3930] sm:$0xff]
        %v2161 = vld [vmem:[%s234 + $0x3938] sm:$0xff]
        %v2162 = vld [vmem:[%s234 + $0x3940] sm:$0xff]
        %v2163 = vld [vmem:[%s234 + $0x3948] sm:$0xff]
        %v2164 = vld [vmem:[%s234 + $0x3950] sm:$0xff]
        %v2165 = vld [vmem:[%s234 + $0x3958] sm:$0xff]
        %v2166 = vld [vmem:[%s234 + $0x3960] sm:$0xff]
        %v2167 = vld [vmem:[%s234 + $0x3968] sm:$0xff]
        %v2168 = vld [vmem:[%s234 + $0x3970] sm:$0xff]
        %v2169 = vld [vmem:[%s234 + $0x3978] sm:$0xff]
        %v2170 = vld [vmem:[%s234 + $0x3980] sm:$0xff]
        %v2171 = vld [vmem:[%s234 + $0x3988] sm:$0xff]
        %v2172 = vld [vmem:[%s234 + $0x3990] sm:$0xff]
        %v2173 = vld [vmem:[%s234 + $0x3998] sm:$0xff]
        %v2174 = vld [vmem:[%s234 + $0x39a0] sm:$0xff]
        %v2175 = vld [vmem:[%s234 + $0x39a8] sm:$0xff]
        %v2176 = vld [vmem:[%s234 + $0x39b0] sm:$0xff]
        %v2177 = vld [vmem:[%s234 + $0x39b8] sm:$0xff]
        %v2178 = vld [vmem:[%s234 + $0x39c0] sm:$0xff]
        %v2179 = vld [vmem:[%s234 + $0x39c8] sm:$0xff]
        %v2180 = vld [vmem:[%s234 + $0x39d0] sm:$0xff]
        %v2181 = vld [vmem:[%s234 + $0x39d8] sm:$0xff]
        %v2182 = vld [vmem:[%s234 + $0x39e0] sm:$0xff]
        %v2183 = vld [vmem:[%s234 + $0x39e8] sm:$0xff]
        %v2184 = vld [vmem:[%s234 + $0x39f0] sm:$0xff]
        %v2185 = vld [vmem:[%s234 + $0x39f8] sm:$0xff]
        %v2186 = vld [vmem:[%s234 + $0x3a00] sm:$0xff]
        %v2187 = vld [vmem:[%s234 + $0x3a08] sm:$0xff]
        %v2188 = vld [vmem:[%s234 + $0x3a10] sm:$0xff]
        %v2189 = vld [vmem:[%s234 + $0x3a18] sm:$0xff]
        %v2190 = vld [vmem:[%s234 + $0x3a20] sm:$0xff]
        %v2191 = vld [vmem:[%s234 + $0x3a28] sm:$0xff]
        %v2192 = vld [vmem:[%s234 + $0x3a30] sm:$0xff]
        %v2193 = vld [vmem:[%s234 + $0x3a38] sm:$0xff]
        %v2194 = vld [vmem:[%s234 + $0x3a40] sm:$0xff]
        %v2195 = vld [vmem:[%s234 + $0x3a48] sm:$0xff]
        %v2196 = vld [vmem:[%s234 + $0x3a50] sm:$0xff]
        %v2197 = vld [vmem:[%s234 + $0x3a58] sm:$0xff]
        %v2198 = vld [vmem:[%s234 + $0x3a60] sm:$0xff]
        %v2199 = vld [vmem:[%s234 + $0x3a68] sm:$0xff]
        %v2200 = vld [vmem:[%s234 + $0x3a70] sm:$0xff]
        %v2201 = vld [vmem:[%s234 + $0x3a78] sm:$0xff]
        %v2202 = vld [vmem:[%s234 + $0x3a80] sm:$0xff]
        %v2203 = vld [vmem:[%s234 + $0x3a88] sm:$0xff]
        %v2204 = vld [vmem:[%s234 + $0x3a90] sm:$0xff]
        %v2205 = vld [vmem:[%s234 + $0x3a98] sm:$0xff]
        %v2206 = vld [vmem:[%s234 + $0x3aa0] sm:$0xff]
        %v2207 = vld [vmem:[%s234 + $0x3aa8] sm:$0xff]
        %v2208 = vld [vmem:[%s234 + $0x3ab0] sm:$0xff]
        %v2209 = vld [vmem:[%s234 + $0x3ab8] sm:$0xff]
        %v2210 = vld [vmem:[%s234 + $0x3ac0] sm:$0xff]
        %v2211 = vld [vmem:[%s234 + $0x3ac8] sm:$0xff]
        %v2212 = vld [vmem:[%s234 + $0x3ad0] sm:$0xff]
        %v2213 = vld [vmem:[%s234 + $0x3ad8] sm:$0xff]
        %v2214 = vld [vmem:[%s234 + $0x3ae0] sm:$0xff]
        %v2215 = vld [vmem:[%s234 + $0x3ae8] sm:$0xff]
        %v2216 = vld [vmem:[%s234 + $0x3af0] sm:$0xff]
        %v2217 = vld [vmem:[%s234 + $0x3af8] sm:$0xff]
        %v2218 = vld [vmem:[%s234 + $0x3b00] sm:$0xff]
        %v2219 = vld [vmem:[%s234 + $0x3b08] sm:$0xff]
        %v2220 = vld [vmem:[%s234 + $0x3b10] sm:$0xff]
        %v2221 = vld [vmem:[%s234 + $0x3b18] sm:$0xff]
        %v2222 = vld [vmem:[%s234 + $0x3b20] sm:$0xff]
        %v2223 = vld [vmem:[%s234 + $0x3b28] sm:$0xff]
        %v2224 = vld [vmem:[%s234 + $0x3b30] sm:$0xff]
        %v2225 = vld [vmem:[%s234 + $0x3b38] sm:$0xff]
        %v2226 = vld [vmem:[%s234 + $0x3b40] sm:$0xff]
        %v2227 = vld [vmem:[%s234 + $0x3b48] sm:$0xff]
        %v2228 = vld [vmem:[%s234 + $0x3b50] sm:$0xff]
        %v2229 = vld [vmem:[%s234 + $0x3b58] sm:$0xff]
        %v2230 = vld [vmem:[%s234 + $0x3b60] sm:$0xff]
        %v2231 = vld [vmem:[%s234 + $0x3b68] sm:$0xff]
        %v2232 = vld [vmem:[%s234 + $0x3b70] sm:$0xff]
        %v2233 = vld [vmem:[%s234 + $0x3b78] sm:$0xff]
        %v2234 = vld [vmem:[%s234 + $0x3b80] sm:$0xff]
        %v2235 = vld [vmem:[%s234 + $0x3b88] sm:$0xff]
        %v2236 = vld [vmem:[%s234 + $0x3b90] sm:$0xff]
        %v2237 = vld [vmem:[%s234 + $0x3b98] sm:$0xff]
        %v2238 = vld [vmem:[%s234 + $0x3ba0] sm:$0xff]
        %v2239 = vld [vmem:[%s234 + $0x3ba8] sm:$0xff]
        %v2240 = vld [vmem:[%s234 + $0x3bb0] sm:$0xff]
        %v2241 = vld [vmem:[%s234 + $0x3bb8] sm:$0xff]
        %v2242 = vld [vmem:[%s234 + $0x3bc0] sm:$0xff]
        %v2243 = vld [vmem:[%s234 + $0x3bc8] sm:$0xff]
        %v2244 = vld [vmem:[%s234 + $0x3bd0] sm:$0xff]
        %v2245 = vld [vmem:[%s234 + $0x3bd8] sm:$0xff]
        %v2246 = vld [vmem:[%s234 + $0x3be0] sm:$0xff]
        %v2247 = vld [vmem:[%s234 + $0x3be8] sm:$0xff]
        %v2248 = vld [vmem:[%s234 + $0x3bf0] sm:$0xff]
        %v2249 = vld [vmem:[%s234 + $0x3bf8] sm:$0xff]
        %v2250 = vld [vmem:[%s234 + $0x3c00] sm:$0xff]
        %v2251 = vld [vmem:[%s234 + $0x3c08] sm:$0xff]
        %v2252 = vld [vmem:[%s234 + $0x3c10] sm:$0xff]
        %v2253 = vld [vmem:[%s234 + $0x3c18] sm:$0xff]
        %v2254 = vld [vmem:[%s234 + $0x3c20] sm:$0xff]
        %v2255 = vld [vmem:[%s234 + $0x3c28] sm:$0xff]
        %v2256 = vld [vmem:[%s234 + $0x3c30] sm:$0xff]
        %v2257 = vld [vmem:[%s234 + $0x3c38] sm:$0xff]
        %v2258 = vld [vmem:[%s234 + $0x3c40] sm:$0xff]
        %v2259 = vld [vmem:[%s234 + $0x3c48] sm:$0xff]
        %v2260 = vld [vmem:[%s234 + $0x3c50] sm:$0xff]
        %v2261 = vld [vmem:[%s234 + $0x3c58] sm:$0xff]
        %v2262 = vld [vmem:[%s234 + $0x3c60] sm:$0xff]
        %v2263 = vld [vmem:[%s234 + $0x3c68] sm:$0xff]
        %v2264 = vld [vmem:[%s234 + $0x3c70] sm:$0xff]
        %v2265 = vld [vmem:[%s234 + $0x3c78] sm:$0xff]
        %v2266 = vld [vmem:[%s234 + $0x3c80] sm:$0xff]
        %v2267 = vld [vmem:[%s234 + $0x3c88] sm:$0xff]
        %v2268 = vld [vmem:[%s234 + $0x3c90] sm:$0xff]
        %v2269 = vld [vmem:[%s234 + $0x3c98] sm:$0xff]
        %v2270 = vld [vmem:[%s234 + $0x3ca0] sm:$0xff]
        %v2271 = vld [vmem:[%s234 + $0x3ca8] sm:$0xff]
        %v2272 = vld [vmem:[%s234 + $0x3cb0] sm:$0xff]
        %v2273 = vld [vmem:[%s234 + $0x3cb8] sm:$0xff]
        %v2274 = vld [vmem:[%s234 + $0x3cc0] sm:$0xff]
        %v2275 = vld [vmem:[%s234 + $0x3cc8] sm:$0xff]
        %v2276 = vld [vmem:[%s234 + $0x3cd0] sm:$0xff]
        %v2277 = vld [vmem:[%s234 + $0x3cd8] sm:$0xff]
        %v2278 = vld [vmem:[%s234 + $0x3ce0] sm:$0xff]
        %v2279 = vld [vmem:[%s234 + $0x3ce8] sm:$0xff]
        %v2280 = vld [vmem:[%s234 + $0x3cf0] sm:$0xff]
        %v2281 = vld [vmem:[%s234 + $0x3cf8] sm:$0xff]
        %v2282 = vld [vmem:[%s234 + $0x3d00] sm:$0xff]
        %v2283 = vld [vmem:[%s234 + $0x3d08] sm:$0xff]
        %v2284 = vld [vmem:[%s234 + $0x3d10] sm:$0xff]
        %v2285 = vld [vmem:[%s234 + $0x3d18] sm:$0xff]
        %v2286 = vld [vmem:[%s234 + $0x3d20] sm:$0xff]
        %v2287 = vld [vmem:[%s234 + $0x3d28] sm:$0xff]
        %v2288 = vld [vmem:[%s234 + $0x3d30] sm:$0xff]
        %v2289 = vld [vmem:[%s234 + $0x3d38] sm:$0xff]
        %v2290 = vld [vmem:[%s234 + $0x3d40] sm:$0xff]
        %v2291 = vld [vmem:[%s234 + $0x3d48] sm:$0xff]
        %v2292 = vld [vmem:[%s234 + $0x3d50] sm:$0xff]
        %v2293 = vld [vmem:[%s234 + $0x3d58] sm:$0xff]
        %v2294 = vld [vmem:[%s234 + $0x3d60] sm:$0xff]
        %v2295 = vld [vmem:[%s234 + $0x3d68] sm:$0xff]
        %v2296 = vld [vmem:[%s234 + $0x3d70] sm:$0xff]
        %v2297 = vld [vmem:[%s234 + $0x3d78] sm:$0xff]
        %v2298 = vld [vmem:[%s234 + $0x3d80] sm:$0xff]
        %v2299 = vld [vmem:[%s234 + $0x3d88] sm:$0xff]
        %v2300 = vld [vmem:[%s234 + $0x3d90] sm:$0xff]
        %v2301 = vld [vmem:[%s234 + $0x3d98] sm:$0xff]
        %v2302 = vld [vmem:[%s234 + $0x3da0] sm:$0xff]
        %v2303 = vld [vmem:[%s234 + $0x3da8] sm:$0xff]
        %v2304 = vld [vmem:[%s234 + $0x3db0] sm:$0xff]
        %v2305 = vld [vmem:[%s234 + $0x3db8] sm:$0xff]
        %v2306 = vld [vmem:[%s234 + $0x3dc0] sm:$0xff]
        %v2307 = vld [vmem:[%s234 + $0x3dc8] sm:$0xff]
        %v2308 = vld [vmem:[%s234 + $0x3dd0] sm:$0xff]
        %v2309 = vld [vmem:[%s234 + $0x3dd8] sm:$0xff]
        %v2310 = vld [vmem:[%s234 + $0x3de0] sm:$0xff]
        %v2311 = vld [vmem:[%s234 + $0x3de8] sm:$0xff]
        %v2312 = vld [vmem:[%s234 + $0x3df0] sm:$0xff]
        %v2313 = vld [vmem:[%s234 + $0x3df8] sm:$0xff]
        %v2314 = vld [vmem:[%s234 + $0x3e00] sm:$0xff]
        %v2315 = vld [vmem:[%s234 + $0x3e08] sm:$0xff]
        %v2316 = vld [vmem:[%s234 + $0x3e10] sm:$0xff]
        %v2317 = vld [vmem:[%s234 + $0x3e18] sm:$0xff]
        %v2318 = vld [vmem:[%s234 + $0x3e20] sm:$0xff]
        %v2319 = vld [vmem:[%s234 + $0x3e28] sm:$0xff]
        %v2320 = vld [vmem:[%s234 + $0x3e30] sm:$0xff]
        %v2321 = vld [vmem:[%s234 + $0x3e38] sm:$0xff]
        %v2322 = vld [vmem:[%s234 + $0x3e40] sm:$0xff]
        %v2323 = vld [vmem:[%s234 + $0x3e48] sm:$0xff]
        %v2324 = vld [vmem:[%s234 + $0x3e50] sm:$0xff]
        %v2325 = vld [vmem:[%s234 + $0x3e58] sm:$0xff]
        %v2326 = vld [vmem:[%s234 + $0x3e60] sm:$0xff]
        %v2327 = vld [vmem:[%s234 + $0x3e68] sm:$0xff]
        %v2328 = vld [vmem:[%s234 + $0x3e70] sm:$0xff]
        %v2329 = vld [vmem:[%s234 + $0x3e78] sm:$0xff]
        %v2330 = vld [vmem:[%s234 + $0x3e80] sm:$0xff]
        %v2331 = vld [vmem:[%s234 + $0x3e88] sm:$0xff]
        %v2332 = vld [vmem:[%s234 + $0x3e90] sm:$0xff]
        %v2333 = vld [vmem:[%s234 + $0x3e98] sm:$0xff]
        %v2334 = vld [vmem:[%s234 + $0x3ea0] sm:$0xff]
        %v2335 = vld [vmem:[%s234 + $0x3ea8] sm:$0xff]
        %v2336 = vld [vmem:[%s234 + $0x3eb0] sm:$0xff]
        %v2337 = vld [vmem:[%s234 + $0x3eb8] sm:$0xff]
        %v2338 = vld [vmem:[%s234 + $0x3ec0] sm:$0xff]
        %v2339 = vld [vmem:[%s234 + $0x3ec8] sm:$0xff]
        %v2340 = vld [vmem:[%s234 + $0x3ed0] sm:$0xff]
        %v2341 = vld [vmem:[%s234 + $0x3ed8] sm:$0xff]
        %v2342 = vld [vmem:[%s234 + $0x3ee0] sm:$0xff]
        %v2343 = vld [vmem:[%s234 + $0x3ee8] sm:$0xff]
        %v2344 = vld [vmem:[%s234 + $0x3ef0] sm:$0xff]
        %v2345 = vld [vmem:[%s234 + $0x3ef8] sm:$0xff]
        %v2346 = vld [vmem:[%s234 + $0x3f00] sm:$0xff]
        %v2347 = vld [vmem:[%s234 + $0x3f08] sm:$0xff]
        %v2348 = vld [vmem:[%s234 + $0x3f10] sm:$0xff]
        %v2349 = vld [vmem:[%s234 + $0x3f18] sm:$0xff]
        %v2350 = vld [vmem:[%s234 + $0x3f20] sm:$0xff]
        %v2351 = vld [vmem:[%s234 + $0x3f28] sm:$0xff]
        %v2352 = vld [vmem:[%s234 + $0x3f30] sm:$0xff]
        %v2353 = vld [vmem:[%s234 + $0x3f38] sm:$0xff]
        %v2354 = vld [vmem:[%s234 + $0x3f40] sm:$0xff]
        %v2355 = vld [vmem:[%s234 + $0x3f48] sm:$0xff]
        %v2356 = vld [vmem:[%s234 + $0x3f50] sm:$0xff]
        %v2357 = vld [vmem:[%s234 + $0x3f58] sm:$0xff]
        %v2358 = vld [vmem:[%s234 + $0x3f60] sm:$0xff]
        %v2359 = vld [vmem:[%s234 + $0x3f68] sm:$0xff]
        %v2360 = vld [vmem:[%s234 + $0x3f70] sm:$0xff]
        %v2361 = vld [vmem:[%s234 + $0x3f78] sm:$0xff]
        %v2362 = vld [vmem:[%s234 + $0x3f80] sm:$0xff]
        %v2363 = vld [vmem:[%s234 + $0x3f88] sm:$0xff]
        %v2364 = vld [vmem:[%s234 + $0x3f90] sm:$0xff]
        %v2365 = vld [vmem:[%s234 + $0x3f98] sm:$0xff]
        %v2366 = vld [vmem:[%s234 + $0x3fa0] sm:$0xff]
        %v2367 = vld [vmem:[%s234 + $0x3fa8] sm:$0xff]
        %v2368 = vld [vmem:[%s234 + $0x3fb0] sm:$0xff]
        %v2369 = vld [vmem:[%s234 + $0x3fb8] sm:$0xff]
        %v2370 = vld [vmem:[%s234 + $0x3fc0] sm:$0xff]
        %v2371 = vld [vmem:[%s234 + $0x3fc8] sm:$0xff]
        %v2372 = vld [vmem:[%s234 + $0x3fd0] sm:$0xff]
        %v2373 = vld [vmem:[%s234 + $0x3fd8] sm:$0xff]
        %v2374 = vld [vmem:[%s234 + $0x3fe0] sm:$0xff]
        %v2375 = vld [vmem:[%s234 + $0x3fe8] sm:$0xff]
        %v2376 = vld [vmem:[%s234 + $0x3ff0] sm:$0xff]
        %v2377 = vld [vmem:[%s234 + $0x3ff8] sm:$0xff]
        %2378 = vmatprep.subr.mxu0 %v331
        %2379 = vmatpush1.msra.mxu0 %v330
        %2380 = vmatprep.subr.mxu0 %v335
        %2381 = vmatpush1.msra.mxu0 %v334
        %2382 = vmatprep.subr.mxu0 %v339
        %2383 = vmatpush1.msra.mxu0 %v338
        %2384 = vmatprep.subr.mxu0 %v343
        %2385 = vmatpush1.msra.mxu0 %v342
        %2386 = vmatprep.subr.mxu0 %v347
        %2387 = vmatpush1.msra.mxu0 %v346
        %2388 = vmatprep.subr.mxu0 %v351
        %2389 = vmatpush1.msra.mxu0 %v350
        %2390 = vmatprep.subr.mxu0 %v355
        %2391 = vmatpush1.msra.mxu0 %v354
        %2392 = vmatprep.subr.mxu0 %v359
        %2393 = vmatpush1.msra.mxu0 %v358
        %2394 = vmatprep.subr.mxu0 %v363
        %2395 = vmatpush1.msra.mxu0 %v362
        %2396 = vmatprep.subr.mxu0 %v367
        %2397 = vmatpush1.msra.mxu0 %v366
        %2398 = vmatprep.subr.mxu0 %v371
        %2399 = vmatpush1.msra.mxu0 %v370
        %2400 = vmatprep.subr.mxu0 %v375
        %2401 = vmatpush1.msra.mxu0 %v374
        %2402 = vmatprep.subr.mxu0 %v379
        %2403 = vmatpush1.msra.mxu0 %v378
        %2404 = vmatprep.subr.mxu0 %v383
        %2405 = vmatpush1.msra.mxu0 %v382
        %2406 = vmatprep.subr.mxu0 %v387
        %2407 = vmatpush1.msra.mxu0 %v386
        %2408 = vmatprep.subr.mxu0 %v391
        %2409 = vmatpush1.msra.mxu0 %v390
        %2410 = vmatprep.subr.mxu0 %v395
        %2411 = vmatpush1.msra.mxu0 %v394
        %2412 = vmatprep.subr.mxu0 %v399
        %2413 = vmatpush1.msra.mxu0 %v398
        %2414 = vmatprep.subr.mxu0 %v403
        %2415 = vmatpush1.msra.mxu0 %v402
        %2416 = vmatprep.subr.mxu0 %v407
        %2417 = vmatpush1.msra.mxu0 %v406
        %2418 = vmatprep.subr.mxu0 %v411
        %2419 = vmatpush1.msra.mxu0 %v410
        %2420 = vmatprep.subr.mxu0 %v415
        %2421 = vmatpush1.msra.mxu0 %v414
        %2422 = vmatprep.subr.mxu0 %v419
        %2423 = vmatpush1.msra.mxu0 %v418
        %2424 = vmatprep.subr.mxu0 %v423
        %2425 = vmatpush1.msra.mxu0 %v422
        %2426 = vmatprep.subr.mxu0 %v427
        %2427 = vmatpush1.msra.mxu0 %v426
        %2428 = vmatprep.subr.mxu0 %v431
        %2429 = vmatpush1.msra.mxu0 %v430
        %2430 = vmatprep.subr.mxu0 %v435
        %2431 = vmatpush1.msra.mxu0 %v434
        %2432 = vmatprep.subr.mxu0 %v439
        %2433 = vmatpush1.msra.mxu0 %v438
        %2434 = vmatprep.subr.mxu0 %v443
        %2435 = vmatpush1.msra.mxu0 %v442
        %2436 = vmatprep.subr.mxu0 %v447
        %2437 = vmatpush1.msra.mxu0 %v446
        %2438 = vmatprep.subr.mxu0 %v451
        %2439 = vmatpush1.msra.mxu0 %v450
        %2440 = vmatprep.subr.mxu0 %v455
        %2441 = vmatpush1.msra.mxu0 %v454
        %2442 = vmatprep.mubr.f32.mxu0 %v299
        %2443 = vmatmul.mubr.f32.gmra.mrb[0].mxu0 %v298
        %v2444 = vpop.f32.mrb[0].mxu0
        %v2445 = vadd.f32 0.0, %v2444
        %v2446 = vpop.f32.mrb[0].mxu0
        %v2447 = vadd.f32 0.0, %v2446
        %2448 = vdwg.mxu0
        %2449 = vmatprep.subr.mxu0 %v459
        %2450 = vmatpush1.msra.mxu0 %v458
        %2451 = vmatprep.subr.mxu0 %v463
        %2452 = vmatpush1.msra.mxu0 %v462
        %2453 = vmatprep.subr.mxu0 %v467
        %2454 = vmatpush1.msra.mxu0 %v466
        %2455 = vmatprep.subr.mxu0 %v471
        %2456 = vmatpush1.msra.mxu0 %v470
        %2457 = vmatprep.subr.mxu0 %v475
        %2458 = vmatpush1.msra.mxu0 %v474
        %2459 = vmatprep.subr.mxu0 %v479
        %2460 = vmatpush1.msra.mxu0 %v478
        %2461 = vmatprep.subr.mxu0 %v483
        %2462 = vmatpush1.msra.mxu0 %v482
        %2463 = vmatprep.subr.mxu0 %v487
        %2464 = vmatpush1.msra.mxu0 %v486
        %2465 = vmatprep.subr.mxu0 %v491
        %2466 = vmatpush1.msra.mxu0 %v490
        %2467 = vmatprep.subr.mxu0 %v495
        %2468 = vmatpush1.msra.mxu0 %v494
        %2469 = vmatprep.subr.mxu0 %v499
        %2470 = vmatpush1.msra.mxu0 %v498
        %2471 = vmatprep.subr.mxu0 %v503
        %2472 = vmatpush1.msra.mxu0 %v502
        %2473 = vmatprep.subr.mxu0 %v507
        %2474 = vmatpush1.msra.mxu0 %v506
        %2475 = vmatprep.subr.mxu0 %v511
        %2476 = vmatpush1.msra.mxu0 %v510
        %2477 = vmatprep.subr.mxu0 %v515
        %2478 = vmatpush1.msra.mxu0 %v514
        %2479 = vmatprep.subr.mxu0 %v519
        %2480 = vmatpush1.msra.mxu0 %v518
        %2481 = vmatprep.subr.mxu0 %v523
        %2482 = vmatpush1.msra.mxu0 %v522
        %2483 = vmatprep.subr.mxu0 %v527
        %2484 = vmatpush1.msra.mxu0 %v526
        %2485 = vmatprep.subr.mxu0 %v531
        %2486 = vmatpush1.msra.mxu0 %v530
        %2487 = vmatprep.subr.mxu0 %v535
        %2488 = vmatpush1.msra.mxu0 %v534
        %2489 = vmatprep.subr.mxu0 %v539
        %2490 = vmatpush1.msra.mxu0 %v538
        %2491 = vmatprep.subr.mxu0 %v543
        %2492 = vmatpush1.msra.mxu0 %v542
        %2493 = vmatprep.subr.mxu0 %v547
        %2494 = vmatpush1.msra.mxu0 %v546
        %2495 = vmatprep.subr.mxu0 %v551
        %2496 = vmatpush1.msra.mxu0 %v550
        %2497 = vmatprep.subr.mxu0 %v555
        %2498 = vmatpush1.msra.mxu0 %v554
        %2499 = vmatprep.subr.mxu0 %v559
        %2500 = vmatpush1.msra.mxu0 %v558
        %2501 = vmatprep.subr.mxu0 %v563
        %2502 = vmatpush1.msra.mxu0 %v562
        %2503 = vmatprep.subr.mxu0 %v567
        %2504 = vmatpush1.msra.mxu0 %v566
        %2505 = vmatprep.subr.mxu0 %v571
        %2506 = vmatpush1.msra.mxu0 %v570
        %2507 = vmatprep.subr.mxu0 %v575
        %2508 = vmatpush1.msra.mxu0 %v574
        %2509 = vmatprep.subr.mxu0 %v579
        %2510 = vmatpush1.msra.mxu0 %v578
        %2511 = vmatprep.subr.mxu0 %v583
        %2512 = vmatpush1.msra.mxu0 %v582
        %2513 = vmatprep.mubr.f32.mxu0 %v301
        %2514 = vmatmul.mubr.f32.gmra.mrb[0].mxu0 %v300
        %v2515 = vpop.f32.mrb[0].mxu0
        %v2516 = vadd.f32 %v2445, %v2515
        %v2517 = vpop.f32.mrb[0].mxu0
        %v2518 = vadd.f32 %v2447, %v2517
        %2519 = vdwg.mxu0
        %2520 = vmatprep.subr.mxu0 %v587
        %2521 = vmatpush1.msra.mxu0 %v586
        %2522 = vmatprep.subr.mxu0 %v591
        %2523 = vmatpush1.msra.mxu0 %v590
        %2524 = vmatprep.subr.mxu0 %v595
        %2525 = vmatpush1.msra.mxu0 %v594
        %2526 = vmatprep.subr.mxu0 %v599
        %2527 = vmatpush1.msra.mxu0 %v598
        %2528 = vmatprep.subr.mxu0 %v603
        %2529 = vmatpush1.msra.mxu0 %v602
        %2530 = vmatprep.subr.mxu0 %v607
        %2531 = vmatpush1.msra.mxu0 %v606
        %2532 = vmatprep.subr.mxu0 %v611
        %2533 = vmatpush1.msra.mxu0 %v610
        %2534 = vmatprep.subr.mxu0 %v615
        %2535 = vmatpush1.msra.mxu0 %v614
        %2536 = vmatprep.subr.mxu0 %v619
        %2537 = vmatpush1.msra.mxu0 %v618
        %2538 = vmatprep.subr.mxu0 %v623
        %2539 = vmatpush1.msra.mxu0 %v622
        %2540 = vmatprep.subr.mxu0 %v627
        %2541 = vmatpush1.msra.mxu0 %v626
        %2542 = vmatprep.subr.mxu0 %v631
        %2543 = vmatpush1.msra.mxu0 %v630
        %2544 = vmatprep.subr.mxu0 %v635
        %2545 = vmatpush1.msra.mxu0 %v634
        %2546 = vmatprep.subr.mxu0 %v639
        %2547 = vmatpush1.msra.mxu0 %v638
        %2548 = vmatprep.subr.mxu0 %v643
        %2549 = vmatpush1.msra.mxu0 %v642
        %2550 = vmatprep.subr.mxu0 %v647
        %2551 = vmatpush1.msra.mxu0 %v646
        %2552 = vmatprep.subr.mxu0 %v651
        %2553 = vmatpush1.msra.mxu0 %v650
        %2554 = vmatprep.subr.mxu0 %v655
        %2555 = vmatpush1.msra.mxu0 %v654
        %2556 = vmatprep.subr.mxu0 %v659
        %2557 = vmatpush1.msra.mxu0 %v658
        %2558 = vmatprep.subr.mxu0 %v663
        %2559 = vmatpush1.msra.mxu0 %v662
        %2560 = vmatprep.subr.mxu0 %v667
        %2561 = vmatpush1.msra.mxu0 %v666
        %2562 = vmatprep.subr.mxu0 %v671
        %2563 = vmatpush1.msra.mxu0 %v670
        %2564 = vmatprep.subr.mxu0 %v675
        %2565 = vmatpush1.msra.mxu0 %v674
        %2566 = vmatprep.subr.mxu0 %v679
        %2567 = vmatpush1.msra.mxu0 %v678
        %2568 = vmatprep.subr.mxu0 %v683
        %2569 = vmatpush1.msra.mxu0 %v682
        %2570 = vmatprep.subr.mxu0 %v687
        %2571 = vmatpush1.msra.mxu0 %v686
        %2572 = vmatprep.subr.mxu0 %v691
        %2573 = vmatpush1.msra.mxu0 %v690
        %2574 = vmatprep.subr.mxu0 %v695
        %2575 = vmatpush1.msra.mxu0 %v694
        %2576 = vmatprep.subr.mxu0 %v699
        %2577 = vmatpush1.msra.mxu0 %v698
        %2578 = vmatprep.subr.mxu0 %v703
        %2579 = vmatpush1.msra.mxu0 %v702
        %2580 = vmatprep.subr.mxu0 %v707
        %2581 = vmatpush1.msra.mxu0 %v706
        %2582 = vmatprep.subr.mxu0 %v711
        %2583 = vmatpush1.msra.mxu0 %v710
        %2584 = vmatprep.mubr.f32.mxu0 %v303
        %2585 = vmatmul.mubr.f32.gmra.mrb[0].mxu0 %v302
        %v2586 = vpop.f32.mrb[0].mxu0
        %v2587 = vadd.f32 %v2516, %v2586
        %v2588 = vpop.f32.mrb[0].mxu0
        %v2589 = vadd.f32 %v2518, %v2588
        %2590 = vdwg.mxu0
        %2591 = vmatprep.subr.mxu0 %v715
        %2592 = vmatpush1.msra.mxu0 %v714
        %2593 = vmatprep.subr.mxu0 %v719
        %2594 = vmatpush1.msra.mxu0 %v718
        %2595 = vmatprep.subr.mxu0 %v723
        %2596 = vmatpush1.msra.mxu0 %v722
        %2597 = vmatprep.subr.mxu0 %v727
        %2598 = vmatpush1.msra.mxu0 %v726
        %2599 = vmatprep.subr.mxu0 %v731
        %2600 = vmatpush1.msra.mxu0 %v730
        %2601 = vmatprep.subr.mxu0 %v735
        %2602 = vmatpush1.msra.mxu0 %v734
        %2603 = vmatprep.subr.mxu0 %v739
        %2604 = vmatpush1.msra.mxu0 %v738
        %2605 = vmatprep.subr.mxu0 %v743
        %2606 = vmatpush1.msra.mxu0 %v742
        %2607 = vmatprep.subr.mxu0 %v747
        %2608 = vmatpush1.msra.mxu0 %v746
        %2609 = vmatprep.subr.mxu0 %v751
        %2610 = vmatpush1.msra.mxu0 %v750
        %2611 = vmatprep.subr.mxu0 %v755
        %2612 = vmatpush1.msra.mxu0 %v754
        %2613 = vmatprep.subr.mxu0 %v759
        %2614 = vmatpush1.msra.mxu0 %v758
        %2615 = vmatprep.subr.mxu0 %v763
        %2616 = vmatpush1.msra.mxu0 %v762
        %2617 = vmatprep.subr.mxu0 %v767
        %2618 = vmatpush1.msra.mxu0 %v766
        %2619 = vmatprep.subr.mxu0 %v771
        %2620 = vmatpush1.msra.mxu0 %v770
        %2621 = vmatprep.subr.mxu0 %v775
        %2622 = vmatpush1.msra.mxu0 %v774
        %2623 = vmatprep.subr.mxu0 %v779
        %2624 = vmatpush1.msra.mxu0 %v778
        %2625 = vmatprep.subr.mxu0 %v783
        %2626 = vmatpush1.msra.mxu0 %v782
        %2627 = vmatprep.subr.mxu0 %v787
        %2628 = vmatpush1.msra.mxu0 %v786
        %2629 = vmatprep.subr.mxu0 %v791
        %2630 = vmatpush1.msra.mxu0 %v790
        %2631 = vmatprep.subr.mxu0 %v795
        %2632 = vmatpush1.msra.mxu0 %v794
        %2633 = vmatprep.subr.mxu0 %v799
        %2634 = vmatpush1.msra.mxu0 %v798
        %2635 = vmatprep.subr.mxu0 %v803
        %2636 = vmatpush1.msra.mxu0 %v802
        %2637 = vmatprep.subr.mxu0 %v807
        %2638 = vmatpush1.msra.mxu0 %v806
        %2639 = vmatprep.subr.mxu0 %v811
        %2640 = vmatpush1.msra.mxu0 %v810
        %2641 = vmatprep.subr.mxu0 %v815
        %2642 = vmatpush1.msra.mxu0 %v814
        %2643 = vmatprep.subr.mxu0 %v819
        %2644 = vmatpush1.msra.mxu0 %v818
        %2645 = vmatprep.subr.mxu0 %v823
        %2646 = vmatpush1.msra.mxu0 %v822
        %2647 = vmatprep.subr.mxu0 %v827
        %2648 = vmatpush1.msra.mxu0 %v826
        %2649 = vmatprep.subr.mxu0 %v831
        %2650 = vmatpush1.msra.mxu0 %v830
        %2651 = vmatprep.subr.mxu0 %v835
        %2652 = vmatpush1.msra.mxu0 %v834
        %2653 = vmatprep.subr.mxu0 %v839
        %2654 = vmatpush1.msra.mxu0 %v838
        %2655 = vmatprep.mubr.f32.mxu0 %v305
        %2656 = vmatmul.mubr.f32.gmra.mrb[0].mxu0 %v304
        %v2657 = vpop.f32.mrb[0].mxu0
        %v2658 = vadd.f32 %v2587, %v2657
        %v2659 = vpop.f32.mrb[0].mxu0
        %v2660 = vadd.f32 %v2589, %v2659
        %2661 = vdwg.mxu0
        %2662 = vmatprep.subr.mxu0 %v843
        %2663 = vmatpush1.msra.mxu0 %v842
        %2664 = vmatprep.subr.mxu0 %v847
        %2665 = vmatpush1.msra.mxu0 %v846
        %2666 = vmatprep.subr.mxu0 %v851
        %2667 = vmatpush1.msra.mxu0 %v850
        %2668 = vmatprep.subr.mxu0 %v855
        %2669 = vmatpush1.msra.mxu0 %v854
        %2670 = vmatprep.subr.mxu0 %v859
        %2671 = vmatpush1.msra.mxu0 %v858
        %2672 = vmatprep.subr.mxu0 %v863
        %2673 = vmatpush1.msra.mxu0 %v862
        %2674 = vmatprep.subr.mxu0 %v867
        %2675 = vmatpush1.msra.mxu0 %v866
        %2676 = vmatprep.subr.mxu0 %v871
        %2677 = vmatpush1.msra.mxu0 %v870
        %2678 = vmatprep.subr.mxu0 %v875
        %2679 = vmatpush1.msra.mxu0 %v874
        %2680 = vmatprep.subr.mxu0 %v879
        %2681 = vmatpush1.msra.mxu0 %v878
        %2682 = vmatprep.subr.mxu0 %v883
        %2683 = vmatpush1.msra.mxu0 %v882
        %2684 = vmatprep.subr.mxu0 %v887
        %2685 = vmatpush1.msra.mxu0 %v886
        %2686 = vmatprep.subr.mxu0 %v891
        %2687 = vmatpush1.msra.mxu0 %v890
        %2688 = vmatprep.subr.mxu0 %v895
        %2689 = vmatpush1.msra.mxu0 %v894
        %2690 = vmatprep.subr.mxu0 %v899
        %2691 = vmatpush1.msra.mxu0 %v898
        %2692 = vmatprep.subr.mxu0 %v903
        %2693 = vmatpush1.msra.mxu0 %v902
        %2694 = vmatprep.subr.mxu0 %v907
        %2695 = vmatpush1.msra.mxu0 %v906
        %2696 = vmatprep.subr.mxu0 %v911
        %2697 = vmatpush1.msra.mxu0 %v910
        %2698 = vmatprep.subr.mxu0 %v915
        %2699 = vmatpush1.msra.mxu0 %v914
        %2700 = vmatprep.subr.mxu0 %v919
        %2701 = vmatpush1.msra.mxu0 %v918
        %2702 = vmatprep.subr.mxu0 %v923
        %2703 = vmatpush1.msra.mxu0 %v922
        %2704 = vmatprep.subr.mxu0 %v927
        %2705 = vmatpush1.msra.mxu0 %v926
        %2706 = vmatprep.subr.mxu0 %v931
        %2707 = vmatpush1.msra.mxu0 %v930
        %2708 = vmatprep.subr.mxu0 %v935
        %2709 = vmatpush1.msra.mxu0 %v934
        %2710 = vmatprep.subr.mxu0 %v939
        %2711 = vmatpush1.msra.mxu0 %v938
        %2712 = vmatprep.subr.mxu0 %v943
        %2713 = vmatpush1.msra.mxu0 %v942
        %2714 = vmatprep.subr.mxu0 %v947
        %2715 = vmatpush1.msra.mxu0 %v946
        %2716 = vmatprep.subr.mxu0 %v951
        %2717 = vmatpush1.msra.mxu0 %v950
        %2718 = vmatprep.subr.mxu0 %v955
        %2719 = vmatpush1.msra.mxu0 %v954
        %2720 = vmatprep.subr.mxu0 %v959
        %2721 = vmatpush1.msra.mxu0 %v958
        %2722 = vmatprep.subr.mxu0 %v963
        %2723 = vmatpush1.msra.mxu0 %v962
        %2724 = vmatprep.subr.mxu0 %v967
        %2725 = vmatpush1.msra.mxu0 %v966
        %2726 = vmatprep.mubr.f32.mxu0 %v307
        %2727 = vmatmul.mubr.f32.gmra.mrb[0].mxu0 %v306
        %v2728 = vpop.f32.mrb[0].mxu0
        %v2729 = vadd.f32 %v2658, %v2728
        %v2730 = vpop.f32.mrb[0].mxu0
        %v2731 = vadd.f32 %v2660, %v2730
        %2732 = vdwg.mxu0
        %2733 = vmatprep.subr.mxu0 %v971
        %2734 = vmatpush1.msra.mxu0 %v970
        %2735 = vmatprep.subr.mxu0 %v975
        %2736 = vmatpush1.msra.mxu0 %v974
        %2737 = vmatprep.subr.mxu0 %v979
        %2738 = vmatpush1.msra.mxu0 %v978
        %2739 = vmatprep.subr.mxu0 %v983
        %2740 = vmatpush1.msra.mxu0 %v982
        %2741 = vmatprep.subr.mxu0 %v987
        %2742 = vmatpush1.msra.mxu0 %v986
        %2743 = vmatprep.subr.mxu0 %v991
        %2744 = vmatpush1.msra.mxu0 %v990
        %2745 = vmatprep.subr.mxu0 %v995
        %2746 = vmatpush1.msra.mxu0 %v994
        %2747 = vmatprep.subr.mxu0 %v999
        %2748 = vmatpush1.msra.mxu0 %v998
        %2749 = vmatprep.subr.mxu0 %v1003
        %2750 = vmatpush1.msra.mxu0 %v1002
        %2751 = vmatprep.subr.mxu0 %v1007
        %2752 = vmatpush1.msra.mxu0 %v1006
        %2753 = vmatprep.subr.mxu0 %v1011
        %2754 = vmatpush1.msra.mxu0 %v1010
        %2755 = vmatprep.subr.mxu0 %v1015
        %2756 = vmatpush1.msra.mxu0 %v1014
        %2757 = vmatprep.subr.mxu0 %v1019
        %2758 = vmatpush1.msra.mxu0 %v1018
        %2759 = vmatprep.subr.mxu0 %v1023
        %2760 = vmatpush1.msra.mxu0 %v1022
        %2761 = vmatprep.subr.mxu0 %v1027
        %2762 = vmatpush1.msra.mxu0 %v1026
        %2763 = vmatprep.subr.mxu0 %v1031
        %2764 = vmatpush1.msra.mxu0 %v1030
        %2765 = vmatprep.subr.mxu0 %v1035
        %2766 = vmatpush1.msra.mxu0 %v1034
        %2767 = vmatprep.subr.mxu0 %v1039
        %2768 = vmatpush1.msra.mxu0 %v1038
        %2769 = vmatprep.subr.mxu0 %v1043
        %2770 = vmatpush1.msra.mxu0 %v1042
        %2771 = vmatprep.subr.mxu0 %v1047
        %2772 = vmatpush1.msra.mxu0 %v1046
        %2773 = vmatprep.subr.mxu0 %v1051
        %2774 = vmatpush1.msra.mxu0 %v1050
        %2775 = vmatprep.subr.mxu0 %v1055
        %2776 = vmatpush1.msra.mxu0 %v1054
        %2777 = vmatprep.subr.mxu0 %v1059
        %2778 = vmatpush1.msra.mxu0 %v1058
        %2779 = vmatprep.subr.mxu0 %v1063
        %2780 = vmatpush1.msra.mxu0 %v1062
        %2781 = vmatprep.subr.mxu0 %v1067
        %2782 = vmatpush1.msra.mxu0 %v1066
        %2783 = vmatprep.subr.mxu0 %v1071
        %2784 = vmatpush1.msra.mxu0 %v1070
        %2785 = vmatprep.subr.mxu0 %v1075
        %2786 = vmatpush1.msra.mxu0 %v1074
        %2787 = vmatprep.subr.mxu0 %v1079
        %2788 = vmatpush1.msra.mxu0 %v1078
        %2789 = vmatprep.subr.mxu0 %v1083
        %2790 = vmatpush1.msra.mxu0 %v1082
        %2791 = vmatprep.subr.mxu0 %v1087
        %2792 = vmatpush1.msra.mxu0 %v1086
        %2793 = vmatprep.subr.mxu0 %v1091
        %2794 = vmatpush1.msra.mxu0 %v1090
        %2795 = vmatprep.subr.mxu0 %v1095
        %2796 = vmatpush1.msra.mxu0 %v1094
        %2797 = vmatprep.mubr.f32.mxu0 %v309
        %2798 = vmatmul.mubr.f32.gmra.mrb[0].mxu0 %v308
        %v2799 = vpop.f32.mrb[0].mxu0
        %v2800 = vadd.f32 %v2729, %v2799
        %v2801 = vpop.f32.mrb[0].mxu0
        %v2802 = vadd.f32 %v2731, %v2801
        %2803 = vdwg.mxu0
        %2804 = vmatprep.subr.mxu0 %v1099
        %2805 = vmatpush1.msra.mxu0 %v1098
        %2806 = vmatprep.subr.mxu0 %v1103
        %2807 = vmatpush1.msra.mxu0 %v1102
        %2808 = vmatprep.subr.mxu0 %v1107
        %2809 = vmatpush1.msra.mxu0 %v1106
        %2810 = vmatprep.subr.mxu0 %v1111
        %2811 = vmatpush1.msra.mxu0 %v1110
        %2812 = vmatprep.subr.mxu0 %v1115
        %2813 = vmatpush1.msra.mxu0 %v1114
        %2814 = vmatprep.subr.mxu0 %v1119
        %2815 = vmatpush1.msra.mxu0 %v1118
        %2816 = vmatprep.subr.mxu0 %v1123
        %2817 = vmatpush1.msra.mxu0 %v1122
        %2818 = vmatprep.subr.mxu0 %v1127
        %2819 = vmatpush1.msra.mxu0 %v1126
        %2820 = vmatprep.subr.mxu0 %v1131
        %2821 = vmatpush1.msra.mxu0 %v1130
        %2822 = vmatprep.subr.mxu0 %v1135
        %2823 = vmatpush1.msra.mxu0 %v1134
        %2824 = vmatprep.subr.mxu0 %v1139
        %2825 = vmatpush1.msra.mxu0 %v1138
        %2826 = vmatprep.subr.mxu0 %v1143
        %2827 = vmatpush1.msra.mxu0 %v1142
        %2828 = vmatprep.subr.mxu0 %v1147
        %2829 = vmatpush1.msra.mxu0 %v1146
        %2830 = vmatprep.subr.mxu0 %v1151
        %2831 = vmatpush1.msra.mxu0 %v1150
        %2832 = vmatprep.subr.mxu0 %v1155
        %2833 = vmatpush1.msra.mxu0 %v1154
        %2834 = vmatprep.subr.mxu0 %v1159
        %2835 = vmatpush1.msra.mxu0 %v1158
        %2836 = vmatprep.subr.mxu0 %v1163
        %2837 = vmatpush1.msra.mxu0 %v1162
        %2838 = vmatprep.subr.mxu0 %v1167
        %2839 = vmatpush1.msra.mxu0 %v1166
        %2840 = vmatprep.subr.mxu0 %v1171
        %2841 = vmatpush1.msra.mxu0 %v1170
        %2842 = vmatprep.subr.mxu0 %v1175
        %2843 = vmatpush1.msra.mxu0 %v1174
        %2844 = vmatprep.subr.mxu0 %v1179
        %2845 = vmatpush1.msra.mxu0 %v1178
        %2846 = vmatprep.subr.mxu0 %v1183
        %2847 = vmatpush1.msra.mxu0 %v1182
        %2848 = vmatprep.subr.mxu0 %v1187
        %2849 = vmatpush1.msra.mxu0 %v1186
        %2850 = vmatprep.subr.mxu0 %v1191
        %2851 = vmatpush1.msra.mxu0 %v1190
        %2852 = vmatprep.subr.mxu0 %v1195
        %2853 = vmatpush1.msra.mxu0 %v1194
        %2854 = vmatprep.subr.mxu0 %v1199
        %2855 = vmatpush1.msra.mxu0 %v1198
        %2856 = vmatprep.subr.mxu0 %v1203
        %2857 = vmatpush1.msra.mxu0 %v1202
        %2858 = vmatprep.subr.mxu0 %v1207
        %2859 = vmatpush1.msra.mxu0 %v1206
        %2860 = vmatprep.subr.mxu0 %v1211
        %2861 = vmatpush1.msra.mxu0 %v1210
        %2862 = vmatprep.subr.mxu0 %v1215
        %2863 = vmatpush1.msra.mxu0 %v1214
        %2864 = vmatprep.subr.mxu0 %v1219
        %2865 = vmatpush1.msra.mxu0 %v1218
        %2866 = vmatprep.subr.mxu0 %v1223
        %2867 = vmatpush1.msra.mxu0 %v1222
        %2868 = vmatprep.mubr.f32.mxu0 %v311
        %2869 = vmatmul.mubr.f32.gmra.mrb[0].mxu0 %v310
        %v2870 = vpop.f32.mrb[0].mxu0
        %v2871 = vadd.f32 %v2800, %v2870
        %v2872 = vpop.f32.mrb[0].mxu0
        %v2873 = vadd.f32 %v2802, %v2872
        %2874 = vdwg.mxu0
        %2875 = vmatprep.subr.mxu0 %v1227
        %2876 = vmatpush1.msra.mxu0 %v1226
        %2877 = vmatprep.subr.mxu0 %v1231
        %2878 = vmatpush1.msra.mxu0 %v1230
        %2879 = vmatprep.subr.mxu0 %v1235
        %2880 = vmatpush1.msra.mxu0 %v1234
        %2881 = vmatprep.subr.mxu0 %v1239
        %2882 = vmatpush1.msra.mxu0 %v1238
        %2883 = vmatprep.subr.mxu0 %v1243
        %2884 = vmatpush1.msra.mxu0 %v1242
        %2885 = vmatprep.subr.mxu0 %v1247
        %2886 = vmatpush1.msra.mxu0 %v1246
        %2887 = vmatprep.subr.mxu0 %v1251
        %2888 = vmatpush1.msra.mxu0 %v1250
        %2889 = vmatprep.subr.mxu0 %v1255
        %2890 = vmatpush1.msra.mxu0 %v1254
        %2891 = vmatprep.subr.mxu0 %v1259
        %2892 = vmatpush1.msra.mxu0 %v1258
        %2893 = vmatprep.subr.mxu0 %v1263
        %2894 = vmatpush1.msra.mxu0 %v1262
        %2895 = vmatprep.subr.mxu0 %v1267
        %2896 = vmatpush1.msra.mxu0 %v1266
        %2897 = vmatprep.subr.mxu0 %v1271
        %2898 = vmatpush1.msra.mxu0 %v1270
        %2899 = vmatprep.subr.mxu0 %v1275
        %2900 = vmatpush1.msra.mxu0 %v1274
        %2901 = vmatprep.subr.mxu0 %v1279
        %2902 = vmatpush1.msra.mxu0 %v1278
        %2903 = vmatprep.subr.mxu0 %v1283
        %2904 = vmatpush1.msra.mxu0 %v1282
        %2905 = vmatprep.subr.mxu0 %v1287
        %2906 = vmatpush1.msra.mxu0 %v1286
        %2907 = vmatprep.subr.mxu0 %v1291
        %2908 = vmatpush1.msra.mxu0 %v1290
        %2909 = vmatprep.subr.mxu0 %v1295
        %2910 = vmatpush1.msra.mxu0 %v1294
        %2911 = vmatprep.subr.mxu0 %v1299
        %2912 = vmatpush1.msra.mxu0 %v1298
        %2913 = vmatprep.subr.mxu0 %v1303
        %2914 = vmatpush1.msra.mxu0 %v1302
        %2915 = vmatprep.subr.mxu0 %v1307
        %2916 = vmatpush1.msra.mxu0 %v1306
        %2917 = vmatprep.subr.mxu0 %v1311
        %2918 = vmatpush1.msra.mxu0 %v1310
        %2919 = vmatprep.subr.mxu0 %v1315
        %2920 = vmatpush1.msra.mxu0 %v1314
        %2921 = vmatprep.subr.mxu0 %v1319
        %2922 = vmatpush1.msra.mxu0 %v1318
        %2923 = vmatprep.subr.mxu0 %v1323
        %2924 = vmatpush1.msra.mxu0 %v1322
        %2925 = vmatprep.subr.mxu0 %v1327
        %2926 = vmatpush1.msra.mxu0 %v1326
        %2927 = vmatprep.subr.mxu0 %v1331
        %2928 = vmatpush1.msra.mxu0 %v1330
        %2929 = vmatprep.subr.mxu0 %v1335
        %2930 = vmatpush1.msra.mxu0 %v1334
        %2931 = vmatprep.subr.mxu0 %v1339
        %2932 = vmatpush1.msra.mxu0 %v1338
        %2933 = vmatprep.subr.mxu0 %v1343
        %2934 = vmatpush1.msra.mxu0 %v1342
        %2935 = vmatprep.subr.mxu0 %v1347
        %2936 = vmatpush1.msra.mxu0 %v1346
        %2937 = vmatprep.subr.mxu0 %v1351
        %2938 = vmatpush1.msra.mxu0 %v1350
        %2939 = vmatprep.mubr.f32.mxu0 %v313
        %2940 = vmatmul.mubr.f32.gmra.mrb[0].mxu0 %v312
        %v2941 = vpop.f32.mrb[0].mxu0
        %v2942 = vadd.f32 %v2871, %v2941
        %v2943 = vpop.f32.mrb[0].mxu0
        %v2944 = vadd.f32 %v2873, %v2943
        %2945 = vdwg.mxu0
        %2946 = vmatprep.subr.mxu0 %v1355
        %2947 = vmatpush1.msra.mxu0 %v1354
        %2948 = vmatprep.subr.mxu0 %v1359
        %2949 = vmatpush1.msra.mxu0 %v1358
        %2950 = vmatprep.subr.mxu0 %v1363
        %2951 = vmatpush1.msra.mxu0 %v1362
        %2952 = vmatprep.subr.mxu0 %v1367
        %2953 = vmatpush1.msra.mxu0 %v1366
        %2954 = vmatprep.subr.mxu0 %v1371
        %2955 = vmatpush1.msra.mxu0 %v1370
        %2956 = vmatprep.subr.mxu0 %v1375
        %2957 = vmatpush1.msra.mxu0 %v1374
        %2958 = vmatprep.subr.mxu0 %v1379
        %2959 = vmatpush1.msra.mxu0 %v1378
        %2960 = vmatprep.subr.mxu0 %v1383
        %2961 = vmatpush1.msra.mxu0 %v1382
        %2962 = vmatprep.subr.mxu0 %v1387
        %2963 = vmatpush1.msra.mxu0 %v1386
        %2964 = vmatprep.subr.mxu0 %v1391
        %2965 = vmatpush1.msra.mxu0 %v1390
        %2966 = vmatprep.subr.mxu0 %v1395
        %2967 = vmatpush1.msra.mxu0 %v1394
        %2968 = vmatprep.subr.mxu0 %v1399
        %2969 = vmatpush1.msra.mxu0 %v1398
        %2970 = vmatprep.subr.mxu0 %v1403
        %2971 = vmatpush1.msra.mxu0 %v1402
        %2972 = vmatprep.subr.mxu0 %v1407
        %2973 = vmatpush1.msra.mxu0 %v1406
        %2974 = vmatprep.subr.mxu0 %v1411
        %2975 = vmatpush1.msra.mxu0 %v1410
        %2976 = vmatprep.subr.mxu0 %v1415
        %2977 = vmatpush1.msra.mxu0 %v1414
        %2978 = vmatprep.subr.mxu0 %v1419
        %2979 = vmatpush1.msra.mxu0 %v1418
        %2980 = vmatprep.subr.mxu0 %v1423
        %2981 = vmatpush1.msra.mxu0 %v1422
        %2982 = vmatprep.subr.mxu0 %v1427
        %2983 = vmatpush1.msra.mxu0 %v1426
        %2984 = vmatprep.subr.mxu0 %v1431
        %2985 = vmatpush1.msra.mxu0 %v1430
        %2986 = vmatprep.subr.mxu0 %v1435
        %2987 = vmatpush1.msra.mxu0 %v1434
        %2988 = vmatprep.subr.mxu0 %v1439
        %2989 = vmatpush1.msra.mxu0 %v1438
        %2990 = vmatprep.subr.mxu0 %v1443
        %2991 = vmatpush1.msra.mxu0 %v1442
        %2992 = vmatprep.subr.mxu0 %v1447
        %2993 = vmatpush1.msra.mxu0 %v1446
        %2994 = vmatprep.subr.mxu0 %v1451
        %2995 = vmatpush1.msra.mxu0 %v1450
        %2996 = vmatprep.subr.mxu0 %v1455
        %2997 = vmatpush1.msra.mxu0 %v1454
        %2998 = vmatprep.subr.mxu0 %v1459
        %2999 = vmatpush1.msra.mxu0 %v1458
        %3000 = vmatprep.subr.mxu0 %v1463
        %3001 = vmatpush1.msra.mxu0 %v1462
        %3002 = vmatprep.subr.mxu0 %v1467
        %3003 = vmatpush1.msra.mxu0 %v1466
        %3004 = vmatprep.subr.mxu0 %v1471
        %3005 = vmatpush1.msra.mxu0 %v1470
        %3006 = vmatprep.subr.mxu0 %v1475
        %3007 = vmatpush1.msra.mxu0 %v1474
        %3008 = vmatprep.subr.mxu0 %v1479
        %3009 = vmatpush1.msra.mxu0 %v1478
        %3010 = vmatprep.mubr.f32.mxu0 %v315
        %3011 = vmatmul.mubr.f32.gmra.mrb[0].mxu0 %v314
        %v3012 = vpop.f32.mrb[0].mxu0
        %v3013 = vadd.f32 %v2942, %v3012
        %v3014 = vpop.f32.mrb[0].mxu0
        %v3015 = vadd.f32 %v2944, %v3014
        %3016 = vdwg.mxu0
        %3017 = vmatprep.subr.mxu0 %v1483
        %3018 = vmatpush1.msra.mxu0 %v1482
        %3019 = vmatprep.subr.mxu0 %v1487
        %3020 = vmatpush1.msra.mxu0 %v1486
        %3021 = vmatprep.subr.mxu0 %v1491
        %3022 = vmatpush1.msra.mxu0 %v1490
        %3023 = vmatprep.subr.mxu0 %v1495
        %3024 = vmatpush1.msra.mxu0 %v1494
        %3025 = vmatprep.subr.mxu0 %v1499
        %3026 = vmatpush1.msra.mxu0 %v1498
        %3027 = vmatprep.subr.mxu0 %v1503
        %3028 = vmatpush1.msra.mxu0 %v1502
        %3029 = vmatprep.subr.mxu0 %v1507
        %3030 = vmatpush1.msra.mxu0 %v1506
        %3031 = vmatprep.subr.mxu0 %v1511
        %3032 = vmatpush1.msra.mxu0 %v1510
        %3033 = vmatprep.subr.mxu0 %v1515
        %3034 = vmatpush1.msra.mxu0 %v1514
        %3035 = vmatprep.subr.mxu0 %v1519
        %3036 = vmatpush1.msra.mxu0 %v1518
        %3037 = vmatprep.subr.mxu0 %v1523
        %3038 = vmatpush1.msra.mxu0 %v1522
        %3039 = vmatprep.subr.mxu0 %v1527
        %3040 = vmatpush1.msra.mxu0 %v1526
        %3041 = vmatprep.subr.mxu0 %v1531
        %3042 = vmatpush1.msra.mxu0 %v1530
        %3043 = vmatprep.subr.mxu0 %v1535
        %3044 = vmatpush1.msra.mxu0 %v1534
        %3045 = vmatprep.subr.mxu0 %v1539
        %3046 = vmatpush1.msra.mxu0 %v1538
        %3047 = vmatprep.subr.mxu0 %v1543
        %3048 = vmatpush1.msra.mxu0 %v1542
        %3049 = vmatprep.subr.mxu0 %v1547
        %3050 = vmatpush1.msra.mxu0 %v1546
        %3051 = vmatprep.subr.mxu0 %v1551
        %3052 = vmatpush1.msra.mxu0 %v1550
        %3053 = vmatprep.subr.mxu0 %v1555
        %3054 = vmatpush1.msra.mxu0 %v1554
        %3055 = vmatprep.subr.mxu0 %v1559
        %3056 = vmatpush1.msra.mxu0 %v1558
        %3057 = vmatprep.subr.mxu0 %v1563
        %3058 = vmatpush1.msra.mxu0 %v1562
        %3059 = vmatprep.subr.mxu0 %v1567
        %3060 = vmatpush1.msra.mxu0 %v1566
        %3061 = vmatprep.subr.mxu0 %v1571
        %3062 = vmatpush1.msra.mxu0 %v1570
        %3063 = vmatprep.subr.mxu0 %v1575
        %3064 = vmatpush1.msra.mxu0 %v1574
        %3065 = vmatprep.subr.mxu0 %v1579
        %3066 = vmatpush1.msra.mxu0 %v1578
        %3067 = vmatprep.subr.mxu0 %v1583
        %3068 = vmatpush1.msra.mxu0 %v1582
        %3069 = vmatprep.subr.mxu0 %v1587
        %3070 = vmatpush1.msra.mxu0 %v1586
        %3071 = vmatprep.subr.mxu0 %v1591
        %3072 = vmatpush1.msra.mxu0 %v1590
        %3073 = vmatprep.subr.mxu0 %v1595
        %3074 = vmatpush1.msra.mxu0 %v1594
        %3075 = vmatprep.subr.mxu0 %v1599
        %3076 = vmatpush1.msra.mxu0 %v1598
        %3077 = vmatprep.subr.mxu0 %v1603
        %3078 = vmatpush1.msra.mxu0 %v1602
        %3079 = vmatprep.subr.mxu0 %v1607
        %3080 = vmatpush1.msra.mxu0 %v1606
        %3081 = vmatprep.mubr.f32.mxu0 %v317
        %3082 = vmatmul.mubr.f32.gmra.mrb[0].mxu0 %v316
        %v3083 = vpop.f32.mrb[0].mxu0
        %v3084 = vadd.f32 %v3013, %v3083
        %v3085 = vpop.f32.mrb[0].mxu0
        %v3086 = vadd.f32 %v3015, %v3085
        %3087 = vdwg.mxu0
        %3088 = vmatprep.subr.mxu0 %v1611
        %3089 = vmatpush1.msra.mxu0 %v1610
        %3090 = vmatprep.subr.mxu0 %v1615
        %3091 = vmatpush1.msra.mxu0 %v1614
        %3092 = vmatprep.subr.mxu0 %v1619
        %3093 = vmatpush1.msra.mxu0 %v1618
        %3094 = vmatprep.subr.mxu0 %v1623
        %3095 = vmatpush1.msra.mxu0 %v1622
        %3096 = vmatprep.subr.mxu0 %v1627
        %3097 = vmatpush1.msra.mxu0 %v1626
        %3098 = vmatprep.subr.mxu0 %v1631
        %3099 = vmatpush1.msra.mxu0 %v1630
        %3100 = vmatprep.subr.mxu0 %v1635
        %3101 = vmatpush1.msra.mxu0 %v1634
        %3102 = vmatprep.subr.mxu0 %v1639
        %3103 = vmatpush1.msra.mxu0 %v1638
        %3104 = vmatprep.subr.mxu0 %v1643
        %3105 = vmatpush1.msra.mxu0 %v1642
        %3106 = vmatprep.subr.mxu0 %v1647
        %3107 = vmatpush1.msra.mxu0 %v1646
        %3108 = vmatprep.subr.mxu0 %v1651
        %3109 = vmatpush1.msra.mxu0 %v1650
        %3110 = vmatprep.subr.mxu0 %v1655
        %3111 = vmatpush1.msra.mxu0 %v1654
        %3112 = vmatprep.subr.mxu0 %v1659
        %3113 = vmatpush1.msra.mxu0 %v1658
        %3114 = vmatprep.subr.mxu0 %v1663
        %3115 = vmatpush1.msra.mxu0 %v1662
        %3116 = vmatprep.subr.mxu0 %v1667
        %3117 = vmatpush1.msra.mxu0 %v1666
        %3118 = vmatprep.subr.mxu0 %v1671
        %3119 = vmatpush1.msra.mxu0 %v1670
        %3120 = vmatprep.subr.mxu0 %v1675
        %3121 = vmatpush1.msra.mxu0 %v1674
        %3122 = vmatprep.subr.mxu0 %v1679
        %3123 = vmatpush1.msra.mxu0 %v1678
        %3124 = vmatprep.subr.mxu0 %v1683
        %3125 = vmatpush1.msra.mxu0 %v1682
        %3126 = vmatprep.subr.mxu0 %v1687
        %3127 = vmatpush1.msra.mxu0 %v1686
        %3128 = vmatprep.subr.mxu0 %v1691
        %3129 = vmatpush1.msra.mxu0 %v1690
        %3130 = vmatprep.subr.mxu0 %v1695
        %3131 = vmatpush1.msra.mxu0 %v1694
        %3132 = vmatprep.subr.mxu0 %v1699
        %3133 = vmatpush1.msra.mxu0 %v1698
        %3134 = vmatprep.subr.mxu0 %v1703
        %3135 = vmatpush1.msra.mxu0 %v1702
        %3136 = vmatprep.subr.mxu0 %v1707
        %3137 = vmatpush1.msra.mxu0 %v1706
        %3138 = vmatprep.subr.mxu0 %v1711
        %3139 = vmatpush1.msra.mxu0 %v1710
        %3140 = vmatprep.subr.mxu0 %v1715
        %3141 = vmatpush1.msra.mxu0 %v1714
        %3142 = vmatprep.subr.mxu0 %v1719
        %3143 = vmatpush1.msra.mxu0 %v1718
        %3144 = vmatprep.subr.mxu0 %v1723
        %3145 = vmatpush1.msra.mxu0 %v1722
        %3146 = vmatprep.subr.mxu0 %v1727
        %3147 = vmatpush1.msra.mxu0 %v1726
        %3148 = vmatprep.subr.mxu0 %v1731
        %3149 = vmatpush1.msra.mxu0 %v1730
        %3150 = vmatprep.subr.mxu0 %v1735
        %3151 = vmatpush1.msra.mxu0 %v1734
        %3152 = vmatprep.mubr.f32.mxu0 %v319
        %3153 = vmatmul.mubr.f32.gmra.mrb[0].mxu0 %v318
        %v3154 = vpop.f32.mrb[0].mxu0
        %v3155 = vadd.f32 %v3084, %v3154
        %v3156 = vpop.f32.mrb[0].mxu0
        %v3157 = vadd.f32 %v3086, %v3156
        %3158 = vdwg.mxu0
        %3159 = vmatprep.subr.mxu0 %v1739
        %3160 = vmatpush1.msra.mxu0 %v1738
        %3161 = vmatprep.subr.mxu0 %v1743
        %3162 = vmatpush1.msra.mxu0 %v1742
        %3163 = vmatprep.subr.mxu0 %v1747
        %3164 = vmatpush1.msra.mxu0 %v1746
        %3165 = vmatprep.subr.mxu0 %v1751
        %3166 = vmatpush1.msra.mxu0 %v1750
        %3167 = vmatprep.subr.mxu0 %v1755
        %3168 = vmatpush1.msra.mxu0 %v1754
        %3169 = vmatprep.subr.mxu0 %v1759
        %3170 = vmatpush1.msra.mxu0 %v1758
        %3171 = vmatprep.subr.mxu0 %v1763
        %3172 = vmatpush1.msra.mxu0 %v1762
        %3173 = vmatprep.subr.mxu0 %v1767
        %3174 = vmatpush1.msra.mxu0 %v1766
        %3175 = vmatprep.subr.mxu0 %v1771
        %3176 = vmatpush1.msra.mxu0 %v1770
        %3177 = vmatprep.subr.mxu0 %v1775
        %3178 = vmatpush1.msra.mxu0 %v1774
        %3179 = vmatprep.subr.mxu0 %v1779
        %3180 = vmatpush1.msra.mxu0 %v1778
        %3181 = vmatprep.subr.mxu0 %v1783
        %3182 = vmatpush1.msra.mxu0 %v1782
        %3183 = vmatprep.subr.mxu0 %v1787
        %3184 = vmatpush1.msra.mxu0 %v1786
        %3185 = vmatprep.subr.mxu0 %v1791
        %3186 = vmatpush1.msra.mxu0 %v1790
        %3187 = vmatprep.subr.mxu0 %v1795
        %3188 = vmatpush1.msra.mxu0 %v1794
        %3189 = vmatprep.subr.mxu0 %v1799
        %3190 = vmatpush1.msra.mxu0 %v1798
        %3191 = vmatprep.subr.mxu0 %v1803
        %3192 = vmatpush1.msra.mxu0 %v1802
        %3193 = vmatprep.subr.mxu0 %v1807
        %3194 = vmatpush1.msra.mxu0 %v1806
        %3195 = vmatprep.subr.mxu0 %v1811
        %3196 = vmatpush1.msra.mxu0 %v1810
        %3197 = vmatprep.subr.mxu0 %v1815
        %3198 = vmatpush1.msra.mxu0 %v1814
        %3199 = vmatprep.subr.mxu0 %v1819
        %3200 = vmatpush1.msra.mxu0 %v1818
        %3201 = vmatprep.subr.mxu0 %v1823
        %3202 = vmatpush1.msra.mxu0 %v1822
        %3203 = vmatprep.subr.mxu0 %v1827
        %3204 = vmatpush1.msra.mxu0 %v1826
        %3205 = vmatprep.subr.mxu0 %v1831
        %3206 = vmatpush1.msra.mxu0 %v1830
        %3207 = vmatprep.subr.mxu0 %v1835
        %3208 = vmatpush1.msra.mxu0 %v1834
        %3209 = vmatprep.subr.mxu0 %v1839
        %3210 = vmatpush1.msra.mxu0 %v1838
        %3211 = vmatprep.subr.mxu0 %v1843
        %3212 = vmatpush1.msra.mxu0 %v1842
        %3213 = vmatprep.subr.mxu0 %v1847
        %3214 = vmatpush1.msra.mxu0 %v1846
        %3215 = vmatprep.subr.mxu0 %v1851
        %3216 = vmatpush1.msra.mxu0 %v1850
        %3217 = vmatprep.subr.mxu0 %v1855
        %3218 = vmatpush1.msra.mxu0 %v1854
        %3219 = vmatprep.subr.mxu0 %v1859
        %3220 = vmatpush1.msra.mxu0 %v1858
        %3221 = vmatprep.subr.mxu0 %v1863
        %3222 = vmatpush1.msra.mxu0 %v1862
        %3223 = vmatprep.mubr.f32.mxu0 %v321
        %3224 = vmatmul.mubr.f32.gmra.mrb[0].mxu0 %v320
        %v3225 = vpop.f32.mrb[0].mxu0
        %v3226 = vadd.f32 %v3155, %v3225
        %v3227 = vpop.f32.mrb[0].mxu0
        %v3228 = vadd.f32 %v3157, %v3227
        %3229 = vdwg.mxu0
        %3230 = vmatprep.subr.mxu0 %v1867
        %3231 = vmatpush1.msra.mxu0 %v1866
        %3232 = vmatprep.subr.mxu0 %v1871
        %3233 = vmatpush1.msra.mxu0 %v1870
        %3234 = vmatprep.subr.mxu0 %v1875
        %3235 = vmatpush1.msra.mxu0 %v1874
        %3236 = vmatprep.subr.mxu0 %v1879
        %3237 = vmatpush1.msra.mxu0 %v1878
        %3238 = vmatprep.subr.mxu0 %v1883
        %3239 = vmatpush1.msra.mxu0 %v1882
        %3240 = vmatprep.subr.mxu0 %v1887
        %3241 = vmatpush1.msra.mxu0 %v1886
        %3242 = vmatprep.subr.mxu0 %v1891
        %3243 = vmatpush1.msra.mxu0 %v1890
        %3244 = vmatprep.subr.mxu0 %v1895
        %3245 = vmatpush1.msra.mxu0 %v1894
        %3246 = vmatprep.subr.mxu0 %v1899
        %3247 = vmatpush1.msra.mxu0 %v1898
        %3248 = vmatprep.subr.mxu0 %v1903
        %3249 = vmatpush1.msra.mxu0 %v1902
        %3250 = vmatprep.subr.mxu0 %v1907
        %3251 = vmatpush1.msra.mxu0 %v1906
        %3252 = vmatprep.subr.mxu0 %v1911
        %3253 = vmatpush1.msra.mxu0 %v1910
        %3254 = vmatprep.subr.mxu0 %v1915
        %3255 = vmatpush1.msra.mxu0 %v1914
        %3256 = vmatprep.subr.mxu0 %v1919
        %3257 = vmatpush1.msra.mxu0 %v1918
        %3258 = vmatprep.subr.mxu0 %v1923
        %3259 = vmatpush1.msra.mxu0 %v1922
        %3260 = vmatprep.subr.mxu0 %v1927
        %3261 = vmatpush1.msra.mxu0 %v1926
        %3262 = vmatprep.subr.mxu0 %v1931
        %3263 = vmatpush1.msra.mxu0 %v1930
        %3264 = vmatprep.subr.mxu0 %v1935
        %3265 = vmatpush1.msra.mxu0 %v1934
        %3266 = vmatprep.subr.mxu0 %v1939
        %3267 = vmatpush1.msra.mxu0 %v1938
        %3268 = vmatprep.subr.mxu0 %v1943
        %3269 = vmatpush1.msra.mxu0 %v1942
        %3270 = vmatprep.subr.mxu0 %v1947
        %3271 = vmatpush1.msra.mxu0 %v1946
        %3272 = vmatprep.subr.mxu0 %v1951
        %3273 = vmatpush1.msra.mxu0 %v1950
        %3274 = vmatprep.subr.mxu0 %v1955
        %3275 = vmatpush1.msra.mxu0 %v1954
        %3276 = vmatprep.subr.mxu0 %v1959
        %3277 = vmatpush1.msra.mxu0 %v1958
        %3278 = vmatprep.subr.mxu0 %v1963
        %3279 = vmatpush1.msra.mxu0 %v1962
        %3280 = vmatprep.subr.mxu0 %v1967
        %3281 = vmatpush1.msra.mxu0 %v1966
        %3282 = vmatprep.subr.mxu0 %v1971
        %3283 = vmatpush1.msra.mxu0 %v1970
        %3284 = vmatprep.subr.mxu0 %v1975
        %3285 = vmatpush1.msra.mxu0 %v1974
        %3286 = vmatprep.subr.mxu0 %v1979
        %3287 = vmatpush1.msra.mxu0 %v1978
        %3288 = vmatprep.subr.mxu0 %v1983
        %3289 = vmatpush1.msra.mxu0 %v1982
        %3290 = vmatprep.subr.mxu0 %v1987
        %3291 = vmatpush1.msra.mxu0 %v1986
        %3292 = vmatprep.subr.mxu0 %v1991
        %3293 = vmatpush1.msra.mxu0 %v1990
        %3294 = vmatprep.mubr.f32.mxu0 %v323
        %3295 = vmatmul.mubr.f32.gmra.mrb[0].mxu0 %v322
        %v3296 = vpop.f32.mrb[0].mxu0
        %v3297 = vadd.f32 %v3226, %v3296
        %v3298 = vpop.f32.mrb[0].mxu0
        %v3299 = vadd.f32 %v3228, %v3298
        %3300 = vdwg.mxu0
        %3301 = vmatprep.subr.mxu0 %v1995
        %3302 = vmatpush1.msra.mxu0 %v1994
        %3303 = vmatprep.subr.mxu0 %v1999
        %3304 = vmatpush1.msra.mxu0 %v1998
        %3305 = vmatprep.subr.mxu0 %v2003
        %3306 = vmatpush1.msra.mxu0 %v2002
        %3307 = vmatprep.subr.mxu0 %v2007
        %3308 = vmatpush1.msra.mxu0 %v2006
        %3309 = vmatprep.subr.mxu0 %v2011
        %3310 = vmatpush1.msra.mxu0 %v2010
        %3311 = vmatprep.subr.mxu0 %v2015
        %3312 = vmatpush1.msra.mxu0 %v2014
        %3313 = vmatprep.subr.mxu0 %v2019
        %3314 = vmatpush1.msra.mxu0 %v2018
        %3315 = vmatprep.subr.mxu0 %v2023
        %3316 = vmatpush1.msra.mxu0 %v2022
        %3317 = vmatprep.subr.mxu0 %v2027
        %3318 = vmatpush1.msra.mxu0 %v2026
        %3319 = vmatprep.subr.mxu0 %v2031
        %3320 = vmatpush1.msra.mxu0 %v2030
        %3321 = vmatprep.subr.mxu0 %v2035
        %3322 = vmatpush1.msra.mxu0 %v2034
        %3323 = vmatprep.subr.mxu0 %v2039
        %3324 = vmatpush1.msra.mxu0 %v2038
        %3325 = vmatprep.subr.mxu0 %v2043
        %3326 = vmatpush1.msra.mxu0 %v2042
        %3327 = vmatprep.subr.mxu0 %v2047
        %3328 = vmatpush1.msra.mxu0 %v2046
        %3329 = vmatprep.subr.mxu0 %v2051
        %3330 = vmatpush1.msra.mxu0 %v2050
        %3331 = vmatprep.subr.mxu0 %v2055
        %3332 = vmatpush1.msra.mxu0 %v2054
        %3333 = vmatprep.subr.mxu0 %v2059
        %3334 = vmatpush1.msra.mxu0 %v2058
        %3335 = vmatprep.subr.mxu0 %v2063
        %3336 = vmatpush1.msra.mxu0 %v2062
        %3337 = vmatprep.subr.mxu0 %v2067
        %3338 = vmatpush1.msra.mxu0 %v2066
        %3339 = vmatprep.subr.mxu0 %v2071
        %3340 = vmatpush1.msra.mxu0 %v2070
        %3341 = vmatprep.subr.mxu0 %v2075
        %3342 = vmatpush1.msra.mxu0 %v2074
        %3343 = vmatprep.subr.mxu0 %v2079
        %3344 = vmatpush1.msra.mxu0 %v2078
        %3345 = vmatprep.subr.mxu0 %v2083
        %3346 = vmatpush1.msra.mxu0 %v2082
        %3347 = vmatprep.subr.mxu0 %v2087
        %3348 = vmatpush1.msra.mxu0 %v2086
        %3349 = vmatprep.subr.mxu0 %v2091
        %3350 = vmatpush1.msra.mxu0 %v2090
        %3351 = vmatprep.subr.mxu0 %v2095
        %3352 = vmatpush1.msra.mxu0 %v2094
        %3353 = vmatprep.subr.mxu0 %v2099
        %3354 = vmatpush1.msra.mxu0 %v2098
        %3355 = vmatprep.subr.mxu0 %v2103
        %3356 = vmatpush1.msra.mxu0 %v2102
        %3357 = vmatprep.subr.mxu0 %v2107
        %3358 = vmatpush1.msra.mxu0 %v2106
        %3359 = vmatprep.subr.mxu0 %v2111
        %3360 = vmatpush1.msra.mxu0 %v2110
        %3361 = vmatprep.subr.mxu0 %v2115
        %3362 = vmatpush1.msra.mxu0 %v2114
        %3363 = vmatprep.subr.mxu0 %v2119
        %3364 = vmatpush1.msra.mxu0 %v2118
        %3365 = vmatprep.mubr.f32.mxu0 %v325
        %3366 = vmatmul.mubr.f32.gmra.mrb[0].mxu0 %v324
        %v3367 = vpop.f32.mrb[0].mxu0
        %v3368 = vadd.f32 %v3297, %v3367
        %v3369 = vpop.f32.mrb[0].mxu0
        %v3370 = vadd.f32 %v3299, %v3369
        %3371 = vdwg.mxu0
        %3372 = vmatprep.subr.mxu0 %v2123
        %3373 = vmatpush1.msra.mxu0 %v2122
        %3374 = vmatprep.subr.mxu0 %v2127
        %3375 = vmatpush1.msra.mxu0 %v2126
        %3376 = vmatprep.subr.mxu0 %v2131
        %3377 = vmatpush1.msra.mxu0 %v2130
        %3378 = vmatprep.subr.mxu0 %v2135
        %3379 = vmatpush1.msra.mxu0 %v2134
        %3380 = vmatprep.subr.mxu0 %v2139
        %3381 = vmatpush1.msra.mxu0 %v2138
        %3382 = vmatprep.subr.mxu0 %v2143
        %3383 = vmatpush1.msra.mxu0 %v2142
        %3384 = vmatprep.subr.mxu0 %v2147
        %3385 = vmatpush1.msra.mxu0 %v2146
        %3386 = vmatprep.subr.mxu0 %v2151
        %3387 = vmatpush1.msra.mxu0 %v2150
        %3388 = vmatprep.subr.mxu0 %v2155
        %3389 = vmatpush1.msra.mxu0 %v2154
        %3390 = vmatprep.subr.mxu0 %v2159
        %3391 = vmatpush1.msra.mxu0 %v2158
        %3392 = vmatprep.subr.mxu0 %v2163
        %3393 = vmatpush1.msra.mxu0 %v2162
        %3394 = vmatprep.subr.mxu0 %v2167
        %3395 = vmatpush1.msra.mxu0 %v2166
        %3396 = vmatprep.subr.mxu0 %v2171
        %3397 = vmatpush1.msra.mxu0 %v2170
        %3398 = vmatprep.subr.mxu0 %v2175
        %3399 = vmatpush1.msra.mxu0 %v2174
        %3400 = vmatprep.subr.mxu0 %v2179
        %3401 = vmatpush1.msra.mxu0 %v2178
        %3402 = vmatprep.subr.mxu0 %v2183
        %3403 = vmatpush1.msra.mxu0 %v2182
        %3404 = vmatprep.subr.mxu0 %v2187
        %3405 = vmatpush1.msra.mxu0 %v2186
        %3406 = vmatprep.subr.mxu0 %v2191
        %3407 = vmatpush1.msra.mxu0 %v2190
        %3408 = vmatprep.subr.mxu0 %v2195
        %3409 = vmatpush1.msra.mxu0 %v2194
        %3410 = vmatprep.subr.mxu0 %v2199
        %3411 = vmatpush1.msra.mxu0 %v2198
        %3412 = vmatprep.subr.mxu0 %v2203
        %3413 = vmatpush1.msra.mxu0 %v2202
        %3414 = vmatprep.subr.mxu0 %v2207
        %3415 = vmatpush1.msra.mxu0 %v2206
        %3416 = vmatprep.subr.mxu0 %v2211
        %3417 = vmatpush1.msra.mxu0 %v2210
        %3418 = vmatprep.subr.mxu0 %v2215
        %3419 = vmatpush1.msra.mxu0 %v2214
        %3420 = vmatprep.subr.mxu0 %v2219
        %3421 = vmatpush1.msra.mxu0 %v2218
        %3422 = vmatprep.subr.mxu0 %v2223
        %3423 = vmatpush1.msra.mxu0 %v2222
        %3424 = vmatprep.subr.mxu0 %v2227
        %3425 = vmatpush1.msra.mxu0 %v2226
        %3426 = vmatprep.subr.mxu0 %v2231
        %3427 = vmatpush1.msra.mxu0 %v2230
        %3428 = vmatprep.subr.mxu0 %v2235
        %3429 = vmatpush1.msra.mxu0 %v2234
        %3430 = vmatprep.subr.mxu0 %v2239
        %3431 = vmatpush1.msra.mxu0 %v2238
        %3432 = vmatprep.subr.mxu0 %v2243
        %3433 = vmatpush1.msra.mxu0 %v2242
        %3434 = vmatprep.subr.mxu0 %v2247
        %3435 = vmatpush1.msra.mxu0 %v2246
        %3436 = vmatprep.mubr.f32.mxu0 %v327
        %3437 = vmatmul.mubr.f32.gmra.mrb[0].mxu0 %v326
        %v3438 = vpop.f32.mrb[0].mxu0
        %v3439 = vadd.f32 %v3368, %v3438
        %v3440 = vpop.f32.mrb[0].mxu0
        %v3441 = vadd.f32 %v3370, %v3440
        %3442 = vdwg.mxu0
        %3443 = vmatprep.subr.mxu0 %v2251
        %3444 = vmatpush1.msra.mxu0 %v2250
        %3445 = vmatprep.subr.mxu0 %v2255
        %3446 = vmatpush1.msra.mxu0 %v2254
        %3447 = vmatprep.subr.mxu0 %v2259
        %3448 = vmatpush1.msra.mxu0 %v2258
        %3449 = vmatprep.subr.mxu0 %v2263
        %3450 = vmatpush1.msra.mxu0 %v2262
        %3451 = vmatprep.subr.mxu0 %v2267
        %3452 = vmatpush1.msra.mxu0 %v2266
        %3453 = vmatprep.subr.mxu0 %v2271
        %3454 = vmatpush1.msra.mxu0 %v2270
        %3455 = vmatprep.subr.mxu0 %v2275
        %3456 = vmatpush1.msra.mxu0 %v2274
        %3457 = vmatprep.subr.mxu0 %v2279
        %3458 = vmatpush1.msra.mxu0 %v2278
        %3459 = vmatprep.subr.mxu0 %v2283
        %3460 = vmatpush1.msra.mxu0 %v2282
        %3461 = vmatprep.subr.mxu0 %v2287
        %3462 = vmatpush1.msra.mxu0 %v2286
        %3463 = vmatprep.subr.mxu0 %v2291
        %3464 = vmatpush1.msra.mxu0 %v2290
        %3465 = vmatprep.subr.mxu0 %v2295
        %3466 = vmatpush1.msra.mxu0 %v2294
        %3467 = vmatprep.subr.mxu0 %v2299
        %3468 = vmatpush1.msra.mxu0 %v2298
        %3469 = vmatprep.subr.mxu0 %v2303
        %3470 = vmatpush1.msra.mxu0 %v2302
        %3471 = vmatprep.subr.mxu0 %v2307
        %3472 = vmatpush1.msra.mxu0 %v2306
        %3473 = vmatprep.subr.mxu0 %v2311
        %3474 = vmatpush1.msra.mxu0 %v2310
        %3475 = vmatprep.subr.mxu0 %v2315
        %3476 = vmatpush1.msra.mxu0 %v2314
        %3477 = vmatprep.subr.mxu0 %v2319
        %3478 = vmatpush1.msra.mxu0 %v2318
        %3479 = vmatprep.subr.mxu0 %v2323
        %3480 = vmatpush1.msra.mxu0 %v2322
        %3481 = vmatprep.subr.mxu0 %v2327
        %3482 = vmatpush1.msra.mxu0 %v2326
        %3483 = vmatprep.subr.mxu0 %v2331
        %3484 = vmatpush1.msra.mxu0 %v2330
        %3485 = vmatprep.subr.mxu0 %v2335
        %3486 = vmatpush1.msra.mxu0 %v2334
        %3487 = vmatprep.subr.mxu0 %v2339
        %3488 = vmatpush1.msra.mxu0 %v2338
        %3489 = vmatprep.subr.mxu0 %v2343
        %3490 = vmatpush1.msra.mxu0 %v2342
        %3491 = vmatprep.subr.mxu0 %v2347
        %3492 = vmatpush1.msra.mxu0 %v2346
        %3493 = vmatprep.subr.mxu0 %v2351
        %3494 = vmatpush1.msra.mxu0 %v2350
        %3495 = vmatprep.subr.mxu0 %v2355
        %3496 = vmatpush1.msra.mxu0 %v2354
        %3497 = vmatprep.subr.mxu0 %v2359
        %3498 = vmatpush1.msra.mxu0 %v2358
        %3499 = vmatprep.subr.mxu0 %v2363
        %3500 = vmatpush1.msra.mxu0 %v2362
        %3501 = vmatprep.subr.mxu0 %v2367
        %3502 = vmatpush1.msra.mxu0 %v2366
        %3503 = vmatprep.subr.mxu0 %v2371
        %3504 = vmatpush1.msra.mxu0 %v2370
        %3505 = vmatprep.subr.mxu0 %v2375
        %3506 = vmatpush1.msra.mxu0 %v2374
        %3507 = vmatprep.mubr.f32.mxu0 %v329
        %3508 = vmatmul.mubr.f32.gmra.mrb[0].mxu0 %v328
        %v3509 = vpop.f32.mrb[0].mxu0
        %v3510 = vadd.f32 %v3439, %v3509
        %v3511 = vpop.f32.mrb[0].mxu0
        %v3512 = vadd.f32 %v3441, %v3511
        %3513 = vdwg.mxu0
        %3514 = vmatprep.subr.mxu0 %v333
        %3515 = vmatpush1.msra.mxu0 %v332
        %3516 = vmatprep.subr.mxu0 %v337
        %3517 = vmatpush1.msra.mxu0 %v336
        %3518 = vmatprep.subr.mxu0 %v341
        %3519 = vmatpush1.msra.mxu0 %v340
        %3520 = vmatprep.subr.mxu0 %v345
        %3521 = vmatpush1.msra.mxu0 %v344
        %3522 = vmatprep.subr.mxu0 %v349
        %3523 = vmatpush1.msra.mxu0 %v348
        %3524 = vmatprep.subr.mxu0 %v353
        %3525 = vmatpush1.msra.mxu0 %v352
        %3526 = vmatprep.subr.mxu0 %v357
        %3527 = vmatpush1.msra.mxu0 %v356
        %3528 = vmatprep.subr.mxu0 %v361
        %3529 = vmatpush1.msra.mxu0 %v360
        %3530 = vmatprep.subr.mxu0 %v365
        %3531 = vmatpush1.msra.mxu0 %v364
        %3532 = vmatprep.subr.mxu0 %v369
        %3533 = vmatpush1.msra.mxu0 %v368
        %3534 = vmatprep.subr.mxu0 %v373
        %3535 = vmatpush1.msra.mxu0 %v372
        %3536 = vmatprep.subr.mxu0 %v377
        %3537 = vmatpush1.msra.mxu0 %v376
        %3538 = vmatprep.subr.mxu0 %v381
        %3539 = vmatpush1.msra.mxu0 %v380
        %3540 = vmatprep.subr.mxu0 %v385
        %3541 = vmatpush1.msra.mxu0 %v384
        %3542 = vmatprep.subr.mxu0 %v389
        %3543 = vmatpush1.msra.mxu0 %v388
        %3544 = vmatprep.subr.mxu0 %v393
        %3545 = vmatpush1.msra.mxu0 %v392
        %3546 = vmatprep.subr.mxu0 %v397
        %3547 = vmatpush1.msra.mxu0 %v396
        %3548 = vmatprep.subr.mxu0 %v401
        %3549 = vmatpush1.msra.mxu0 %v400
        %3550 = vmatprep.subr.mxu0 %v405
        %3551 = vmatpush1.msra.mxu0 %v404
        %3552 = vmatprep.subr.mxu0 %v409
        %3553 = vmatpush1.msra.mxu0 %v408
        %3554 = vmatprep.subr.mxu0 %v413
        %3555 = vmatpush1.msra.mxu0 %v412
        %3556 = vmatprep.subr.mxu0 %v417
        %3557 = vmatpush1.msra.mxu0 %v416
        %3558 = vmatprep.subr.mxu0 %v421
        %3559 = vmatpush1.msra.mxu0 %v420
        %3560 = vmatprep.subr.mxu0 %v425
        %3561 = vmatpush1.msra.mxu0 %v424
        %3562 = vmatprep.subr.mxu0 %v429
        %3563 = vmatpush1.msra.mxu0 %v428
        %3564 = vmatprep.subr.mxu0 %v433
        %3565 = vmatpush1.msra.mxu0 %v432
        %3566 = vmatprep.subr.mxu0 %v437
        %3567 = vmatpush1.msra.mxu0 %v436
        %3568 = vmatprep.subr.mxu0 %v441
        %3569 = vmatpush1.msra.mxu0 %v440
        %3570 = vmatprep.subr.mxu0 %v445
        %3571 = vmatpush1.msra.mxu0 %v444
        %3572 = vmatprep.subr.mxu0 %v449
        %3573 = vmatpush1.msra.mxu0 %v448
        %3574 = vmatprep.subr.mxu0 %v453
        %3575 = vmatpush1.msra.mxu0 %v452
        %3576 = vmatprep.subr.mxu0 %v457
        %3577 = vmatpush1.msra.mxu0 %v456
        %3578 = vmatprep.mubr.f32.mxu0 %v299
        %3579 = vmatmul.mubr.f32.gmra.mrb[0].mxu0 %v298
        %v3580 = vpop.f32.mrb[0].mxu0
        %v3581 = vadd.f32 0.0, %v3580
        %v3582 = vpop.f32.mrb[0].mxu0
        %v3583 = vadd.f32 0.0, %v3582
        %3584 = vdwg.mxu0
        %3585 = vmatprep.subr.mxu0 %v461
        %3586 = vmatpush1.msra.mxu0 %v460
        %3587 = vmatprep.subr.mxu0 %v465
        %3588 = vmatpush1.msra.mxu0 %v464
        %3589 = vmatprep.subr.mxu0 %v469
        %3590 = vmatpush1.msra.mxu0 %v468
        %3591 = vmatprep.subr.mxu0 %v473
        %3592 = vmatpush1.msra.mxu0 %v472
        %3593 = vmatprep.subr.mxu0 %v477
        %3594 = vmatpush1.msra.mxu0 %v476
        %3595 = vmatprep.subr.mxu0 %v481
        %3596 = vmatpush1.msra.mxu0 %v480
        %3597 = vmatprep.subr.mxu0 %v485
        %3598 = vmatpush1.msra.mxu0 %v484
        %3599 = vmatprep.subr.mxu0 %v489
        %3600 = vmatpush1.msra.mxu0 %v488
        %3601 = vmatprep.subr.mxu0 %v493
        %3602 = vmatpush1.msra.mxu0 %v492
        %3603 = vmatprep.subr.mxu0 %v497
        %3604 = vmatpush1.msra.mxu0 %v496
        %3605 = vmatprep.subr.mxu0 %v501
        %3606 = vmatpush1.msra.mxu0 %v500
        %3607 = vmatprep.subr.mxu0 %v505
        %3608 = vmatpush1.msra.mxu0 %v504
        %3609 = vmatprep.subr.mxu0 %v509
        %3610 = vmatpush1.msra.mxu0 %v508
        %3611 = vmatprep.subr.mxu0 %v513
        %3612 = vmatpush1.msra.mxu0 %v512
        %3613 = vmatprep.subr.mxu0 %v517
        %3614 = vmatpush1.msra.mxu0 %v516
        %3615 = vmatprep.subr.mxu0 %v521
        %3616 = vmatpush1.msra.mxu0 %v520
        %3617 = vmatprep.subr.mxu0 %v525
        %3618 = vmatpush1.msra.mxu0 %v524
        %3619 = vmatprep.subr.mxu0 %v529
        %3620 = vmatpush1.msra.mxu0 %v528
        %3621 = vmatprep.subr.mxu0 %v533
        %3622 = vmatpush1.msra.mxu0 %v532
        %3623 = vmatprep.subr.mxu0 %v537
        %3624 = vmatpush1.msra.mxu0 %v536
        %3625 = vmatprep.subr.mxu0 %v541
        %3626 = vmatpush1.msra.mxu0 %v540
        %3627 = vmatprep.subr.mxu0 %v545
        %3628 = vmatpush1.msra.mxu0 %v544
        %3629 = vmatprep.subr.mxu0 %v549
        %3630 = vmatpush1.msra.mxu0 %v548
        %3631 = vmatprep.subr.mxu0 %v553
        %3632 = vmatpush1.msra.mxu0 %v552
        %3633 = vmatprep.subr.mxu0 %v557
        %3634 = vmatpush1.msra.mxu0 %v556
        %3635 = vmatprep.subr.mxu0 %v561
        %3636 = vmatpush1.msra.mxu0 %v560
        %3637 = vmatprep.subr.mxu0 %v565
        %3638 = vmatpush1.msra.mxu0 %v564
        %3639 = vmatprep.subr.mxu0 %v569
        %3640 = vmatpush1.msra.mxu0 %v568
        %3641 = vmatprep.subr.mxu0 %v573
        %3642 = vmatpush1.msra.mxu0 %v572
        %3643 = vmatprep.subr.mxu0 %v577
        %3644 = vmatpush1.msra.mxu0 %v576
        %3645 = vmatprep.subr.mxu0 %v581
        %3646 = vmatpush1.msra.mxu0 %v580
        %3647 = vmatprep.subr.mxu0 %v585
        %3648 = vmatpush1.msra.mxu0 %v584
        %3649 = vmatprep.mubr.f32.mxu0 %v301
        %3650 = vmatmul.mubr.f32.gmra.mrb[0].mxu0 %v300
        %v3651 = vpop.f32.mrb[0].mxu0
        %v3652 = vadd.f32 %v3581, %v3651
        %v3653 = vpop.f32.mrb[0].mxu0
        %v3654 = vadd.f32 %v3583, %v3653
        %3655 = vdwg.mxu0
        %3656 = vmatprep.subr.mxu0 %v589
        %3657 = vmatpush1.msra.mxu0 %v588
        %3658 = vmatprep.subr.mxu0 %v593
        %3659 = vmatpush1.msra.mxu0 %v592
        %3660 = vmatprep.subr.mxu0 %v597
        %3661 = vmatpush1.msra.mxu0 %v596
        %3662 = vmatprep.subr.mxu0 %v601
        %3663 = vmatpush1.msra.mxu0 %v600
        %3664 = vmatprep.subr.mxu0 %v605
        %3665 = vmatpush1.msra.mxu0 %v604
        %3666 = vmatprep.subr.mxu0 %v609
        %3667 = vmatpush1.msra.mxu0 %v608
        %3668 = vmatprep.subr.mxu0 %v613
        %3669 = vmatpush1.msra.mxu0 %v612
        %3670 = vmatprep.subr.mxu0 %v617
        %3671 = vmatpush1.msra.mxu0 %v616
        %3672 = vmatprep.subr.mxu0 %v621
        %3673 = vmatpush1.msra.mxu0 %v620
        %3674 = vmatprep.subr.mxu0 %v625
        %3675 = vmatpush1.msra.mxu0 %v624
        %3676 = vmatprep.subr.mxu0 %v629
        %3677 = vmatpush1.msra.mxu0 %v628
        %3678 = vmatprep.subr.mxu0 %v633
        %3679 = vmatpush1.msra.mxu0 %v632
        %3680 = vmatprep.subr.mxu0 %v637
        %3681 = vmatpush1.msra.mxu0 %v636
        %3682 = vmatprep.subr.mxu0 %v641
        %3683 = vmatpush1.msra.mxu0 %v640
        %3684 = vmatprep.subr.mxu0 %v645
        %3685 = vmatpush1.msra.mxu0 %v644
        %3686 = vmatprep.subr.mxu0 %v649
        %3687 = vmatpush1.msra.mxu0 %v648
        %3688 = vmatprep.subr.mxu0 %v653
        %3689 = vmatpush1.msra.mxu0 %v652
        %3690 = vmatprep.subr.mxu0 %v657
        %3691 = vmatpush1.msra.mxu0 %v656
        %3692 = vmatprep.subr.mxu0 %v661
        %3693 = vmatpush1.msra.mxu0 %v660
        %3694 = vmatprep.subr.mxu0 %v665
        %3695 = vmatpush1.msra.mxu0 %v664
        %3696 = vmatprep.subr.mxu0 %v669
        %3697 = vmatpush1.msra.mxu0 %v668
        %3698 = vmatprep.subr.mxu0 %v673
        %3699 = vmatpush1.msra.mxu0 %v672
        %3700 = vmatprep.subr.mxu0 %v677
        %3701 = vmatpush1.msra.mxu0 %v676
        %3702 = vmatprep.subr.mxu0 %v681
        %3703 = vmatpush1.msra.mxu0 %v680
        %3704 = vmatprep.subr.mxu0 %v685
        %3705 = vmatpush1.msra.mxu0 %v684
        %3706 = vmatprep.subr.mxu0 %v689
        %3707 = vmatpush1.msra.mxu0 %v688
        %3708 = vmatprep.subr.mxu0 %v693
        %3709 = vmatpush1.msra.mxu0 %v692
        %3710 = vmatprep.subr.mxu0 %v697
        %3711 = vmatpush1.msra.mxu0 %v696
        %3712 = vmatprep.subr.mxu0 %v701
        %3713 = vmatpush1.msra.mxu0 %v700
        %3714 = vmatprep.subr.mxu0 %v705
        %3715 = vmatpush1.msra.mxu0 %v704
        %3716 = vmatprep.subr.mxu0 %v709
        %3717 = vmatpush1.msra.mxu0 %v708
        %3718 = vmatprep.subr.mxu0 %v713
        %3719 = vmatpush1.msra.mxu0 %v712
        %3720 = vmatprep.mubr.f32.mxu0 %v303
        %3721 = vmatmul.mubr.f32.gmra.mrb[0].mxu0 %v302
        %v3722 = vpop.f32.mrb[0].mxu0
        %v3723 = vadd.f32 %v3652, %v3722
        %v3724 = vpop.f32.mrb[0].mxu0
        %v3725 = vadd.f32 %v3654, %v3724
        %3726 = vdwg.mxu0
        %3727 = vmatprep.subr.mxu0 %v717
        %3728 = vmatpush1.msra.mxu0 %v716
        %3729 = vmatprep.subr.mxu0 %v721
        %3730 = vmatpush1.msra.mxu0 %v720
        %3731 = vmatprep.subr.mxu0 %v725
        %3732 = vmatpush1.msra.mxu0 %v724
        %3733 = vmatprep.subr.mxu0 %v729
        %3734 = vmatpush1.msra.mxu0 %v728
        %3735 = vmatprep.subr.mxu0 %v733
        %3736 = vmatpush1.msra.mxu0 %v732
        %3737 = vmatprep.subr.mxu0 %v737
        %3738 = vmatpush1.msra.mxu0 %v736
        %3739 = vmatprep.subr.mxu0 %v741
        %3740 = vmatpush1.msra.mxu0 %v740
        %3741 = vmatprep.subr.mxu0 %v745
        %3742 = vmatpush1.msra.mxu0 %v744
        %3743 = vmatprep.subr.mxu0 %v749
        %3744 = vmatpush1.msra.mxu0 %v748
        %3745 = vmatprep.subr.mxu0 %v753
        %3746 = vmatpush1.msra.mxu0 %v752
        %3747 = vmatprep.subr.mxu0 %v757
        %3748 = vmatpush1.msra.mxu0 %v756
        %3749 = vmatprep.subr.mxu0 %v761
        %3750 = vmatpush1.msra.mxu0 %v760
        %3751 = vmatprep.subr.mxu0 %v765
        %3752 = vmatpush1.msra.mxu0 %v764
        %3753 = vmatprep.subr.mxu0 %v769
        %3754 = vmatpush1.msra.mxu0 %v768
        %3755 = vmatprep.subr.mxu0 %v773
        %3756 = vmatpush1.msra.mxu0 %v772
        %3757 = vmatprep.subr.mxu0 %v777
        %3758 = vmatpush1.msra.mxu0 %v776
        %3759 = vmatprep.subr.mxu0 %v781
        %3760 = vmatpush1.msra.mxu0 %v780
        %3761 = vmatprep.subr.mxu0 %v785
        %3762 = vmatpush1.msra.mxu0 %v784
        %3763 = vmatprep.subr.mxu0 %v789
        %3764 = vmatpush1.msra.mxu0 %v788
        %3765 = vmatprep.subr.mxu0 %v793
        %3766 = vmatpush1.msra.mxu0 %v792
        %3767 = vmatprep.subr.mxu0 %v797
        %3768 = vmatpush1.msra.mxu0 %v796
        %3769 = vmatprep.subr.mxu0 %v801
        %3770 = vmatpush1.msra.mxu0 %v800
        %3771 = vmatprep.subr.mxu0 %v805
        %3772 = vmatpush1.msra.mxu0 %v804
        %3773 = vmatprep.subr.mxu0 %v809
        %3774 = vmatpush1.msra.mxu0 %v808
        %3775 = vmatprep.subr.mxu0 %v813
        %3776 = vmatpush1.msra.mxu0 %v812
        %3777 = vmatprep.subr.mxu0 %v817
        %3778 = vmatpush1.msra.mxu0 %v816
        %3779 = vmatprep.subr.mxu0 %v821
        %3780 = vmatpush1.msra.mxu0 %v820
        %3781 = vmatprep.subr.mxu0 %v825
        %3782 = vmatpush1.msra.mxu0 %v824
        %3783 = vmatprep.subr.mxu0 %v829
        %3784 = vmatpush1.msra.mxu0 %v828
        %3785 = vmatprep.subr.mxu0 %v833
        %3786 = vmatpush1.msra.mxu0 %v832
        %3787 = vmatprep.subr.mxu0 %v837
        %3788 = vmatpush1.msra.mxu0 %v836
        %3789 = vmatprep.subr.mxu0 %v841
        %3790 = vmatpush1.msra.mxu0 %v840
        %3791 = vmatprep.mubr.f32.mxu0 %v305
        %3792 = vmatmul.mubr.f32.gmra.mrb[0].mxu0 %v304
        %v3793 = vpop.f32.mrb[0].mxu0
        %v3794 = vadd.f32 %v3723, %v3793
        %v3795 = vpop.f32.mrb[0].mxu0
        %v3796 = vadd.f32 %v3725, %v3795
        %3797 = vdwg.mxu0
        %3798 = vmatprep.subr.mxu0 %v845
        %3799 = vmatpush1.msra.mxu0 %v844
        %3800 = vmatprep.subr.mxu0 %v849
        %3801 = vmatpush1.msra.mxu0 %v848
        %3802 = vmatprep.subr.mxu0 %v853
        %3803 = vmatpush1.msra.mxu0 %v852
        %3804 = vmatprep.subr.mxu0 %v857
        %3805 = vmatpush1.msra.mxu0 %v856
        %3806 = vmatprep.subr.mxu0 %v861
        %3807 = vmatpush1.msra.mxu0 %v860
        %3808 = vmatprep.subr.mxu0 %v865
        %3809 = vmatpush1.msra.mxu0 %v864
        %3810 = vmatprep.subr.mxu0 %v869
        %3811 = vmatpush1.msra.mxu0 %v868
        %3812 = vmatprep.subr.mxu0 %v873
        %3813 = vmatpush1.msra.mxu0 %v872
        %3814 = vmatprep.subr.mxu0 %v877
        %3815 = vmatpush1.msra.mxu0 %v876
        %3816 = vmatprep.subr.mxu0 %v881
        %3817 = vmatpush1.msra.mxu0 %v880
        %3818 = vmatprep.subr.mxu0 %v885
        %3819 = vmatpush1.msra.mxu0 %v884
        %3820 = vmatprep.subr.mxu0 %v889
        %3821 = vmatpush1.msra.mxu0 %v888
        %3822 = vmatprep.subr.mxu0 %v893
        %3823 = vmatpush1.msra.mxu0 %v892
        %3824 = vmatprep.subr.mxu0 %v897
        %3825 = vmatpush1.msra.mxu0 %v896
        %3826 = vmatprep.subr.mxu0 %v901
        %3827 = vmatpush1.msra.mxu0 %v900
        %3828 = vmatprep.subr.mxu0 %v905
        %3829 = vmatpush1.msra.mxu0 %v904
        %3830 = vmatprep.subr.mxu0 %v909
        %3831 = vmatpush1.msra.mxu0 %v908
        %3832 = vmatprep.subr.mxu0 %v913
        %3833 = vmatpush1.msra.mxu0 %v912
        %3834 = vmatprep.subr.mxu0 %v917
        %3835 = vmatpush1.msra.mxu0 %v916
        %3836 = vmatprep.subr.mxu0 %v921
        %3837 = vmatpush1.msra.mxu0 %v920
        %3838 = vmatprep.subr.mxu0 %v925
        %3839 = vmatpush1.msra.mxu0 %v924
        %3840 = vmatprep.subr.mxu0 %v929
        %3841 = vmatpush1.msra.mxu0 %v928
        %3842 = vmatprep.subr.mxu0 %v933
        %3843 = vmatpush1.msra.mxu0 %v932
        %3844 = vmatprep.subr.mxu0 %v937
        %3845 = vmatpush1.msra.mxu0 %v936
        %3846 = vmatprep.subr.mxu0 %v941
        %3847 = vmatpush1.msra.mxu0 %v940
        %3848 = vmatprep.subr.mxu0 %v945
        %3849 = vmatpush1.msra.mxu0 %v944
        %3850 = vmatprep.subr.mxu0 %v949
        %3851 = vmatpush1.msra.mxu0 %v948
        %3852 = vmatprep.subr.mxu0 %v953
        %3853 = vmatpush1.msra.mxu0 %v952
        %3854 = vmatprep.subr.mxu0 %v957
        %3855 = vmatpush1.msra.mxu0 %v956
        %3856 = vmatprep.subr.mxu0 %v961
        %3857 = vmatpush1.msra.mxu0 %v960
        %3858 = vmatprep.subr.mxu0 %v965
        %3859 = vmatpush1.msra.mxu0 %v964
        %3860 = vmatprep.subr.mxu0 %v969
        %3861 = vmatpush1.msra.mxu0 %v968
        %3862 = vmatprep.mubr.f32.mxu0 %v307
        %3863 = vmatmul.mubr.f32.gmra.mrb[0].mxu0 %v306
        %v3864 = vpop.f32.mrb[0].mxu0
        %v3865 = vadd.f32 %v3794, %v3864
        %v3866 = vpop.f32.mrb[0].mxu0
        %v3867 = vadd.f32 %v3796, %v3866
        %3868 = vdwg.mxu0
        %3869 = vmatprep.subr.mxu0 %v973
        %3870 = vmatpush1.msra.mxu0 %v972
        %3871 = vmatprep.subr.mxu0 %v977
        %3872 = vmatpush1.msra.mxu0 %v976
        %3873 = vmatprep.subr.mxu0 %v981
        %3874 = vmatpush1.msra.mxu0 %v980
        %3875 = vmatprep.subr.mxu0 %v985
        %3876 = vmatpush1.msra.mxu0 %v984
        %3877 = vmatprep.subr.mxu0 %v989
        %3878 = vmatpush1.msra.mxu0 %v988
        %3879 = vmatprep.subr.mxu0 %v993
        %3880 = vmatpush1.msra.mxu0 %v992
        %3881 = vmatprep.subr.mxu0 %v997
        %3882 = vmatpush1.msra.mxu0 %v996
        %3883 = vmatprep.subr.mxu0 %v1001
        %3884 = vmatpush1.msra.mxu0 %v1000
        %3885 = vmatprep.subr.mxu0 %v1005
        %3886 = vmatpush1.msra.mxu0 %v1004
        %3887 = vmatprep.subr.mxu0 %v1009
        %3888 = vmatpush1.msra.mxu0 %v1008
        %3889 = vmatprep.subr.mxu0 %v1013
        %3890 = vmatpush1.msra.mxu0 %v1012
        %3891 = vmatprep.subr.mxu0 %v1017
        %3892 = vmatpush1.msra.mxu0 %v1016
        %3893 = vmatprep.subr.mxu0 %v1021
        %3894 = vmatpush1.msra.mxu0 %v1020
        %3895 = vmatprep.subr.mxu0 %v1025
        %3896 = vmatpush1.msra.mxu0 %v1024
        %3897 = vmatprep.subr.mxu0 %v1029
        %3898 = vmatpush1.msra.mxu0 %v1028
        %3899 = vmatprep.subr.mxu0 %v1033
        %3900 = vmatpush1.msra.mxu0 %v1032
        %3901 = vmatprep.subr.mxu0 %v1037
        %3902 = vmatpush1.msra.mxu0 %v1036
        %3903 = vmatprep.subr.mxu0 %v1041
        %3904 = vmatpush1.msra.mxu0 %v1040
        %3905 = vmatprep.subr.mxu0 %v1045
        %3906 = vmatpush1.msra.mxu0 %v1044
        %3907 = vmatprep.subr.mxu0 %v1049
        %3908 = vmatpush1.msra.mxu0 %v1048
        %3909 = vmatprep.subr.mxu0 %v1053
        %3910 = vmatpush1.msra.mxu0 %v1052
        %3911 = vmatprep.subr.mxu0 %v1057
        %3912 = vmatpush1.msra.mxu0 %v1056
        %3913 = vmatprep.subr.mxu0 %v1061
        %3914 = vmatpush1.msra.mxu0 %v1060
        %3915 = vmatprep.subr.mxu0 %v1065
        %3916 = vmatpush1.msra.mxu0 %v1064
        %3917 = vmatprep.subr.mxu0 %v1069
        %3918 = vmatpush1.msra.mxu0 %v1068
        %3919 = vmatprep.subr.mxu0 %v1073
        %3920 = vmatpush1.msra.mxu0 %v1072
        %3921 = vmatprep.subr.mxu0 %v1077
        %3922 = vmatpush1.msra.mxu0 %v1076
        %3923 = vmatprep.subr.mxu0 %v1081
        %3924 = vmatpush1.msra.mxu0 %v1080
        %3925 = vmatprep.subr.mxu0 %v1085
        %3926 = vmatpush1.msra.mxu0 %v1084
        %3927 = vmatprep.subr.mxu0 %v1089
        %3928 = vmatpush1.msra.mxu0 %v1088
        %3929 = vmatprep.subr.mxu0 %v1093
        %3930 = vmatpush1.msra.mxu0 %v1092
        %3931 = vmatprep.subr.mxu0 %v1097
        %3932 = vmatpush1.msra.mxu0 %v1096
        %3933 = vmatprep.mubr.f32.mxu0 %v309
        %3934 = vmatmul.mubr.f32.gmra.mrb[0].mxu0 %v308
        %v3935 = vpop.f32.mrb[0].mxu0
        %v3936 = vadd.f32 %v3865, %v3935
        %v3937 = vpop.f32.mrb[0].mxu0
        %v3938 = vadd.f32 %v3867, %v3937
        %3939 = vdwg.mxu0
        %3940 = vmatprep.subr.mxu0 %v1101
        %3941 = vmatpush1.msra.mxu0 %v1100
        %3942 = vmatprep.subr.mxu0 %v1105
        %3943 = vmatpush1.msra.mxu0 %v1104
        %3944 = vmatprep.subr.mxu0 %v1109
        %3945 = vmatpush1.msra.mxu0 %v1108
        %3946 = vmatprep.subr.mxu0 %v1113
        %3947 = vmatpush1.msra.mxu0 %v1112
        %3948 = vmatprep.subr.mxu0 %v1117
        %3949 = vmatpush1.msra.mxu0 %v1116
        %3950 = vmatprep.subr.mxu0 %v1121
        %3951 = vmatpush1.msra.mxu0 %v1120
        %3952 = vmatprep.subr.mxu0 %v1125
        %3953 = vmatpush1.msra.mxu0 %v1124
        %3954 = vmatprep.subr.mxu0 %v1129
        %3955 = vmatpush1.msra.mxu0 %v1128
        %3956 = vmatprep.subr.mxu0 %v1133
        %3957 = vmatpush1.msra.mxu0 %v1132
        %3958 = vmatprep.subr.mxu0 %v1137
        %3959 = vmatpush1.msra.mxu0 %v1136
        %3960 = vmatprep.subr.mxu0 %v1141
        %3961 = vmatpush1.msra.mxu0 %v1140
        %3962 = vmatprep.subr.mxu0 %v1145
        %3963 = vmatpush1.msra.mxu0 %v1144
        %3964 = vmatprep.subr.mxu0 %v1149
        %3965 = vmatpush1.msra.mxu0 %v1148
        %3966 = vmatprep.subr.mxu0 %v1153
        %3967 = vmatpush1.msra.mxu0 %v1152
        %3968 = vmatprep.subr.mxu0 %v1157
        %3969 = vmatpush1.msra.mxu0 %v1156
        %3970 = vmatprep.subr.mxu0 %v1161
        %3971 = vmatpush1.msra.mxu0 %v1160
        %3972 = vmatprep.subr.mxu0 %v1165
        %3973 = vmatpush1.msra.mxu0 %v1164
        %3974 = vmatprep.subr.mxu0 %v1169
        %3975 = vmatpush1.msra.mxu0 %v1168
        %3976 = vmatprep.subr.mxu0 %v1173
        %3977 = vmatpush1.msra.mxu0 %v1172
        %3978 = vmatprep.subr.mxu0 %v1177
        %3979 = vmatpush1.msra.mxu0 %v1176
        %3980 = vmatprep.subr.mxu0 %v1181
        %3981 = vmatpush1.msra.mxu0 %v1180
        %3982 = vmatprep.subr.mxu0 %v1185
        %3983 = vmatpush1.msra.mxu0 %v1184
        %3984 = vmatprep.subr.mxu0 %v1189
        %3985 = vmatpush1.msra.mxu0 %v1188
        %3986 = vmatprep.subr.mxu0 %v1193
        %3987 = vmatpush1.msra.mxu0 %v1192
        %3988 = vmatprep.subr.mxu0 %v1197
        %3989 = vmatpush1.msra.mxu0 %v1196
        %3990 = vmatprep.subr.mxu0 %v1201
        %3991 = vmatpush1.msra.mxu0 %v1200
        %3992 = vmatprep.subr.mxu0 %v1205
        %3993 = vmatpush1.msra.mxu0 %v1204
        %3994 = vmatprep.subr.mxu0 %v1209
        %3995 = vmatpush1.msra.mxu0 %v1208
        %3996 = vmatprep.subr.mxu0 %v1213
        %3997 = vmatpush1.msra.mxu0 %v1212
        %3998 = vmatprep.subr.mxu0 %v1217
        %3999 = vmatpush1.msra.mxu0 %v1216
        %4000 = vmatprep.subr.mxu0 %v1221
        %4001 = vmatpush1.msra.mxu0 %v1220
        %4002 = vmatprep.subr.mxu0 %v1225
        %4003 = vmatpush1.msra.mxu0 %v1224
        %4004 = vmatprep.mubr.f32.mxu0 %v311
        %4005 = vmatmul.mubr.f32.gmra.mrb[0].mxu0 %v310
        %v4006 = vpop.f32.mrb[0].mxu0
        %v4007 = vadd.f32 %v3936, %v4006
        %v4008 = vpop.f32.mrb[0].mxu0
        %v4009 = vadd.f32 %v3938, %v4008
        %4010 = vdwg.mxu0
        %4011 = vmatprep.subr.mxu0 %v1229
        %4012 = vmatpush1.msra.mxu0 %v1228
        %4013 = vmatprep.subr.mxu0 %v1233
        %4014 = vmatpush1.msra.mxu0 %v1232
        %4015 = vmatprep.subr.mxu0 %v1237
        %4016 = vmatpush1.msra.mxu0 %v1236
        %4017 = vmatprep.subr.mxu0 %v1241
        %4018 = vmatpush1.msra.mxu0 %v1240
        %4019 = vmatprep.subr.mxu0 %v1245
        %4020 = vmatpush1.msra.mxu0 %v1244
        %4021 = vmatprep.subr.mxu0 %v1249
        %4022 = vmatpush1.msra.mxu0 %v1248
        %4023 = vmatprep.subr.mxu0 %v1253
        %4024 = vmatpush1.msra.mxu0 %v1252
        %4025 = vmatprep.subr.mxu0 %v1257
        %4026 = vmatpush1.msra.mxu0 %v1256
        %4027 = vmatprep.subr.mxu0 %v1261
        %4028 = vmatpush1.msra.mxu0 %v1260
        %4029 = vmatprep.subr.mxu0 %v1265
        %4030 = vmatpush1.msra.mxu0 %v1264
        %4031 = vmatprep.subr.mxu0 %v1269
        %4032 = vmatpush1.msra.mxu0 %v1268
        %4033 = vmatprep.subr.mxu0 %v1273
        %4034 = vmatpush1.msra.mxu0 %v1272
        %4035 = vmatprep.subr.mxu0 %v1277
        %4036 = vmatpush1.msra.mxu0 %v1276
        %4037 = vmatprep.subr.mxu0 %v1281
        %4038 = vmatpush1.msra.mxu0 %v1280
        %4039 = vmatprep.subr.mxu0 %v1285
        %4040 = vmatpush1.msra.mxu0 %v1284
        %4041 = vmatprep.subr.mxu0 %v1289
        %4042 = vmatpush1.msra.mxu0 %v1288
        %4043 = vmatprep.subr.mxu0 %v1293
        %4044 = vmatpush1.msra.mxu0 %v1292
        %4045 = vmatprep.subr.mxu0 %v1297
        %4046 = vmatpush1.msra.mxu0 %v1296
        %4047 = vmatprep.subr.mxu0 %v1301
        %4048 = vmatpush1.msra.mxu0 %v1300
        %4049 = vmatprep.subr.mxu0 %v1305
        %4050 = vmatpush1.msra.mxu0 %v1304
        %4051 = vmatprep.subr.mxu0 %v1309
        %4052 = vmatpush1.msra.mxu0 %v1308
        %4053 = vmatprep.subr.mxu0 %v1313
        %4054 = vmatpush1.msra.mxu0 %v1312
        %4055 = vmatprep.subr.mxu0 %v1317
        %4056 = vmatpush1.msra.mxu0 %v1316
        %4057 = vmatprep.subr.mxu0 %v1321
        %4058 = vmatpush1.msra.mxu0 %v1320
        %4059 = vmatprep.subr.mxu0 %v1325
        %4060 = vmatpush1.msra.mxu0 %v1324
        %4061 = vmatprep.subr.mxu0 %v1329
        %4062 = vmatpush1.msra.mxu0 %v1328
        %4063 = vmatprep.subr.mxu0 %v1333
        %4064 = vmatpush1.msra.mxu0 %v1332
        %4065 = vmatprep.subr.mxu0 %v1337
        %4066 = vmatpush1.msra.mxu0 %v1336
        %4067 = vmatprep.subr.mxu0 %v1341
        %4068 = vmatpush1.msra.mxu0 %v1340
        %4069 = vmatprep.subr.mxu0 %v1345
        %4070 = vmatpush1.msra.mxu0 %v1344
        %4071 = vmatprep.subr.mxu0 %v1349
        %4072 = vmatpush1.msra.mxu0 %v1348
        %4073 = vmatprep.subr.mxu0 %v1353
        %4074 = vmatpush1.msra.mxu0 %v1352
        %4075 = vmatprep.mubr.f32.mxu0 %v313
        %4076 = vmatmul.mubr.f32.gmra.mrb[0].mxu0 %v312
        %v4077 = vpop.f32.mrb[0].mxu0
        %v4078 = vadd.f32 %v4007, %v4077
        %v4079 = vpop.f32.mrb[0].mxu0
        %v4080 = vadd.f32 %v4009, %v4079
        %4081 = vdwg.mxu0
        %4082 = vmatprep.subr.mxu0 %v1357
        %4083 = vmatpush1.msra.mxu0 %v1356
        %4084 = vmatprep.subr.mxu0 %v1361
        %4085 = vmatpush1.msra.mxu0 %v1360
        %4086 = vmatprep.subr.mxu0 %v1365
        %4087 = vmatpush1.msra.mxu0 %v1364
        %4088 = vmatprep.subr.mxu0 %v1369
        %4089 = vmatpush1.msra.mxu0 %v1368
        %4090 = vmatprep.subr.mxu0 %v1373
        %4091 = vmatpush1.msra.mxu0 %v1372
        %4092 = vmatprep.subr.mxu0 %v1377
        %4093 = vmatpush1.msra.mxu0 %v1376
        %4094 = vmatprep.subr.mxu0 %v1381
        %4095 = vmatpush1.msra.mxu0 %v1380
        %4096 = vmatprep.subr.mxu0 %v1385
        %4097 = vmatpush1.msra.mxu0 %v1384
        %4098 = vmatprep.subr.mxu0 %v1389
        %4099 = vmatpush1.msra.mxu0 %v1388
        %4100 = vmatprep.subr.mxu0 %v1393
        %4101 = vmatpush1.msra.mxu0 %v1392
        %4102 = vmatprep.subr.mxu0 %v1397
        %4103 = vmatpush1.msra.mxu0 %v1396
        %4104 = vmatprep.subr.mxu0 %v1401
        %4105 = vmatpush1.msra.mxu0 %v1400
        %4106 = vmatprep.subr.mxu0 %v1405
        %4107 = vmatpush1.msra.mxu0 %v1404
        %4108 = vmatprep.subr.mxu0 %v1409
        %4109 = vmatpush1.msra.mxu0 %v1408
        %4110 = vmatprep.subr.mxu0 %v1413
        %4111 = vmatpush1.msra.mxu0 %v1412
        %4112 = vmatprep.subr.mxu0 %v1417
        %4113 = vmatpush1.msra.mxu0 %v1416
        %4114 = vmatprep.subr.mxu0 %v1421
        %4115 = vmatpush1.msra.mxu0 %v1420
        %4116 = vmatprep.subr.mxu0 %v1425
        %4117 = vmatpush1.msra.mxu0 %v1424
        %4118 = vmatprep.subr.mxu0 %v1429
        %4119 = vmatpush1.msra.mxu0 %v1428
        %4120 = vmatprep.subr.mxu0 %v1433
        %4121 = vmatpush1.msra.mxu0 %v1432
        %4122 = vmatprep.subr.mxu0 %v1437
        %4123 = vmatpush1.msra.mxu0 %v1436
        %4124 = vmatprep.subr.mxu0 %v1441
        %4125 = vmatpush1.msra.mxu0 %v1440
        %4126 = vmatprep.subr.mxu0 %v1445
        %4127 = vmatpush1.msra.mxu0 %v1444
        %4128 = vmatprep.subr.mxu0 %v1449
        %4129 = vmatpush1.msra.mxu0 %v1448
        %4130 = vmatprep.subr.mxu0 %v1453
        %4131 = vmatpush1.msra.mxu0 %v1452
        %4132 = vmatprep.subr.mxu0 %v1457
        %4133 = vmatpush1.msra.mxu0 %v1456
        %4134 = vmatprep.subr.mxu0 %v1461
        %4135 = vmatpush1.msra.mxu0 %v1460
        %4136 = vmatprep.subr.mxu0 %v1465
        %4137 = vmatpush1.msra.mxu0 %v1464
        %4138 = vmatprep.subr.mxu0 %v1469
        %4139 = vmatpush1.msra.mxu0 %v1468
        %4140 = vmatprep.subr.mxu0 %v1473
        %4141 = vmatpush1.msra.mxu0 %v1472
        %4142 = vmatprep.subr.mxu0 %v1477
        %4143 = vmatpush1.msra.mxu0 %v1476
        %4144 = vmatprep.subr.mxu0 %v1481
        %4145 = vmatpush1.msra.mxu0 %v1480
        %4146 = vmatprep.mubr.f32.mxu0 %v315
        %4147 = vmatmul.mubr.f32.gmra.mrb[0].mxu0 %v314
        %v4148 = vpop.f32.mrb[0].mxu0
        %v4149 = vadd.f32 %v4078, %v4148
        %v4150 = vpop.f32.mrb[0].mxu0
        %v4151 = vadd.f32 %v4080, %v4150
        %4152 = vdwg.mxu0
        %4153 = vmatprep.subr.mxu0 %v1485
        %4154 = vmatpush1.msra.mxu0 %v1484
        %4155 = vmatprep.subr.mxu0 %v1489
        %4156 = vmatpush1.msra.mxu0 %v1488
        %4157 = vmatprep.subr.mxu0 %v1493
        %4158 = vmatpush1.msra.mxu0 %v1492
        %4159 = vmatprep.subr.mxu0 %v1497
        %4160 = vmatpush1.msra.mxu0 %v1496
        %4161 = vmatprep.subr.mxu0 %v1501
        %4162 = vmatpush1.msra.mxu0 %v1500
        %4163 = vmatprep.subr.mxu0 %v1505
        %4164 = vmatpush1.msra.mxu0 %v1504
        %4165 = vmatprep.subr.mxu0 %v1509
        %4166 = vmatpush1.msra.mxu0 %v1508
        %4167 = vmatprep.subr.mxu0 %v1513
        %4168 = vmatpush1.msra.mxu0 %v1512
        %4169 = vmatprep.subr.mxu0 %v1517
        %4170 = vmatpush1.msra.mxu0 %v1516
        %4171 = vmatprep.subr.mxu0 %v1521
        %4172 = vmatpush1.msra.mxu0 %v1520
        %4173 = vmatprep.subr.mxu0 %v1525
        %4174 = vmatpush1.msra.mxu0 %v1524
        %4175 = vmatprep.subr.mxu0 %v1529
        %4176 = vmatpush1.msra.mxu0 %v1528
        %4177 = vmatprep.subr.mxu0 %v1533
        %4178 = vmatpush1.msra.mxu0 %v1532
        %4179 = vmatprep.subr.mxu0 %v1537
        %4180 = vmatpush1.msra.mxu0 %v1536
        %4181 = vmatprep.subr.mxu0 %v1541
        %4182 = vmatpush1.msra.mxu0 %v1540
        %4183 = vmatprep.subr.mxu0 %v1545
        %4184 = vmatpush1.msra.mxu0 %v1544
        %4185 = vmatprep.subr.mxu0 %v1549
        %4186 = vmatpush1.msra.mxu0 %v1548
        %4187 = vmatprep.subr.mxu0 %v1553
        %4188 = vmatpush1.msra.mxu0 %v1552
        %4189 = vmatprep.subr.mxu0 %v1557
        %4190 = vmatpush1.msra.mxu0 %v1556
        %4191 = vmatprep.subr.mxu0 %v1561
        %4192 = vmatpush1.msra.mxu0 %v1560
        %4193 = vmatprep.subr.mxu0 %v1565
        %4194 = vmatpush1.msra.mxu0 %v1564
        %4195 = vmatprep.subr.mxu0 %v1569
        %4196 = vmatpush1.msra.mxu0 %v1568
        %4197 = vmatprep.subr.mxu0 %v1573
        %4198 = vmatpush1.msra.mxu0 %v1572
        %4199 = vmatprep.subr.mxu0 %v1577
        %4200 = vmatpush1.msra.mxu0 %v1576
        %4201 = vmatprep.subr.mxu0 %v1581
        %4202 = vmatpush1.msra.mxu0 %v1580
        %4203 = vmatprep.subr.mxu0 %v1585
        %4204 = vmatpush1.msra.mxu0 %v1584
        %4205 = vmatprep.subr.mxu0 %v1589
        %4206 = vmatpush1.msra.mxu0 %v1588
        %4207 = vmatprep.subr.mxu0 %v1593
        %4208 = vmatpush1.msra.mxu0 %v1592
        %4209 = vmatprep.subr.mxu0 %v1597
        %4210 = vmatpush1.msra.mxu0 %v1596
        %4211 = vmatprep.subr.mxu0 %v1601
        %4212 = vmatpush1.msra.mxu0 %v1600
        %4213 = vmatprep.subr.mxu0 %v1605
        %4214 = vmatpush1.msra.mxu0 %v1604
        %4215 = vmatprep.subr.mxu0 %v1609
        %4216 = vmatpush1.msra.mxu0 %v1608
        %4217 = vmatprep.mubr.f32.mxu0 %v317
        %4218 = vmatmul.mubr.f32.gmra.mrb[0].mxu0 %v316
        %v4219 = vpop.f32.mrb[0].mxu0
        %v4220 = vadd.f32 %v4149, %v4219
        %v4221 = vpop.f32.mrb[0].mxu0
        %v4222 = vadd.f32 %v4151, %v4221
        %4223 = vdwg.mxu0
        %4224 = vmatprep.subr.mxu0 %v1613
        %4225 = vmatpush1.msra.mxu0 %v1612
        %4226 = vmatprep.subr.mxu0 %v1617
        %4227 = vmatpush1.msra.mxu0 %v1616
        %4228 = vmatprep.subr.mxu0 %v1621
        %4229 = vmatpush1.msra.mxu0 %v1620
        %4230 = vmatprep.subr.mxu0 %v1625
        %4231 = vmatpush1.msra.mxu0 %v1624
        %4232 = vmatprep.subr.mxu0 %v1629
        %4233 = vmatpush1.msra.mxu0 %v1628
        %4234 = vmatprep.subr.mxu0 %v1633
        %4235 = vmatpush1.msra.mxu0 %v1632
        %4236 = vmatprep.subr.mxu0 %v1637
        %4237 = vmatpush1.msra.mxu0 %v1636
        %4238 = vmatprep.subr.mxu0 %v1641
        %4239 = vmatpush1.msra.mxu0 %v1640
        %4240 = vmatprep.subr.mxu0 %v1645
        %4241 = vmatpush1.msra.mxu0 %v1644
        %4242 = vmatprep.subr.mxu0 %v1649
        %4243 = vmatpush1.msra.mxu0 %v1648
        %4244 = vmatprep.subr.mxu0 %v1653
        %4245 = vmatpush1.msra.mxu0 %v1652
        %4246 = vmatprep.subr.mxu0 %v1657
        %4247 = vmatpush1.msra.mxu0 %v1656
        %4248 = vmatprep.subr.mxu0 %v1661
        %4249 = vmatpush1.msra.mxu0 %v1660
        %4250 = vmatprep.subr.mxu0 %v1665
        %4251 = vmatpush1.msra.mxu0 %v1664
        %4252 = vmatprep.subr.mxu0 %v1669
        %4253 = vmatpush1.msra.mxu0 %v1668
        %4254 = vmatprep.subr.mxu0 %v1673
        %4255 = vmatpush1.msra.mxu0 %v1672
        %4256 = vmatprep.subr.mxu0 %v1677
        %4257 = vmatpush1.msra.mxu0 %v1676
        %4258 = vmatprep.subr.mxu0 %v1681
        %4259 = vmatpush1.msra.mxu0 %v1680
        %4260 = vmatprep.subr.mxu0 %v1685
        %4261 = vmatpush1.msra.mxu0 %v1684
        %4262 = vmatprep.subr.mxu0 %v1689
        %4263 = vmatpush1.msra.mxu0 %v1688
        %4264 = vmatprep.subr.mxu0 %v1693
        %4265 = vmatpush1.msra.mxu0 %v1692
        %4266 = vmatprep.subr.mxu0 %v1697
        %4267 = vmatpush1.msra.mxu0 %v1696
        %4268 = vmatprep.subr.mxu0 %v1701
        %4269 = vmatpush1.msra.mxu0 %v1700
        %4270 = vmatprep.subr.mxu0 %v1705
        %4271 = vmatpush1.msra.mxu0 %v1704
        %4272 = vmatprep.subr.mxu0 %v1709
        %4273 = vmatpush1.msra.mxu0 %v1708
        %4274 = vmatprep.subr.mxu0 %v1713
        %4275 = vmatpush1.msra.mxu0 %v1712
        %4276 = vmatprep.subr.mxu0 %v1717
        %4277 = vmatpush1.msra.mxu0 %v1716
        %4278 = vmatprep.subr.mxu0 %v1721
        %4279 = vmatpush1.msra.mxu0 %v1720
        %4280 = vmatprep.subr.mxu0 %v1725
        %4281 = vmatpush1.msra.mxu0 %v1724
        %4282 = vmatprep.subr.mxu0 %v1729
        %4283 = vmatpush1.msra.mxu0 %v1728
        %4284 = vmatprep.subr.mxu0 %v1733
        %4285 = vmatpush1.msra.mxu0 %v1732
        %4286 = vmatprep.subr.mxu0 %v1737
        %4287 = vmatpush1.msra.mxu0 %v1736
        %4288 = vmatprep.mubr.f32.mxu0 %v319
        %4289 = vmatmul.mubr.f32.gmra.mrb[0].mxu0 %v318
        %v4290 = vpop.f32.mrb[0].mxu0
        %v4291 = vadd.f32 %v4220, %v4290
        %v4292 = vpop.f32.mrb[0].mxu0
        %v4293 = vadd.f32 %v4222, %v4292
        %4294 = vdwg.mxu0
        %4295 = vmatprep.subr.mxu0 %v1741
        %4296 = vmatpush1.msra.mxu0 %v1740
        %4297 = vmatprep.subr.mxu0 %v1745
        %4298 = vmatpush1.msra.mxu0 %v1744
        %4299 = vmatprep.subr.mxu0 %v1749
        %4300 = vmatpush1.msra.mxu0 %v1748
        %4301 = vmatprep.subr.mxu0 %v1753
        %4302 = vmatpush1.msra.mxu0 %v1752
        %4303 = vmatprep.subr.mxu0 %v1757
        %4304 = vmatpush1.msra.mxu0 %v1756
        %4305 = vmatprep.subr.mxu0 %v1761
        %4306 = vmatpush1.msra.mxu0 %v1760
        %4307 = vmatprep.subr.mxu0 %v1765
        %4308 = vmatpush1.msra.mxu0 %v1764
        %4309 = vmatprep.subr.mxu0 %v1769
        %4310 = vmatpush1.msra.mxu0 %v1768
        %4311 = vmatprep.subr.mxu0 %v1773
        %4312 = vmatpush1.msra.mxu0 %v1772
        %4313 = vmatprep.subr.mxu0 %v1777
        %4314 = vmatpush1.msra.mxu0 %v1776
        %4315 = vmatprep.subr.mxu0 %v1781
        %4316 = vmatpush1.msra.mxu0 %v1780
        %4317 = vmatprep.subr.mxu0 %v1785
        %4318 = vmatpush1.msra.mxu0 %v1784
        %4319 = vmatprep.subr.mxu0 %v1789
        %4320 = vmatpush1.msra.mxu0 %v1788
        %4321 = vmatprep.subr.mxu0 %v1793
        %4322 = vmatpush1.msra.mxu0 %v1792
        %4323 = vmatprep.subr.mxu0 %v1797
        %4324 = vmatpush1.msra.mxu0 %v1796
        %4325 = vmatprep.subr.mxu0 %v1801
        %4326 = vmatpush1.msra.mxu0 %v1800
        %4327 = vmatprep.subr.mxu0 %v1805
        %4328 = vmatpush1.msra.mxu0 %v1804
        %4329 = vmatprep.subr.mxu0 %v1809
        %4330 = vmatpush1.msra.mxu0 %v1808
        %4331 = vmatprep.subr.mxu0 %v1813
        %4332 = vmatpush1.msra.mxu0 %v1812
        %4333 = vmatprep.subr.mxu0 %v1817
        %4334 = vmatpush1.msra.mxu0 %v1816
        %4335 = vmatprep.subr.mxu0 %v1821
        %4336 = vmatpush1.msra.mxu0 %v1820
        %4337 = vmatprep.subr.mxu0 %v1825
        %4338 = vmatpush1.msra.mxu0 %v1824
        %4339 = vmatprep.subr.mxu0 %v1829
        %4340 = vmatpush1.msra.mxu0 %v1828
        %4341 = vmatprep.subr.mxu0 %v1833
        %4342 = vmatpush1.msra.mxu0 %v1832
        %4343 = vmatprep.subr.mxu0 %v1837
        %4344 = vmatpush1.msra.mxu0 %v1836
        %4345 = vmatprep.subr.mxu0 %v1841
        %4346 = vmatpush1.msra.mxu0 %v1840
        %4347 = vmatprep.subr.mxu0 %v1845
        %4348 = vmatpush1.msra.mxu0 %v1844
        %4349 = vmatprep.subr.mxu0 %v1849
        %4350 = vmatpush1.msra.mxu0 %v1848
        %4351 = vmatprep.subr.mxu0 %v1853
        %4352 = vmatpush1.msra.mxu0 %v1852
        %4353 = vmatprep.subr.mxu0 %v1857
        %4354 = vmatpush1.msra.mxu0 %v1856
        %4355 = vmatprep.subr.mxu0 %v1861
        %4356 = vmatpush1.msra.mxu0 %v1860
        %4357 = vmatprep.subr.mxu0 %v1865
        %4358 = vmatpush1.msra.mxu0 %v1864
        %4359 = vmatprep.mubr.f32.mxu0 %v321
        %4360 = vmatmul.mubr.f32.gmra.mrb[0].mxu0 %v320
        %v4361 = vpop.f32.mrb[0].mxu0
        %v4362 = vadd.f32 %v4291, %v4361
        %v4363 = vpop.f32.mrb[0].mxu0
        %v4364 = vadd.f32 %v4293, %v4363
        %4365 = vdwg.mxu0
        %4366 = vmatprep.subr.mxu0 %v1869
        %4367 = vmatpush1.msra.mxu0 %v1868
        %4368 = vmatprep.subr.mxu0 %v1873
        %4369 = vmatpush1.msra.mxu0 %v1872
        %4370 = vmatprep.subr.mxu0 %v1877
        %4371 = vmatpush1.msra.mxu0 %v1876
        %4372 = vmatprep.subr.mxu0 %v1881
        %4373 = vmatpush1.msra.mxu0 %v1880
        %4374 = vmatprep.subr.mxu0 %v1885
        %4375 = vmatpush1.msra.mxu0 %v1884
        %4376 = vmatprep.subr.mxu0 %v1889
        %4377 = vmatpush1.msra.mxu0 %v1888
        %4378 = vmatprep.subr.mxu0 %v1893
        %4379 = vmatpush1.msra.mxu0 %v1892
        %4380 = vmatprep.subr.mxu0 %v1897
        %4381 = vmatpush1.msra.mxu0 %v1896
        %4382 = vmatprep.subr.mxu0 %v1901
        %4383 = vmatpush1.msra.mxu0 %v1900
        %4384 = vmatprep.subr.mxu0 %v1905
        %4385 = vmatpush1.msra.mxu0 %v1904
        %4386 = vmatprep.subr.mxu0 %v1909
        %4387 = vmatpush1.msra.mxu0 %v1908
        %4388 = vmatprep.subr.mxu0 %v1913
        %4389 = vmatpush1.msra.mxu0 %v1912
        %4390 = vmatprep.subr.mxu0 %v1917
        %4391 = vmatpush1.msra.mxu0 %v1916
        %4392 = vmatprep.subr.mxu0 %v1921
        %4393 = vmatpush1.msra.mxu0 %v1920
        %4394 = vmatprep.subr.mxu0 %v1925
        %4395 = vmatpush1.msra.mxu0 %v1924
        %4396 = vmatprep.subr.mxu0 %v1929
        %4397 = vmatpush1.msra.mxu0 %v1928
        %4398 = vmatprep.subr.mxu0 %v1933
        %4399 = vmatpush1.msra.mxu0 %v1932
        %4400 = vmatprep.subr.mxu0 %v1937
        %4401 = vmatpush1.msra.mxu0 %v1936
        %4402 = vmatprep.subr.mxu0 %v1941
        %4403 = vmatpush1.msra.mxu0 %v1940
        %4404 = vmatprep.subr.mxu0 %v1945
        %4405 = vmatpush1.msra.mxu0 %v1944
        %4406 = vmatprep.subr.mxu0 %v1949
        %4407 = vmatpush1.msra.mxu0 %v1948
        %4408 = vmatprep.subr.mxu0 %v1953
        %4409 = vmatpush1.msra.mxu0 %v1952
        %4410 = vmatprep.subr.mxu0 %v1957
        %4411 = vmatpush1.msra.mxu0 %v1956
        %4412 = vmatprep.subr.mxu0 %v1961
        %4413 = vmatpush1.msra.mxu0 %v1960
        %4414 = vmatprep.subr.mxu0 %v1965
        %4415 = vmatpush1.msra.mxu0 %v1964
        %4416 = vmatprep.subr.mxu0 %v1969
        %4417 = vmatpush1.msra.mxu0 %v1968
        %4418 = vmatprep.subr.mxu0 %v1973
        %4419 = vmatpush1.msra.mxu0 %v1972
        %4420 = vmatprep.subr.mxu0 %v1977
        %4421 = vmatpush1.msra.mxu0 %v1976
        %4422 = vmatprep.subr.mxu0 %v1981
        %4423 = vmatpush1.msra.mxu0 %v1980
        %4424 = vmatprep.subr.mxu0 %v1985
        %4425 = vmatpush1.msra.mxu0 %v1984
        %4426 = vmatprep.subr.mxu0 %v1989
        %4427 = vmatpush1.msra.mxu0 %v1988
        %4428 = vmatprep.subr.mxu0 %v1993
        %4429 = vmatpush1.msra.mxu0 %v1992
        %4430 = vmatprep.mubr.f32.mxu0 %v323
        %4431 = vmatmul.mubr.f32.gmra.mrb[0].mxu0 %v322
        %v4432 = vpop.f32.mrb[0].mxu0
        %v4433 = vadd.f32 %v4362, %v4432
        %v4434 = vpop.f32.mrb[0].mxu0
        %v4435 = vadd.f32 %v4364, %v4434
        %4436 = vdwg.mxu0
        %4437 = vmatprep.subr.mxu0 %v1997
        %4438 = vmatpush1.msra.mxu0 %v1996
        %4439 = vmatprep.subr.mxu0 %v2001
        %4440 = vmatpush1.msra.mxu0 %v2000
        %4441 = vmatprep.subr.mxu0 %v2005
        %4442 = vmatpush1.msra.mxu0 %v2004
        %4443 = vmatprep.subr.mxu0 %v2009
        %4444 = vmatpush1.msra.mxu0 %v2008
        %4445 = vmatprep.subr.mxu0 %v2013
        %4446 = vmatpush1.msra.mxu0 %v2012
        %4447 = vmatprep.subr.mxu0 %v2017
        %4448 = vmatpush1.msra.mxu0 %v2016
        %4449 = vmatprep.subr.mxu0 %v2021
        %4450 = vmatpush1.msra.mxu0 %v2020
        %4451 = vmatprep.subr.mxu0 %v2025
        %4452 = vmatpush1.msra.mxu0 %v2024
        %4453 = vmatprep.subr.mxu0 %v2029
        %4454 = vmatpush1.msra.mxu0 %v2028
        %4455 = vmatprep.subr.mxu0 %v2033
        %4456 = vmatpush1.msra.mxu0 %v2032
        %4457 = vmatprep.subr.mxu0 %v2037
        %4458 = vmatpush1.msra.mxu0 %v2036
        %4459 = vmatprep.subr.mxu0 %v2041
        %4460 = vmatpush1.msra.mxu0 %v2040
        %4461 = vmatprep.subr.mxu0 %v2045
        %4462 = vmatpush1.msra.mxu0 %v2044
        %4463 = vmatprep.subr.mxu0 %v2049
        %4464 = vmatpush1.msra.mxu0 %v2048
        %4465 = vmatprep.subr.mxu0 %v2053
        %4466 = vmatpush1.msra.mxu0 %v2052
        %4467 = vmatprep.subr.mxu0 %v2057
        %4468 = vmatpush1.msra.mxu0 %v2056
        %4469 = vmatprep.subr.mxu0 %v2061
        %4470 = vmatpush1.msra.mxu0 %v2060
        %4471 = vmatprep.subr.mxu0 %v2065
        %4472 = vmatpush1.msra.mxu0 %v2064
        %4473 = vmatprep.subr.mxu0 %v2069
        %4474 = vmatpush1.msra.mxu0 %v2068
        %4475 = vmatprep.subr.mxu0 %v2073
        %4476 = vmatpush1.msra.mxu0 %v2072
        %4477 = vmatprep.subr.mxu0 %v2077
        %4478 = vmatpush1.msra.mxu0 %v2076
        %4479 = vmatprep.subr.mxu0 %v2081
        %4480 = vmatpush1.msra.mxu0 %v2080
        %4481 = vmatprep.subr.mxu0 %v2085
        %4482 = vmatpush1.msra.mxu0 %v2084
        %4483 = vmatprep.subr.mxu0 %v2089
        %4484 = vmatpush1.msra.mxu0 %v2088
        %4485 = vmatprep.subr.mxu0 %v2093
        %4486 = vmatpush1.msra.mxu0 %v2092
        %4487 = vmatprep.subr.mxu0 %v2097
        %4488 = vmatpush1.msra.mxu0 %v2096
        %4489 = vmatprep.subr.mxu0 %v2101
        %4490 = vmatpush1.msra.mxu0 %v2100
        %4491 = vmatprep.subr.mxu0 %v2105
        %4492 = vmatpush1.msra.mxu0 %v2104
        %4493 = vmatprep.subr.mxu0 %v2109
        %4494 = vmatpush1.msra.mxu0 %v2108
        %4495 = vmatprep.subr.mxu0 %v2113
        %4496 = vmatpush1.msra.mxu0 %v2112
        %4497 = vmatprep.subr.mxu0 %v2117
        %4498 = vmatpush1.msra.mxu0 %v2116
        %4499 = vmatprep.subr.mxu0 %v2121
        %4500 = vmatpush1.msra.mxu0 %v2120
        %4501 = vmatprep.mubr.f32.mxu0 %v325
        %4502 = vmatmul.mubr.f32.gmra.mrb[0].mxu0 %v324
        %v4503 = vpop.f32.mrb[0].mxu0
        %v4504 = vadd.f32 %v4433, %v4503
        %v4505 = vpop.f32.mrb[0].mxu0
        %v4506 = vadd.f32 %v4435, %v4505
        %4507 = vdwg.mxu0
        %4508 = vmatprep.subr.mxu0 %v2125
        %4509 = vmatpush1.msra.mxu0 %v2124
        %4510 = vmatprep.subr.mxu0 %v2129
        %4511 = vmatpush1.msra.mxu0 %v2128
        %4512 = vmatprep.subr.mxu0 %v2133
        %4513 = vmatpush1.msra.mxu0 %v2132
        %4514 = vmatprep.subr.mxu0 %v2137
        %4515 = vmatpush1.msra.mxu0 %v2136
        %4516 = vmatprep.subr.mxu0 %v2141
        %4517 = vmatpush1.msra.mxu0 %v2140
        %4518 = vmatprep.subr.mxu0 %v2145
        %4519 = vmatpush1.msra.mxu0 %v2144
        %4520 = vmatprep.subr.mxu0 %v2149
        %4521 = vmatpush1.msra.mxu0 %v2148
        %4522 = vmatprep.subr.mxu0 %v2153
        %4523 = vmatpush1.msra.mxu0 %v2152
        %4524 = vmatprep.subr.mxu0 %v2157
        %4525 = vmatpush1.msra.mxu0 %v2156
        %4526 = vmatprep.subr.mxu0 %v2161
        %4527 = vmatpush1.msra.mxu0 %v2160
        %4528 = vmatprep.subr.mxu0 %v2165
        %4529 = vmatpush1.msra.mxu0 %v2164
        %4530 = vmatprep.subr.mxu0 %v2169
        %4531 = vmatpush1.msra.mxu0 %v2168
        %4532 = vmatprep.subr.mxu0 %v2173
        %4533 = vmatpush1.msra.mxu0 %v2172
        %4534 = vmatprep.subr.mxu0 %v2177
        %4535 = vmatpush1.msra.mxu0 %v2176
        %4536 = vmatprep.subr.mxu0 %v2181
        %4537 = vmatpush1.msra.mxu0 %v2180
        %4538 = vmatprep.subr.mxu0 %v2185
        %4539 = vmatpush1.msra.mxu0 %v2184
        %4540 = vmatprep.subr.mxu0 %v2189
        %4541 = vmatpush1.msra.mxu0 %v2188
        %4542 = vmatprep.subr.mxu0 %v2193
        %4543 = vmatpush1.msra.mxu0 %v2192
        %4544 = vmatprep.subr.mxu0 %v2197
        %4545 = vmatpush1.msra.mxu0 %v2196
        %4546 = vmatprep.subr.mxu0 %v2201
        %4547 = vmatpush1.msra.mxu0 %v2200
        %4548 = vmatprep.subr.mxu0 %v2205
        %4549 = vmatpush1.msra.mxu0 %v2204
        %4550 = vmatprep.subr.mxu0 %v2209
        %4551 = vmatpush1.msra.mxu0 %v2208
        %4552 = vmatprep.subr.mxu0 %v2213
        %4553 = vmatpush1.msra.mxu0 %v2212
        %4554 = vmatprep.subr.mxu0 %v2217
        %4555 = vmatpush1.msra.mxu0 %v2216
        %4556 = vmatprep.subr.mxu0 %v2221
        %4557 = vmatpush1.msra.mxu0 %v2220
        %4558 = vmatprep.subr.mxu0 %v2225
        %4559 = vmatpush1.msra.mxu0 %v2224
        %4560 = vmatprep.subr.mxu0 %v2229
        %4561 = vmatpush1.msra.mxu0 %v2228
        %4562 = vmatprep.subr.mxu0 %v2233
        %4563 = vmatpush1.msra.mxu0 %v2232
        %4564 = vmatprep.subr.mxu0 %v2237
        %4565 = vmatpush1.msra.mxu0 %v2236
        %4566 = vmatprep.subr.mxu0 %v2241
        %4567 = vmatpush1.msra.mxu0 %v2240
        %4568 = vmatprep.subr.mxu0 %v2245
        %4569 = vmatpush1.msra.mxu0 %v2244
        %4570 = vmatprep.subr.mxu0 %v2249
        %4571 = vmatpush1.msra.mxu0 %v2248
        %4572 = vmatprep.mubr.f32.mxu0 %v327
        %4573 = vmatmul.mubr.f32.gmra.mrb[0].mxu0 %v326
        %v4574 = vpop.f32.mrb[0].mxu0
        %v4575 = vadd.f32 %v4504, %v4574
        %v4576 = vpop.f32.mrb[0].mxu0
        %v4577 = vadd.f32 %v4506, %v4576
        %4578 = vdwg.mxu0
        %4579 = vmatprep.subr.mxu0 %v2253
        %4580 = vmatpush1.msra.mxu0 %v2252
        %4581 = vmatprep.subr.mxu0 %v2257
        %4582 = vmatpush1.msra.mxu0 %v2256
        %4583 = vmatprep.subr.mxu0 %v2261
        %4584 = vmatpush1.msra.mxu0 %v2260
        %4585 = vmatprep.subr.mxu0 %v2265
        %4586 = vmatpush1.msra.mxu0 %v2264
        %4587 = vmatprep.subr.mxu0 %v2269
        %4588 = vmatpush1.msra.mxu0 %v2268
        %4589 = vmatprep.subr.mxu0 %v2273
        %4590 = vmatpush1.msra.mxu0 %v2272
        %4591 = vmatprep.subr.mxu0 %v2277
        %4592 = vmatpush1.msra.mxu0 %v2276
        %4593 = vmatprep.subr.mxu0 %v2281
        %4594 = vmatpush1.msra.mxu0 %v2280
        %4595 = vmatprep.subr.mxu0 %v2285
        %4596 = vmatpush1.msra.mxu0 %v2284
        %4597 = vmatprep.subr.mxu0 %v2289
        %4598 = vmatpush1.msra.mxu0 %v2288
        %4599 = vmatprep.subr.mxu0 %v2293
        %4600 = vmatpush1.msra.mxu0 %v2292
        %4601 = vmatprep.subr.mxu0 %v2297
        %4602 = vmatpush1.msra.mxu0 %v2296
        %4603 = vmatprep.subr.mxu0 %v2301
        %4604 = vmatpush1.msra.mxu0 %v2300
        %4605 = vmatprep.subr.mxu0 %v2305
        %4606 = vmatpush1.msra.mxu0 %v2304
        %4607 = vmatprep.subr.mxu0 %v2309
        %4608 = vmatpush1.msra.mxu0 %v2308
        %4609 = vmatprep.subr.mxu0 %v2313
        %4610 = vmatpush1.msra.mxu0 %v2312
        %4611 = vmatprep.subr.mxu0 %v2317
        %4612 = vmatpush1.msra.mxu0 %v2316
        %4613 = vmatprep.subr.mxu0 %v2321
        %4614 = vmatpush1.msra.mxu0 %v2320
        %4615 = vmatprep.subr.mxu0 %v2325
        %4616 = vmatpush1.msra.mxu0 %v2324
        %4617 = vmatprep.subr.mxu0 %v2329
        %4618 = vmatpush1.msra.mxu0 %v2328
        %4619 = vmatprep.subr.mxu0 %v2333
        %4620 = vmatpush1.msra.mxu0 %v2332
        %4621 = vmatprep.subr.mxu0 %v2337
        %4622 = vmatpush1.msra.mxu0 %v2336
        %4623 = vmatprep.subr.mxu0 %v2341
        %4624 = vmatpush1.msra.mxu0 %v2340
        %4625 = vmatprep.subr.mxu0 %v2345
        %4626 = vmatpush1.msra.mxu0 %v2344
        %4627 = vmatprep.subr.mxu0 %v2349
        %4628 = vmatpush1.msra.mxu0 %v2348
        %4629 = vmatprep.subr.mxu0 %v2353
        %4630 = vmatpush1.msra.mxu0 %v2352
        %4631 = vmatprep.subr.mxu0 %v2357
        %4632 = vmatpush1.msra.mxu0 %v2356
        %4633 = vmatprep.subr.mxu0 %v2361
        %4634 = vmatpush1.msra.mxu0 %v2360
        %4635 = vmatprep.subr.mxu0 %v2365
        %4636 = vmatpush1.msra.mxu0 %v2364
        %4637 = vmatprep.subr.mxu0 %v2369
        %4638 = vmatpush1.msra.mxu0 %v2368
        %4639 = vmatprep.subr.mxu0 %v2373
        %4640 = vmatpush1.msra.mxu0 %v2372
        %4641 = vmatprep.subr.mxu0 %v2377
        %4642 = vmatpush1.msra.mxu0 %v2376
        %4643 = vmatprep.mubr.f32.mxu0 %v329
        %4644 = vmatmul.mubr.f32.gmra.mrb[0].mxu0 %v328
        %v4645 = vpop.f32.mrb[0].mxu0
        %v4646 = vadd.f32 %v4575, %v4645
        %v4647 = vpop.f32.mrb[0].mxu0
        %v4648 = vadd.f32 %v4577, %v4647
        %4649 = vdwg.mxu0
        %v4650 = vadd.f32 %v294, %v3510
        %v4651 = vadd.f32 %v295, %v3512
        %v4652 = vadd.f32 %v296, %v4646
        %v4653 = vadd.f32 %v297, %v4648
        %4654 = vst [vmem:[#allocation2] sm:$0xff] %v4650
        %4655 = vst [vmem:[#allocation2 + $0x8] sm:$0xff] %v4651
        %4656 = vst [vmem:[#allocation2 + $0x10] sm:$0xff] %v4652
        %4657 = vst [vmem:[#allocation2 + $0x18] sm:$0xff] %v4653
        %p4658 = scmp.eq.s32.totalorder %s25, 2
        // Predicated region
        $region49: #{net_forward.2} parent=31 // pred_check
          %p4659 = pneg %p4658
        $region50: #{net_forward.2} parent=31 // pred_check_branch
          %4661 = sbr.rel (%p4659) target = $region52
        $region51: #{net_forward.2} parent=31 // pred_region
          %v4662 = vld [vmem:[#allocation2] sm:$0xff]
          %v4663 = vld [vmem:[#allocation2 + $0x8] sm:$0xff]
          %v4664 = vld [vmem:[#allocation2 + $0x10] sm:$0xff]
          %v4665 = vld [vmem:[#allocation2 + $0x18] sm:$0xff]
          %v4666 = vld [vmem:[%s243] sm:$0xf]
          %v4668 = vlaneseq
          %v4669 = vshrl.u32 %v4668, 7
          %v4670 = vsub.s32 0, %v4669
          %v4671 = vrot.slane %v4666, %v4670
          %v4672 = vlaneseq
          %v4673 = vshrl.u32 %v4672, 7
          %v4674 = vsub.s32 1, %v4673
          %v4675 = vrot.slane %v4666, %v4674
          %v4676 = vlaneseq
          %v4677 = vshrl.u32 %v4676, 7
          %v4678 = vsub.s32 2, %v4677
          %v4679 = vrot.slane %v4666, %v4678
          %v4680 = vlaneseq
          %v4681 = vshrl.u32 %v4680, 7
          %v4682 = vsub.s32 3, %v4681
          %v4683 = vrot.slane %v4666, %v4682
          %v4688 = vadd.f32 %v4662, %v4671
          %v4689 = vadd.f32 %v4663, %v4675
          %v4690 = vadd.f32 %v4664, %v4679
          %v4691 = vadd.f32 %v4665, %v4683
          %vm4692 = vcmp.gt.f32.partialorder %v4688, 0.0
          %vm4693 = vcmp.gt.f32.partialorder %v4689, 0.0
          %vm4694 = vcmp.gt.f32.partialorder %v4690, 0.0
          %vm4695 = vcmp.gt.f32.partialorder %v4691, 0.0
          %v4696 = vmul.f32 %v4688, 0.01
          %v4697 = vmul.f32 %v4689, 0.01
          %v4698 = vmul.f32 %v4690, 0.01
          %v4699 = vmul.f32 %v4691, 0.01
          %v4700 = vsel %vm4692, %v4688, %v4696
          %v4701 = vsel %vm4693, %v4689, %v4697
          %v4702 = vsel %vm4694, %v4690, %v4698
          %v4703 = vsel %vm4695, %v4691, %v4699
          %4704 = vst [vmem:[%s284] sm:$0xff] %v4700
          %4705 = vst [vmem:[%s284 + $0x8] sm:$0xff] %v4701
          %4706 = vst [vmem:[%s284 + $0x10] sm:$0xff] %v4702
          %4707 = vst [vmem:[%s284 + $0x18] sm:$0xff] %v4703
        $region52: #{net_forward.2} parent=31 // pred_fallthru
          _
        %s4708 = smul.u32 4, %s24
        %p4709 = scmp.lt.s32.totalorder %s4708, 7
        %s4710 = scalar_select %p4709, %s4708, 7
        %s4711 = smul.addr %s4710, 8
        %s4712 = scalar_lea.vmem %s3, %s4711
        // Predicated region
        $region53: #{net_forward.2} parent=31 // pred_check
          %p4713 = pneg %p130
        $region54: #{net_forward.2} parent=31 // pred_check_branch
          %4715 = sbr.rel (%p4713) target = $region56
        $region55: #{net_forward.2} parent=31 // pred_region
          %s4716 = smul.u32 4, %s24
        $region56: #{net_forward.2} parent=31 // pred_fallthru
          _
      $region32: #{net_forward.2} parent=5 // pred_fallthru
        _
      %p4717 = scmp.le.s32.totalorder 2, %s15
      // Predicated region
      $region57: #{net_forward.2} parent=5 // pred_check
        %p4718 = pneg %p4717
      $region58: #{net_forward.2} parent=5 // pred_check_branch
        %4720 = sbr.rel (%p4718) target = $region60
      $region59: #{net_forward.2} parent=5 // pred_region
        %s4721 = ssub.s32 %s15, 2
        // Predicated region
        $region61: #{net_forward.2} parent=59 // pred_check
          %p4722 = pneg %p136
        $region62: #{net_forward.2} parent=59 // pred_check_branch
          %4724 = sbr.rel (%p4722) target = $region64
        $region63: #{net_forward.2} parent=59 // pred_region
          %s4725 = smul.u32 4, %s26
          %p4726 = scmp.lt.s32.totalorder %s4725, 7
          %s4727 = scalar_select %p4726, %s4725, 7
          %s4728 = smul.addr %s4727, 8
          %s4729 = scalar_lea.vmem %s3, %s4728
        $region64: #{net_forward.2} parent=59 // pred_fallthru
          _
      $region60: #{net_forward.2} parent=5 // pred_fallthru
        _
    $region6: #{net_forward.2} parent=1 // loop_footer
      %s19 = sadd.s32 1, %s15
    $region7: #{net_forward.2} parent=1 // loop_footer_branch
      %14 = sbr.rel target = $region3
    $region8: #{net_forward.2} parent=1 // loop_exit
      _
    %4730 = vsyncpa [#allocation4], 1
    %s4731 = scalar_lea.sflag [#allocation4], 1
    %4732 = vsyncpa %s4731, 1
    %4733 = vsyncpa [#allocation6], 1
    %s4734 = scalar_lea.sflag [#allocation6], 1
    %4735 = vsyncpa %s4734, 1

</llo_original>
